<compile_context>
chip_gen: v7x
topology: tpu7x:2x2x1
jax: 0.10.0
libtpu: 0.0.40
codegen_flags: <defaults>
</compile_context>

<pallas_src>
import math
import functools

import jax
import jax.numpy as jnp
from jax import lax
from jax.experimental import pallas as pl
from jax.experimental.pallas import tpu as pltpu


def _layer_norm(h, gamma, beta, eps=1e-5):
    mean = jnp.mean(h, axis=-1, keepdims=True)
    var = jnp.mean((h - mean) * (h - mean), axis=-1, keepdims=True)
    return (h - mean) * lax.rsqrt(var + eps) * gamma + beta


def _make_kernel(nhead, head_dim, seq_len, causal, ff_chunk):
    H, Dh, S = nhead, head_dim, seq_len
    D = H * Dh
    scale = 1.0 / math.sqrt(Dh)

    def kernel(x_ref, wqkv_ref, bqkv_ref, wo_ref, w1_ref, b1_ref, w2_ref,
               vecs_ref, o_ref, g_ref):
        TB = x_ref.shape[0]
        M = TB * S
        F = w1_ref.shape[1]

        x = x_ref[...]                          # (TB, S, D) f32
        x2 = x.reshape(M, D)                    # tall MXU LHS, shared by all matmuls
        x2b = x2.astype(jnp.bfloat16)

        # ---- fused QKV projection: bf16 x bf16 -> f32 accumulate ----
        qkv = jnp.dot(x2b, wqkv_ref[...],
                      preferred_element_type=jnp.float32) + bqkv_ref[...]   # (M, 3D) f32

        # causal mask built once, outside the head loop
        if causal:
            row = lax.broadcasted_iota(jnp.int32, (S, S), 0)
            col = lax.broadcasted_iota(jnp.int32, (S, S), 1)
            causal_mask = (col > row)[None, :, :]            # (1, S, S)

        # ---- attention per head (bf16 QKV ~ torch .half(), f32 accumulation) ----
        # g_ref row order g = s*H + h is exactly the memory order of the
        # (S, H, Dh)-contiguous flash-attn output, so the reference module's
        # view(B,H,S,Dh).transpose(1,2).reshape(B,S,D) becomes:
        #   output column block h'  ==  g_ref rows [h'*S, (h'+1)*S).
        for h in range(H):
            qh = qkv[:, h * Dh:(h + 1) * Dh].reshape(TB, S, Dh).astype(jnp.bfloat16)
            kh = qkv[:, D + h * Dh:D + (h + 1) * Dh].reshape(TB, S, Dh).astype(jnp.bfloat16)
            vh = qkv[:, 2 * D + h * Dh:2 * D + (h + 1) * Dh].reshape(TB, S, Dh).astype(jnp.bfloat16)

            s = jnp.einsum('bqd,bkd->bqk', qh, kh,
                           preferred_element_type=jnp.float32) * scale       # (TB, S, S) f32
            if causal:
                s = jnp.where(causal_mask, -1e30, s)
            m = jnp.max(s, axis=-1, keepdims=True)
            e = jnp.exp(s - m)
            p = e * pl.reciprocal(jnp.sum(e, axis=-1, keepdims=True), approx=True)
            out_h = jnp.einsum('bqk,bkd->bqd', p.astype(jnp.bfloat16), vh,
                               preferred_element_type=jnp.float32)            # (TB, S, Dh) f32

            if H == 1:
                g_ref[...] = out_h                    # permutation is identity
            else:
                # static row scatter implementing the faithful reinterpretation
                for srow in range(S):
                    g = srow * H + h
                    g_ref[:, g:g + 1, :] = out_h[:, srow:srow + 1, :]

        # stacked small vectors: [bo, ln1_g, ln1_b, b2, ln2_g, ln2_b]
        bo, g1, be1, b2, g2, be2 = (vecs_ref[i:i + 1, :] for i in range(6))

        # ---- out_proj, permutation folded in: sum over permuted column blocks ----
        proj = None
        for hp in range(H):
            blk = g_ref[:, hp * S:(hp + 1) * S, :].reshape(M, Dh).astype(jnp.bfloat16)
            part = jnp.dot(blk, wo_ref[hp * Dh:(hp + 1) * Dh, :],
                           preferred_element_type=jnp.float32)
            proj = part if proj is None else proj + part
        proj = proj + bo

        # residual + norm1  (dropout = identity, eval mode)
        h1 = _layer_norm(x2 + proj, g1, be1)

        # ---- feed-forward with chunked hidden dim; residual + norm2 ----
        h1b = h1.astype(jnp.bfloat16)
        n_chunks = F // ff_chunk
        f = None
        for c in range(n_chunks):
            c0 = c * ff_chunk
            c1 = c0 + ff_chunk
            t = jnp.dot(h1b, w1_ref[:, c0:c1],
                        preferred_element_type=jnp.float32) + b1_ref[:, c0:c1]
            t = jnp.maximum(t, 0.0)
            part = jnp.dot(t.astype(jnp.bfloat16), w2_ref[c0:c1, :],
                           preferred_element_type=jnp.float32)
            f = part if f is None else f + part
        f = f + b2
        h2 = _layer_norm(h1 + f, g2, be2)

        o_ref[...] = h2.reshape(TB, S, D).astype(o_ref.dtype)

    return kernel


def _vmem_budget_bytes():
    """Generation-aware VMEM budget (leaves headroom below physical capacity)."""
    cap = 64 * 1024 * 1024                    # assume the tightest (v7x) if unknown
    try:
        info = pltpu.get_tpu_info()
        cap = int(getattr(info, "vmem_capacity_bytes", cap))
    except Exception:
        pass
    return max(16 * 1024 * 1024, min(cap - 16 * 1024 * 1024, 100 * 1024 * 1024))


def _live_bytes(TB, S, D, F, ff_chunk):
    """Rough upper bound of the kernel's VMEM live set for a batch tile TB."""
    M = TB * S
    f32, bf16 = 4, 2
    b = 0
    b += 2 * 2 * M * D * f32                          # x tile + out tile, double-buffered
    b += M * 3 * D * f32                              # fused qkv activation
    b += M * D * f32                                  # g scratch (permuted attention rows)
    b += 3 * M * D * f32                              # proj / h1 / ff accumulators
    b += 2 * TB * S * S * f32                         # per-head scores + probs
    b += 2 * M * ff_chunk * f32                       # ff hidden chunk (+ bf16 copy)
    b += 2 * bf16 * (3 * D * D + D * D + 2 * D * F)   # bf16 weights, double-buffered
    b += 2 * f32 * (3 * D + F + 6 * D)                # biases / LN vectors
    b += 2 * 1024 * 1024                              # fixed overhead
    return b


def _pick_block_b(B, S, D, F, ff_chunk, budget):
    divisors = [d for d in range(1, B + 1) if B % d == 0]
    fitting = [d for d in divisors if _live_bytes(d, S, D, F, ff_chunk) <= budget] or [1]
    tb = max(fitting)
    if tb == B and B > 1:
        proper = [d for d in fitting if d < B]
        if proper:
            tb = max(proper)          # keep >=2 grid steps for the parallel axis
    return tb


def flash_encoder_layer_forward(x, params, *, nhead, causal=False,
                                key_padding_mask=None, block_b=None,
                                ff_chunk=None):
    """x: (B, S, d_model) float32. Returns (B, S, d_model) float32."""
    # key_padding_mask accepted for API parity but, exactly like the reference
    # module's forward, never used.
    del key_padding_mask
    B, S, D = x.shape
    H = nhead
    assert D % H == 0, "d_model must be divisible by nhead"
    Dh = D // H
    F = params["w1"].shape[1]
    assert D % 128 == 0 and Dh % 128 == 0 and F % 128 == 0 and S % 8 == 0

    if ff_chunk is None:
        if F > 512 and F % 512 == 0:
            ff_chunk = 512
        elif F % 256 == 0:
            ff_chunk = 256
        else:
            ff_chunk = F
    assert ff_chunk % 128 == 0 and F % ff_chunk == 0

    budget = _vmem_budget_bytes()
    TB = block_b if block_b is not None else _pick_block_b(B, S, D, F, ff_chunk, budget)
    assert B % TB == 0

    kernel = _make_kernel(H, Dh, S, causal, ff_chunk)
    out = pl.pallas_call(
        kernel,
        out_shape=jax.ShapeDtypeStruct((B, S, D), jnp.float32),
        grid_spec=pltpu.PrefetchScalarGridSpec(
            num_scalar_prefetch=0,
            grid=(B // TB,),
            in_specs=[
                pl.BlockSpec((TB, S, D), lambda b: (b, 0, 0)),      # x tile
                pl.BlockSpec((D, 3 * D), lambda b: (0, 0)),         # Wqkv (bf16, resident)
                pl.BlockSpec((1, 3 * D), lambda b: (0, 0)),         # bqkv
                pl.BlockSpec((D, D), lambda b: (0, 0)),             # Wo (bf16)
                pl.BlockSpec((D, F), lambda b: (0, 0)),             # W1 (bf16)
                pl.BlockSpec((1, F), lambda b: (0, 0)),             # b1
                pl.BlockSpec((F, D), lambda b: (0, 0)),             # W2 (bf16)
                pl.BlockSpec((6, D), lambda b: (0, 0)),             # stacked vectors
            ],
            out_specs=pl.BlockSpec((TB, S, D), lambda b: (b, 0, 0)),
            scratch_shapes=[pltpu.VMEM((TB, S * H, Dh), jnp.float32)],
        ),
        compiler_params=pltpu.CompilerParams(
            dimension_semantics=("parallel",),
            vmem_limit_bytes=int(budget)),
    )(x, params["wqkv"], params["bqkv"], params["wo"], params["w1"],
      params["b1"], params["w2"], params["vecs"])
    return out


def _reference_forward(x, params, *, nhead, causal=False):
    """Straightforward JAX transcription of the PyTorch forward (eval mode),
    using the same dtype policy as the kernel (bf16 matmul operands with f32
    accumulation; bf16 stands in for the .half() on Q/K/V)."""
    B, S, D = x.shape
    H = nhead
    Dh = D // H
    scale = 1.0 / math.sqrt(Dh)
    vecs = params["vecs"]
    bo, g1, be1, b2, g2, be2 = (vecs[i] for i in range(6))

    xb = x.astype(jnp.bfloat16)
    qkv = jnp.einsum('bsd,df->bsf', xb, params["wqkv"],
                     preferred_element_type=jnp.float32) + params["bqkv"][0]
    q, k, v = qkv[..., 0:D], qkv[..., D:2 * D], qkv[..., 2 * D:3 * D]
    Q = q.reshape(B, S, H, Dh).astype(jnp.bfloat16)
    K = k.reshape(B, S, H, Dh).astype(jnp.bfloat16)
    V = v.reshape(B, S, H, Dh).astype(jnp.bfloat16)
    s = jnp.einsum('bqhd,bkhd->bhqk', Q, K,
                   preferred_element_type=jnp.float32) * scale
    if causal:
        row = jnp.arange(S)[:, None]
        col = jnp.arange(S)[None, :]
        s = jnp.where(col > row, -1e30, s)
    s = s - jnp.max(s, axis=-1, keepdims=True)
    e = jnp.exp(s)
    p = e / jnp.sum(e, axis=-1, keepdims=True)
    attn = jnp.einsum('bhqk,bkhd->bqhd', p.astype(jnp.bfloat16), V,
                      preferred_element_type=jnp.float32)        # (B, S, H, Dh) f32
    # Reference module's head re-combination (faithful, including the raw view):
    attn = attn.reshape(B, H, S, Dh)          # .view(B, nhead, S, d_head)
    attn = jnp.swapaxes(attn, 1, 2)           # .transpose(1, 2)
    attn = attn.reshape(B, S, D)              # .reshape(B, S, d_model)
    attn = jnp.einsum('bsd,de->bse', attn.astype(jnp.bfloat16), params["wo"],
                      preferred_element_type=jnp.float32) + bo
    h1 = _layer_norm(x + attn, g1, be1)       # x + dropout(attn); norm1
    t = jnp.einsum('bsd,df->bsf', h1.astype(jnp.bfloat16), params["w1"],
                   preferred_element_type=jnp.float32) + params["b1"][0]
    t = jnp.maximum(t, 0.0)
    f = jnp.einsum('bsf,fd->bsd', t.astype(jnp.bfloat16), params["w2"],
                   preferred_element_type=jnp.float32) + b2
    return _layer_norm(h1 + f, g2, be2)       # x + ff; norm2


def init_params(key, d_model, dim_feedforward):
    """Weights stored in (in, out) layout == torch Linear weight transposed once.
    Matmul weights in bf16 (MXU-native); biases / LayerNorm params in f32."""
    D, F = d_model, dim_feedforward
    ks = jax.random.split(key, 8)
    s = 0.02
    wqkv = (jax.random.normal(ks[0], (D, 3 * D), jnp.float32) * s).astype(jnp.bfloat16)
    bqkv = jax.random.normal(ks[1], (1, 3 * D), jnp.float32) * s
    wo = (jax.random.normal(ks[2], (D, D), jnp.float32) * s).astype(jnp.bfloat16)
    bo = jax.random.normal(ks[3], (D,), jnp.float32) * s
    w1 = (jax.random.normal(ks[4], (D, F), jnp.float32) * s).astype(jnp.bfloat16)
    b1 = jax.random.normal(ks[5], (1, F), jnp.float32) * s
    w2 = (jax.random.normal(ks[6], (F, D), jnp.float32) * s).astype(jnp.bfloat16)
    b2 = jax.random.normal(ks[7], (D,), jnp.float32) * s
    ln1_g = jnp.ones((D,), jnp.float32)
    ln1_b = jnp.zeros((D,), jnp.float32)
    ln2_g = jnp.ones((D,), jnp.float32)
    ln2_b = jnp.zeros((D,), jnp.float32)
    vecs = jnp.stack([bo, ln1_g, ln1_b, b2, ln2_g, ln2_b], axis=0)   # (6, D) f32
    return dict(wqkv=wqkv, bqkv=bqkv, wo=wo, w1=w1, b1=b1, w2=w2, vecs=vecs)


if __name__ == "__main__":
    # Small demo shapes: d_model and head_dim multiples of 128 keep every
    # in-kernel slice lane-aligned; B/TB = 2 grid steps exercise the pipeline
    # and the parallel (megacore) axis; F/ff_chunk = 2 exercises FF chunking;
    # nhead = 2 exercises the faithful view/transpose/reshape row scatter.
    B, S, d_model, nhead, dim_ff = 4, 8, 256, 2, 512

    key = jax.random.PRNGKey(0)
    kp, kx = jax.random.split(key)
    params = init_params(kp, d_model, dim_ff)
    x = jax.random.normal(kx, (B, S, d_model), jnp.float32)

    fwd = jax.jit(functools.partial(flash_encoder_layer_forward,
                                    nhead=nhead, causal=False))
    out = jax.block_until_ready(fwd(x, params))

    ref = _reference_forward(x, params, nhead=nhead, causal=False)
    assert out.shape == (B, S, d_model)
    err = float(jnp.max(jnp.abs(out - ref)))
    # bf16 matmuls + approx softmax reciprocal -> loose-ish tolerance.
    assert jnp.allclose(out, ref, atol=2e-2, rtol=2e-2), \
        f"mismatch vs reference, max abs err = {err}"
    print("KERNEL_OK")
</pallas_src>

<mosaic_0001>
module attributes {stable_mosaic.version = 11 : i64} {
  func.func @kernel(%arg0: i32, %arg1: memref<2x8x256xf32, #tpu.memory_space<vmem>>, %arg2: memref<256x768xbf16, #tpu.memory_space<vmem>>, %arg3: memref<1x768xf32, #tpu.memory_space<vmem>>, %arg4: memref<256x256xbf16, #tpu.memory_space<vmem>>, %arg5: memref<256x512xbf16, #tpu.memory_space<vmem>>, %arg6: memref<1x512xf32, #tpu.memory_space<vmem>>, %arg7: memref<512x256xbf16, #tpu.memory_space<vmem>>, %arg8: memref<6x256xf32, #tpu.memory_space<vmem>>, %arg9: memref<2x8x256xf32, #tpu.memory_space<vmem>>, %arg10: memref<2x16x128xf32, #tpu.memory_space<vmem>>) attributes {dimension_semantics = [#tpu.dimension_semantics<parallel>], iteration_bounds = array<i64: 2>, scalar_prefetch = 0 : i64, scratch_operands = 1 : i64, tpu.core_type = #tpu.core_type<tc>, window_params = [{transform_indices = @transform_0, window_bounds = array<i64: 2, 8, 256>}, {pipeline_mode = #tpu.pipeline_mode<synchronous>, transform_indices = @transform_1, window_bounds = array<i64: 256, 768>}, {pipeline_mode = #tpu.pipeline_mode<synchronous>, transform_indices = @transform_2, window_bounds = array<i64: 1, 768>}, {pipeline_mode = #tpu.pipeline_mode<synchronous>, transform_indices = @transform_3, window_bounds = array<i64: 256, 256>}, {pipeline_mode = #tpu.pipeline_mode<synchronous>, transform_indices = @transform_4, window_bounds = array<i64: 256, 512>}, {pipeline_mode = #tpu.pipeline_mode<synchronous>, transform_indices = @transform_5, window_bounds = array<i64: 1, 512>}, {pipeline_mode = #tpu.pipeline_mode<synchronous>, transform_indices = @transform_6, window_bounds = array<i64: 512, 256>}, {pipeline_mode = #tpu.pipeline_mode<synchronous>, transform_indices = @transform_7, window_bounds = array<i64: 6, 256>}, {transform_indices = @transform_8, window_bounds = array<i64: 2, 8, 256>}]} {
    %c0 = arith.constant 0 : index
    %c0_0 = arith.constant 0 : index
    %c0_1 = arith.constant 0 : index
    %0 = vector.load %arg1[%c0, %c0_0, %c0_1] : memref<2x8x256xf32, #tpu.memory_space<vmem>>, vector<2x8x256xf32>
    %1 = vector.shape_cast %0 : vector<2x8x256xf32> to vector<16x256xf32>
    %2 = arith.truncf %1 : vector<16x256xf32> to vector<16x256xbf16>
    %c0_2 = arith.constant 0 : index
    %c0_3 = arith.constant 0 : index
    %3 = vector.load %arg2[%c0_2, %c0_3] : memref<256x768xbf16, #tpu.memory_space<vmem>>, vector<256x768xbf16>
    %cst = arith.constant dense<0.000000e+00> : vector<16x768xf32>
    %4 = tpu.matmul %2, %3, %cst {dimension_numbers = #tpu.dot_dimension_numbers<[1], [0], [0], [1], [0, 0, 1, 1], [], []>} : vector<16x256xbf16>, vector<256x768xbf16>, vector<16x768xf32> -> vector<16x768xf32>
    %c0_4 = arith.constant 0 : index
    %c0_5 = arith.constant 0 : index
    %5 = vector.load %arg3[%c0_4, %c0_5] : memref<1x768xf32, #tpu.memory_space<vmem>>, vector<1x768xf32>
    %6 = vector.broadcast %5 : vector<1x768xf32> to vector<16x768xf32>
    %7 = arith.addf %4, %6 : vector<16x768xf32>
    %8 = vector.extract_strided_slice %7 {offsets = [0, 0], sizes = [16, 128], strides = [1, 1]} : vector<16x768xf32> to vector<16x128xf32>
    %9 = vector.shape_cast %8 : vector<16x128xf32> to vector<2x8x128xf32>
    %10 = arith.truncf %9 : vector<2x8x128xf32> to vector<2x8x128xbf16>
    %11 = vector.extract_strided_slice %7 {offsets = [0, 256], sizes = [16, 128], strides = [1, 1]} : vector<16x768xf32> to vector<16x128xf32>
    %12 = vector.shape_cast %11 : vector<16x128xf32> to vector<2x8x128xf32>
    %13 = arith.truncf %12 : vector<2x8x128xf32> to vector<2x8x128xbf16>
    %14 = vector.extract_strided_slice %7 {offsets = [0, 512], sizes = [16, 128], strides = [1, 1]} : vector<16x768xf32> to vector<16x128xf32>
    %15 = vector.shape_cast %14 : vector<16x128xf32> to vector<2x8x128xf32>
    %16 = arith.truncf %15 : vector<2x8x128xf32> to vector<2x8x128xbf16>
    "tpu.trace_start"() <{level = 10 : i32, message = "bqd,bkd->bqk"}> : () -> ()
    %cst_6 = arith.constant dense<0.000000e+00> : vector<2x8x8xf32>
    %17 = tpu.matmul %10, %13, %cst_6 {dimension_numbers = #tpu.dot_dimension_numbers<[2], [2], [1], [1], [0, 0, 0, 1, 1, 1], [0], [0]>} : vector<2x8x128xbf16>, vector<2x8x128xbf16>, vector<2x8x8xf32> -> vector<2x8x8xf32>
    "tpu.trace_stop"() : () -> ()
    %cst_7 = arith.constant 0.0883883461 : f32
    %18 = vector.broadcast %cst_7 : f32 to vector<2x8x8xf32>
    %19 = arith.mulf %17, %18 : vector<2x8x8xf32>
    %cst_8 = arith.constant dense<0xFF800000> : vector<2x8xf32>
    %20 = vector.multi_reduction <maximumf>, %19, %cst_8 [2] : vector<2x8x8xf32> to vector<2x8xf32>
    %21 = vector.shape_cast %20 : vector<2x8xf32> to vector<2x8x1xf32>
    %22 = vector.broadcast %21 : vector<2x8x1xf32> to vector<2x8x8xf32>
    %23 = arith.subf %19, %22 : vector<2x8x8xf32>
    %24 = math.exp %23 : vector<2x8x8xf32>
    %cst_9 = arith.constant dense<0.000000e+00> : vector<2x8xf32>
    %25 = vector.multi_reduction <add>, %24, %cst_9 [2] : vector<2x8x8xf32> to vector<2x8xf32>
    %26 = vector.shape_cast %25 : vector<2x8xf32> to vector<2x8x1xf32>
    %27 = tpu.reciprocal %26 {approx = true} : vector<2x8x1xf32> -> vector<2x8x1xf32>
    %28 = vector.broadcast %27 : vector<2x8x1xf32> to vector<2x8x8xf32>
    %29 = arith.mulf %24, %28 : vector<2x8x8xf32>
    %30 = arith.truncf %29 : vector<2x8x8xf32> to vector<2x8x8xbf16>
    "tpu.trace_start"() <{level = 10 : i32, message = "bqk,bkd->bqd"}> : () -> ()
    %cst_10 = arith.constant dense<0.000000e+00> : vector<2x8x128xf32>
    %31 = tpu.matmul %30, %16, %cst_10 {dimension_numbers = #tpu.dot_dimension_numbers<[2], [1], [1], [2], [0, 0, 0, 1, 1, 2], [0], [0]>} : vector<2x8x8xbf16>, vector<2x8x128xbf16>, vector<2x8x128xf32> -> vector<2x8x128xf32>
    "tpu.trace_stop"() : () -> ()
    %32 = vector.extract_strided_slice %31 {offsets = [0, 0, 0], sizes = [2, 1, 128], strides = [1, 1, 1]} : vector<2x8x128xf32> to vector<2x1x128xf32>
    %c0_11 = arith.constant 0 : index
    %c0_12 = arith.constant 0 : index
    %c0_13 = arith.constant 0 : index
    %33 = vector.load %arg10[%c0_11, %c0_12, %c0_13] : memref<2x16x128xf32, #tpu.memory_space<vmem>>, vector<2x1x128xf32>
    tpu.vector_store %arg10[%c0_11, %c0_12, %c0_13], %32 {strides = array<i32>} : memref<2x16x128xf32, #tpu.memory_space<vmem>>, vector<2x1x128xf32>,
    %34 = vector.extract_strided_slice %31 {offsets = [0, 1, 0], sizes = [2, 1, 128], strides = [1, 1, 1]} : vector<2x8x128xf32> to vector<2x1x128xf32>
    %c0_14 = arith.constant 0 : index
    %c2 = arith.constant 2 : index
    %c0_15 = arith.constant 0 : index
    %35 = vector.load %arg10[%c0_14, %c2, %c0_15] : memref<2x16x128xf32, #tpu.memory_space<vmem>>, vector<2x1x128xf32>
    tpu.vector_store %arg10[%c0_14, %c2, %c0_15], %34 {strides = array<i32>} : memref<2x16x128xf32, #tpu.memory_space<vmem>>, vector<2x1x128xf32>,
    %36 = vector.extract_strided_slice %31 {offsets = [0, 2, 0], sizes = [2, 1, 128], strides = [1, 1, 1]} : vector<2x8x128xf32> to vector<2x1x128xf32>
    %c0_16 = arith.constant 0 : index
    %c4 = arith.constant 4 : index
    %c0_17 = arith.constant 0 : index
    %37 = vector.load %arg10[%c0_16, %c4, %c0_17] : memref<2x16x128xf32, #tpu.memory_space<vmem>>, vector<2x1x128xf32>
    tpu.vector_store %arg10[%c0_16, %c4, %c0_17], %36 {strides = array<i32>} : memref<2x16x128xf32, #tpu.memory_space<vmem>>, vector<2x1x128xf32>,
    %38 = vector.extract_strided_slice %31 {offsets = [0, 3, 0], sizes = [2, 1, 128], strides = [1, 1, 1]} : vector<2x8x128xf32> to vector<2x1x128xf32>
    %c0_18 = arith.constant 0 : index
    %c6 = arith.constant 6 : index
    %c0_19 = arith.constant 0 : index
    %39 = vector.load %arg10[%c0_18, %c6, %c0_19] : memref<2x16x128xf32, #tpu.memory_space<vmem>>, vector<2x1x128xf32>
    tpu.vector_store %arg10[%c0_18, %c6, %c0_19], %38 {strides = array<i32>} : memref<2x16x128xf32, #tpu.memory_space<vmem>>, vector<2x1x128xf32>,
    %40 = vector.extract_strided_slice %31 {offsets = [0, 4, 0], sizes = [2, 1, 128], strides = [1, 1, 1]} : vector<2x8x128xf32> to vector<2x1x128xf32>
    %c0_20 = arith.constant 0 : index
    %c8 = arith.constant 8 : index
    %c0_21 = arith.constant 0 : index
    %41 = vector.load %arg10[%c0_20, %c8, %c0_21] : memref<2x16x128xf32, #tpu.memory_space<vmem>>, vector<2x1x128xf32>
    tpu.vector_store %arg10[%c0_20, %c8, %c0_21], %40 {strides = array<i32>} : memref<2x16x128xf32, #tpu.memory_space<vmem>>, vector<2x1x128xf32>,
    %42 = vector.extract_strided_slice %31 {offsets = [0, 5, 0], sizes = [2, 1, 128], strides = [1, 1, 1]} : vector<2x8x128xf32> to vector<2x1x128xf32>
    %c0_22 = arith.constant 0 : index
    %c10 = arith.constant 10 : index
    %c0_23 = arith.constant 0 : index
    %43 = vector.load %arg10[%c0_22, %c10, %c0_23] : memref<2x16x128xf32, #tpu.memory_space<vmem>>, vector<2x1x128xf32>
    tpu.vector_store %arg10[%c0_22, %c10, %c0_23], %42 {strides = array<i32>} : memref<2x16x128xf32, #tpu.memory_space<vmem>>, vector<2x1x128xf32>,
    %44 = vector.extract_strided_slice %31 {offsets = [0, 6, 0], sizes = [2, 1, 128], strides = [1, 1, 1]} : vector<2x8x128xf32> to vector<2x1x128xf32>
    %c0_24 = arith.constant 0 : index
    %c12 = arith.constant 12 : index
    %c0_25 = arith.constant 0 : index
    %45 = vector.load %arg10[%c0_24, %c12, %c0_25] : memref<2x16x128xf32, #tpu.memory_space<vmem>>, vector<2x1x128xf32>
    tpu.vector_store %arg10[%c0_24, %c12, %c0_25], %44 {strides = array<i32>} : memref<2x16x128xf32, #tpu.memory_space<vmem>>, vector<2x1x128xf32>,
    %46 = vector.extract_strided_slice %31 {offsets = [0, 7, 0], sizes = [2, 1, 128], strides = [1, 1, 1]} : vector<2x8x128xf32> to vector<2x1x128xf32>
    %c0_26 = arith.constant 0 : index
    %c14 = arith.constant 14 : index
    %c0_27 = arith.constant 0 : index
    %47 = vector.load %arg10[%c0_26, %c14, %c0_27] : memref<2x16x128xf32, #tpu.memory_space<vmem>>, vector<2x1x128xf32>
    tpu.vector_store %arg10[%c0_26, %c14, %c0_27], %46 {strides = array<i32>} : memref<2x16x128xf32, #tpu.memory_space<vmem>>, vector<2x1x128xf32>,
    %48 = vector.extract_strided_slice %7 {offsets = [0, 128], sizes = [16, 128], strides = [1, 1]} : vector<16x768xf32> to vector<16x128xf32>
    %49 = vector.shape_cast %48 : vector<16x128xf32> to vector<2x8x128xf32>
    %50 = arith.truncf %49 : vector<2x8x128xf32> to vector<2x8x128xbf16>
    %51 = vector.extract_strided_slice %7 {offsets = [0, 384], sizes = [16, 128], strides = [1, 1]} : vector<16x768xf32> to vector<16x128xf32>
    %52 = vector.shape_cast %51 : vector<16x128xf32> to vector<2x8x128xf32>
    %53 = arith.truncf %52 : vector<2x8x128xf32> to vector<2x8x128xbf16>
    %54 = vector.extract_strided_slice %7 {offsets = [0, 640], sizes = [16, 128], strides = [1, 1]} : vector<16x768xf32> to vector<16x128xf32>
    %55 = vector.shape_cast %54 : vector<16x128xf32> to vector<2x8x128xf32>
    %56 = arith.truncf %55 : vector<2x8x128xf32> to vector<2x8x128xbf16>
    "tpu.trace_start"() <{level = 10 : i32, message = "bqd,bkd->bqk"}> : () -> ()
    %cst_28 = arith.constant dense<0.000000e+00> : vector<2x8x8xf32>
    %57 = tpu.matmul %50, %53, %cst_28 {dimension_numbers = #tpu.dot_dimension_numbers<[2], [2], [1], [1], [0, 0, 0, 1, 1, 1], [0], [0]>} : vector<2x8x128xbf16>, vector<2x8x128xbf16>, vector<2x8x8xf32> -> vector<2x8x8xf32>
    "tpu.trace_stop"() : () -> ()
    %cst_29 = arith.constant 0.0883883461 : f32
    %58 = vector.broadcast %cst_29 : f32 to vector<2x8x8xf32>
    %59 = arith.mulf %57, %58 : vector<2x8x8xf32>
    %cst_30 = arith.constant dense<0xFF800000> : vector<2x8xf32>
    %60 = vector.multi_reduction <maximumf>, %59, %cst_30 [2] : vector<2x8x8xf32> to vector<2x8xf32>
    %61 = vector.shape_cast %60 : vector<2x8xf32> to vector<2x8x1xf32>
    %62 = vector.broadcast %61 : vector<2x8x1xf32> to vector<2x8x8xf32>
    %63 = arith.subf %59, %62 : vector<2x8x8xf32>
    %64 = math.exp %63 : vector<2x8x8xf32>
    %cst_31 = arith.constant dense<0.000000e+00> : vector<2x8xf32>
    %65 = vector.multi_reduction <add>, %64, %cst_31 [2] : vector<2x8x8xf32> to vector<2x8xf32>
    %66 = vector.shape_cast %65 : vector<2x8xf32> to vector<2x8x1xf32>
    %67 = tpu.reciprocal %66 {approx = true} : vector<2x8x1xf32> -> vector<2x8x1xf32>
    %68 = vector.broadcast %67 : vector<2x8x1xf32> to vector<2x8x8xf32>
    %69 = arith.mulf %64, %68 : vector<2x8x8xf32>
    %70 = arith.truncf %69 : vector<2x8x8xf32> to vector<2x8x8xbf16>
    "tpu.trace_start"() <{level = 10 : i32, message = "bqk,bkd->bqd"}> : () -> ()
    %cst_32 = arith.constant dense<0.000000e+00> : vector<2x8x128xf32>
    %71 = tpu.matmul %70, %56, %cst_32 {dimension_numbers = #tpu.dot_dimension_numbers<[2], [1], [1], [2], [0, 0, 0, 1, 1, 2], [0], [0]>} : vector<2x8x8xbf16>, vector<2x8x128xbf16>, vector<2x8x128xf32> -> vector<2x8x128xf32>
    "tpu.trace_stop"() : () -> ()
    %72 = vector.extract_strided_slice %71 {offsets = [0, 0, 0], sizes = [2, 1, 128], strides = [1, 1, 1]} : vector<2x8x128xf32> to vector<2x1x128xf32>
    %c0_33 = arith.constant 0 : index
    %c1 = arith.constant 1 : index
    %c0_34 = arith.constant 0 : index
    %73 = vector.load %arg10[%c0_33, %c1, %c0_34] : memref<2x16x128xf32, #tpu.memory_space<vmem>>, vector<2x1x128xf32>
    tpu.vector_store %arg10[%c0_33, %c1, %c0_34], %72 {strides = array<i32>} : memref<2x16x128xf32, #tpu.memory_space<vmem>>, vector<2x1x128xf32>,
    %74 = vector.extract_strided_slice %71 {offsets = [0, 1, 0], sizes = [2, 1, 128], strides = [1, 1, 1]} : vector<2x8x128xf32> to vector<2x1x128xf32>
    %c0_35 = arith.constant 0 : index
    %c3 = arith.constant 3 : index
    %c0_36 = arith.constant 0 : index
    %75 = vector.load %arg10[%c0_35, %c3, %c0_36] : memref<2x16x128xf32, #tpu.memory_space<vmem>>, vector<2x1x128xf32>
    tpu.vector_store %arg10[%c0_35, %c3, %c0_36], %74 {strides = array<i32>} : memref<2x16x128xf32, #tpu.memory_space<vmem>>, vector<2x1x128xf32>,
    %76 = vector.extract_strided_slice %71 {offsets = [0, 2, 0], sizes = [2, 1, 128], strides = [1, 1, 1]} : vector<2x8x128xf32> to vector<2x1x128xf32>
    %c0_37 = arith.constant 0 : index
    %c5 = arith.constant 5 : index
    %c0_38 = arith.constant 0 : index
    %77 = vector.load %arg10[%c0_37, %c5, %c0_38] : memref<2x16x128xf32, #tpu.memory_space<vmem>>, vector<2x1x128xf32>
    tpu.vector_store %arg10[%c0_37, %c5, %c0_38], %76 {strides = array<i32>} : memref<2x16x128xf32, #tpu.memory_space<vmem>>, vector<2x1x128xf32>,
    %78 = vector.extract_strided_slice %71 {offsets = [0, 3, 0], sizes = [2, 1, 128], strides = [1, 1, 1]} : vector<2x8x128xf32> to vector<2x1x128xf32>
    %c0_39 = arith.constant 0 : index
    %c7 = arith.constant 7 : index
    %c0_40 = arith.constant 0 : index
    %79 = vector.load %arg10[%c0_39, %c7, %c0_40] : memref<2x16x128xf32, #tpu.memory_space<vmem>>, vector<2x1x128xf32>
    tpu.vector_store %arg10[%c0_39, %c7, %c0_40], %78 {strides = array<i32>} : memref<2x16x128xf32, #tpu.memory_space<vmem>>, vector<2x1x128xf32>,
    %80 = vector.extract_strided_slice %71 {offsets = [0, 4, 0], sizes = [2, 1, 128], strides = [1, 1, 1]} : vector<2x8x128xf32> to vector<2x1x128xf32>
    %c0_41 = arith.constant 0 : index
    %c9 = arith.constant 9 : index
    %c0_42 = arith.constant 0 : index
    %81 = vector.load %arg10[%c0_41, %c9, %c0_42] : memref<2x16x128xf32, #tpu.memory_space<vmem>>, vector<2x1x128xf32>
    tpu.vector_store %arg10[%c0_41, %c9, %c0_42], %80 {strides = array<i32>} : memref<2x16x128xf32, #tpu.memory_space<vmem>>, vector<2x1x128xf32>,
    %82 = vector.extract_strided_slice %71 {offsets = [0, 5, 0], sizes = [2, 1, 128], strides = [1, 1, 1]} : vector<2x8x128xf32> to vector<2x1x128xf32>
    %c0_43 = arith.constant 0 : index
    %c11 = arith.constant 11 : index
    %c0_44 = arith.constant 0 : index
    %83 = vector.load %arg10[%c0_43, %c11, %c0_44] : memref<2x16x128xf32, #tpu.memory_space<vmem>>, vector<2x1x128xf32>
    tpu.vector_store %arg10[%c0_43, %c11, %c0_44], %82 {strides = array<i32>} : memref<2x16x128xf32, #tpu.memory_space<vmem>>, vector<2x1x128xf32>,
    %84 = vector.extract_strided_slice %71 {offsets = [0, 6, 0], sizes = [2, 1, 128], strides = [1, 1, 1]} : vector<2x8x128xf32> to vector<2x1x128xf32>
    %c0_45 = arith.constant 0 : index
    %c13 = arith.constant 13 : index
    %c0_46 = arith.constant 0 : index
    %85 = vector.load %arg10[%c0_45, %c13, %c0_46] : memref<2x16x128xf32, #tpu.memory_space<vmem>>, vector<2x1x128xf32>
    tpu.vector_store %arg10[%c0_45, %c13, %c0_46], %84 {strides = array<i32>} : memref<2x16x128xf32, #tpu.memory_space<vmem>>, vector<2x1x128xf32>,
    %86 = vector.extract_strided_slice %71 {offsets = [0, 7, 0], sizes = [2, 1, 128], strides = [1, 1, 1]} : vector<2x8x128xf32> to vector<2x1x128xf32>
    %c0_47 = arith.constant 0 : index
    %c15 = arith.constant 15 : index
    %c0_48 = arith.constant 0 : index
    %87 = vector.load %arg10[%c0_47, %c15, %c0_48] : memref<2x16x128xf32, #tpu.memory_space<vmem>>, vector<2x1x128xf32>
    tpu.vector_store %arg10[%c0_47, %c15, %c0_48], %86 {strides = array<i32>} : memref<2x16x128xf32, #tpu.memory_space<vmem>>, vector<2x1x128xf32>,
    %c0_49 = arith.constant 0 : index
    %c0_50 = arith.constant 0 : index
    %88 = vector.load %arg8[%c0_49, %c0_50] : memref<6x256xf32, #tpu.memory_space<vmem>>, vector<1x256xf32>
    %c1_51 = arith.constant 1 : index
    %c0_52 = arith.constant 0 : index
    %89 = vector.load %arg8[%c1_51, %c0_52] : memref<6x256xf32, #tpu.memory_space<vmem>>, vector<1x256xf32>
    %c2_53 = arith.constant 2 : index
    %c0_54 = arith.constant 0 : index
    %90 = vector.load %arg8[%c2_53, %c0_54] : memref<6x256xf32, #tpu.memory_space<vmem>>, vector<1x256xf32>
    %c3_55 = arith.constant 3 : index
    %c0_56 = arith.constant 0 : index
    %91 = vector.load %arg8[%c3_55, %c0_56] : memref<6x256xf32, #tpu.memory_space<vmem>>, vector<1x256xf32>
    %c4_57 = arith.constant 4 : index
    %c0_58 = arith.constant 0 : index
    %92 = vector.load %arg8[%c4_57, %c0_58] : memref<6x256xf32, #tpu.memory_space<vmem>>, vector<1x256xf32>
    %c5_59 = arith.constant 5 : index
    %c0_60 = arith.constant 0 : index
    %93 = vector.load %arg8[%c5_59, %c0_60] : memref<6x256xf32, #tpu.memory_space<vmem>>, vector<1x256xf32>
    %c0_61 = arith.constant 0 : index
    %c0_62 = arith.constant 0 : index
    %c0_63 = arith.constant 0 : index
    %94 = vector.load %arg10[%c0_61, %c0_62, %c0_63] : memref<2x16x128xf32, #tpu.memory_space<vmem>>, vector<2x8x128xf32>
    %95 = vector.shape_cast %94 : vector<2x8x128xf32> to vector<16x128xf32>
    %96 = arith.truncf %95 : vector<16x128xf32> to vector<16x128xbf16>
    %c0_64 = arith.constant 0 : index
    %c0_65 = arith.constant 0 : index
    %97 = vector.load %arg4[%c0_64, %c0_65] : memref<256x256xbf16, #tpu.memory_space<vmem>>, vector<128x256xbf16>
    %cst_66 = arith.constant dense<0.000000e+00> : vector<16x256xf32>
    %98 = tpu.matmul %96, %97, %cst_66 {dimension_numbers = #tpu.dot_dimension_numbers<[1], [0], [0], [1], [0, 0, 1, 1], [], []>} : vector<16x128xbf16>, vector<128x256xbf16>, vector<16x256xf32> -> vector<16x256xf32>
    %c0_67 = arith.constant 0 : index
    %c8_68 = arith.constant 8 : index
    %c0_69 = arith.constant 0 : index
    %99 = vector.load %arg10[%c0_67, %c8_68, %c0_69] : memref<2x16x128xf32, #tpu.memory_space<vmem>>, vector<2x8x128xf32>
    %100 = vector.shape_cast %99 : vector<2x8x128xf32> to vector<16x128xf32>
    %101 = arith.truncf %100 : vector<16x128xf32> to vector<16x128xbf16>
    %c128 = arith.constant 128 : index
    %c0_70 = arith.constant 0 : index
    %102 = vector.load %arg4[%c128, %c0_70] : memref<256x256xbf16, #tpu.memory_space<vmem>>, vector<128x256xbf16>
    %cst_71 = arith.constant dense<0.000000e+00> : vector<16x256xf32>
    %103 = tpu.matmul %101, %102, %cst_71 {dimension_numbers = #tpu.dot_dimension_numbers<[1], [0], [0], [1], [0, 0, 1, 1], [], []>} : vector<16x128xbf16>, vector<128x256xbf16>, vector<16x256xf32> -> vector<16x256xf32>
    %104 = arith.addf %98, %103 : vector<16x256xf32>
    %105 = vector.broadcast %88 : vector<1x256xf32> to vector<16x256xf32>
    %106 = arith.addf %104, %105 : vector<16x256xf32>
    %107 = arith.addf %1, %106 : vector<16x256xf32>
    %cst_72 = arith.constant dense<0.000000e+00> : vector<16xf32>
    %108 = vector.multi_reduction <add>, %107, %cst_72 [1] : vector<16x256xf32> to vector<16xf32>
    %109 = vector.shape_cast %108 : vector<16xf32> to vector<16x1xf32>
    %cst_73 = arith.constant 2.560000e+02 : f32
    %110 = vector.broadcast %cst_73 : f32 to vector<16x1xf32>
    %111 = arith.divf %109, %110 : vector<16x1xf32>
    %112 = vector.broadcast %111 : vector<16x1xf32> to vector<16x256xf32>
    %113 = arith.subf %107, %112 : vector<16x256xf32>
    %114 = vector.broadcast %111 : vector<16x1xf32> to vector<16x256xf32>
    %115 = arith.subf %107, %114 : vector<16x256xf32>
    %116 = arith.mulf %113, %115 : vector<16x256xf32>
    %cst_74 = arith.constant dense<0.000000e+00> : vector<16xf32>
    %117 = vector.multi_reduction <add>, %116, %cst_74 [1] : vector<16x256xf32> to vector<16xf32>
    %118 = vector.shape_cast %117 : vector<16xf32> to vector<16x1xf32>
    %cst_75 = arith.constant 2.560000e+02 : f32
    %119 = vector.broadcast %cst_75 : f32 to vector<16x1xf32>
    %120 = arith.divf %118, %119 : vector<16x1xf32>
    %121 = vector.broadcast %111 : vector<16x1xf32> to vector<16x256xf32>
    %122 = arith.subf %107, %121 : vector<16x256xf32>
    %cst_76 = arith.constant 9.99999974E-6 : f32
    %123 = vector.broadcast %cst_76 : f32 to vector<16x1xf32>
    %124 = arith.addf %120, %123 : vector<16x1xf32>
    %125 = math.rsqrt %124 : vector<16x1xf32>
    %126 = vector.broadcast %125 : vector<16x1xf32> to vector<16x256xf32>
    %127 = arith.mulf %122, %126 : vector<16x256xf32>
    %128 = vector.broadcast %89 : vector<1x256xf32> to vector<16x256xf32>
    %129 = arith.mulf %127, %128 : vector<16x256xf32>
    %130 = vector.broadcast %90 : vector<1x256xf32> to vector<16x256xf32>
    %131 = arith.addf %129, %130 : vector<16x256xf32>
    %132 = arith.truncf %131 : vector<16x256xf32> to vector<16x256xbf16>
    %c0_77 = arith.constant 0 : index
    %c0_78 = arith.constant 0 : index
    %133 = vector.load %arg5[%c0_77, %c0_78] : memref<256x512xbf16, #tpu.memory_space<vmem>>, vector<256x256xbf16>
    %cst_79 = arith.constant dense<0.000000e+00> : vector<16x256xf32>
    %134 = tpu.matmul %132, %133, %cst_79 {dimension_numbers = #tpu.dot_dimension_numbers<[1], [0], [0], [1], [0, 0, 1, 1], [], []>} : vector<16x256xbf16>, vector<256x256xbf16>, vector<16x256xf32> -> vector<16x256xf32>
    %c0_80 = arith.constant 0 : index
    %c0_81 = arith.constant 0 : index
    %135 = vector.load %arg6[%c0_80, %c0_81] : memref<1x512xf32, #tpu.memory_space<vmem>>, vector<1x256xf32>
    %136 = vector.broadcast %135 : vector<1x256xf32> to vector<16x256xf32>
    %137 = arith.addf %134, %136 : vector<16x256xf32>
    %cst_82 = arith.constant 0.000000e+00 : f32
    %138 = vector.broadcast %cst_82 : f32 to vector<16x256xf32>
    %139 = arith.maximumf %137, %138 : vector<16x256xf32>
    %140 = arith.truncf %139 : vector<16x256xf32> to vector<16x256xbf16>
    %c0_83 = arith.constant 0 : index
    %c0_84 = arith.constant 0 : index
    %141 = vector.load %arg7[%c0_83, %c0_84] : memref<512x256xbf16, #tpu.memory_space<vmem>>, vector<256x256xbf16>
    %cst_85 = arith.constant dense<0.000000e+00> : vector<16x256xf32>
    %142 = tpu.matmul %140, %141, %cst_85 {dimension_numbers = #tpu.dot_dimension_numbers<[1], [0], [0], [1], [0, 0, 1, 1], [], []>} : vector<16x256xbf16>, vector<256x256xbf16>, vector<16x256xf32> -> vector<16x256xf32>
    %c0_86 = arith.constant 0 : index
    %c256 = arith.constant 256 : index
    %143 = vector.load %arg5[%c0_86, %c256] : memref<256x512xbf16, #tpu.memory_space<vmem>>, vector<256x256xbf16>
    %cst_87 = arith.constant dense<0.000000e+00> : vector<16x256xf32>
    %144 = tpu.matmul %132, %143, %cst_87 {dimension_numbers = #tpu.dot_dimension_numbers<[1], [0], [0], [1], [0, 0, 1, 1], [], []>} : vector<16x256xbf16>, vector<256x256xbf16>, vector<16x256xf32> -> vector<16x256xf32>
    %c0_88 = arith.constant 0 : index
    %c256_89 = arith.constant 256 : index
    %145 = vector.load %arg6[%c0_88, %c256_89] : memref<1x512xf32, #tpu.memory_space<vmem>>, vector<1x256xf32>
    %146 = vector.broadcast %145 : vector<1x256xf32> to vector<16x256xf32>
    %147 = arith.addf %144, %146 : vector<16x256xf32>
    %cst_90 = arith.constant 0.000000e+00 : f32
    %148 = vector.broadcast %cst_90 : f32 to vector<16x256xf32>
    %149 = arith.maximumf %147, %148 : vector<16x256xf32>
    %150 = arith.truncf %149 : vector<16x256xf32> to vector<16x256xbf16>
    %c256_91 = arith.constant 256 : index
    %c0_92 = arith.constant 0 : index
    %151 = vector.load %arg7[%c256_91, %c0_92] : memref<512x256xbf16, #tpu.memory_space<vmem>>, vector<256x256xbf16>
    %cst_93 = arith.constant dense<0.000000e+00> : vector<16x256xf32>
    %152 = tpu.matmul %150, %151, %cst_93 {dimension_numbers = #tpu.dot_dimension_numbers<[1], [0], [0], [1], [0, 0, 1, 1], [], []>} : vector<16x256xbf16>, vector<256x256xbf16>, vector<16x256xf32> -> vector<16x256xf32>
    %153 = arith.addf %142, %152 : vector<16x256xf32>
    %154 = vector.broadcast %91 : vector<1x256xf32> to vector<16x256xf32>
    %155 = arith.addf %153, %154 : vector<16x256xf32>
    %156 = arith.addf %131, %155 : vector<16x256xf32>
    %cst_94 = arith.constant dense<0.000000e+00> : vector<16xf32>
    %157 = vector.multi_reduction <add>, %156, %cst_94 [1] : vector<16x256xf32> to vector<16xf32>
    %158 = vector.shape_cast %157 : vector<16xf32> to vector<16x1xf32>
    %cst_95 = arith.constant 2.560000e+02 : f32
    %159 = vector.broadcast %cst_95 : f32 to vector<16x1xf32>
    %160 = arith.divf %158, %159 : vector<16x1xf32>
    %161 = vector.broadcast %160 : vector<16x1xf32> to vector<16x256xf32>
    %162 = arith.subf %156, %161 : vector<16x256xf32>
    %163 = vector.broadcast %160 : vector<16x1xf32> to vector<16x256xf32>
    %164 = arith.subf %156, %163 : vector<16x256xf32>
    %165 = arith.mulf %162, %164 : vector<16x256xf32>
    %cst_96 = arith.constant dense<0.000000e+00> : vector<16xf32>
    %166 = vector.multi_reduction <add>, %165, %cst_96 [1] : vector<16x256xf32> to vector<16xf32>
    %167 = vector.shape_cast %166 : vector<16xf32> to vector<16x1xf32>
    %cst_97 = arith.constant 2.560000e+02 : f32
    %168 = vector.broadcast %cst_97 : f32 to vector<16x1xf32>
    %169 = arith.divf %167, %168 : vector<16x1xf32>
    %170 = vector.broadcast %160 : vector<16x1xf32> to vector<16x256xf32>
    %171 = arith.subf %156, %170 : vector<16x256xf32>
    %cst_98 = arith.constant 9.99999974E-6 : f32
    %172 = vector.broadcast %cst_98 : f32 to vector<16x1xf32>
    %173 = arith.addf %169, %172 : vector<16x1xf32>
    %174 = math.rsqrt %173 : vector<16x1xf32>
    %175 = vector.broadcast %174 : vector<16x1xf32> to vector<16x256xf32>
    %176 = arith.mulf %171, %175 : vector<16x256xf32>
    %177 = vector.broadcast %92 : vector<1x256xf32> to vector<16x256xf32>
    %178 = arith.mulf %176, %177 : vector<16x256xf32>
    %179 = vector.broadcast %93 : vector<1x256xf32> to vector<16x256xf32>
    %180 = arith.addf %178, %179 : vector<16x256xf32>
    %181 = vector.shape_cast %180 : vector<16x256xf32> to vector<2x8x256xf32>
    %c0_99 = arith.constant 0 : index
    %c0_100 = arith.constant 0 : index
    %c0_101 = arith.constant 0 : index
    %182 = vector.load %arg9[%c0_99, %c0_100, %c0_101] : memref<2x8x256xf32, #tpu.memory_space<vmem>>, vector<2x8x256xf32>
    tpu.vector_store %arg9[%c0_99, %c0_100, %c0_101], %181 {strides = array<i32>} : memref<2x8x256xf32, #tpu.memory_space<vmem>>, vector<2x8x256xf32>,
    return
  }
  func.func @transform_0(%arg0: i32) -> (i32, i32, i32) {
    %c0_i32 = arith.constant 0 : i32
    %c0_i32_0 = arith.constant 0 : i32
    %c0_i32_1 = arith.constant 0 : i32
    return %arg0, %c0_i32, %c0_i32_0 : i32, i32, i32
  }
  func.func @transform_1(%arg0: i32) -> (i32, i32) {
    %c0_i32 = arith.constant 0 : i32
    %c0_i32_0 = arith.constant 0 : i32
    %c0_i32_1 = arith.constant 0 : i32
    return %c0_i32, %c0_i32_0 : i32, i32
  }
  func.func @transform_2(%arg0: i32) -> (i32, i32) {
    %c0_i32 = arith.constant 0 : i32
    %c0_i32_0 = arith.constant 0 : i32
    %c0_i32_1 = arith.constant 0 : i32
    return %c0_i32, %c0_i32_0 : i32, i32
  }
  func.func @transform_3(%arg0: i32) -> (i32, i32) {
    %c0_i32 = arith.constant 0 : i32
    %c0_i32_0 = arith.constant 0 : i32
    %c0_i32_1 = arith.constant 0 : i32
    return %c0_i32, %c0_i32_0 : i32, i32
  }
  func.func @transform_4(%arg0: i32) -> (i32, i32) {
    %c0_i32 = arith.constant 0 : i32
    %c0_i32_0 = arith.constant 0 : i32
    %c0_i32_1 = arith.constant 0 : i32
    return %c0_i32, %c0_i32_0 : i32, i32
  }
  func.func @transform_5(%arg0: i32) -> (i32, i32) {
    %c0_i32 = arith.constant 0 : i32
    %c0_i32_0 = arith.constant 0 : i32
    %c0_i32_1 = arith.constant 0 : i32
    return %c0_i32, %c0_i32_0 : i32, i32
  }
  func.func @transform_6(%arg0: i32) -> (i32, i32) {
    %c0_i32 = arith.constant 0 : i32
    %c0_i32_0 = arith.constant 0 : i32
    %c0_i32_1 = arith.constant 0 : i32
    return %c0_i32, %c0_i32_0 : i32, i32
  }
  func.func @transform_7(%arg0: i32) -> (i32, i32) {
    %c0_i32 = arith.constant 0 : i32
    %c0_i32_0 = arith.constant 0 : i32
    %c0_i32_1 = arith.constant 0 : i32
    return %c0_i32, %c0_i32_0 : i32, i32
  }
  func.func @transform_8(%arg0: i32) -> (i32, i32, i32) {
    %c0_i32 = arith.constant 0 : i32
    %c0_i32_0 = arith.constant 0 : i32
    %c0_i32_1 = arith.constant 0 : i32
    return %arg0, %c0_i32, %c0_i32_0 : i32, i32, i32
  }
}

</mosaic_0001>

<llo_original>
// kernel: flash_encoder_layer_forward.1
$region0: #{flash_encoder_layer_forward.1}
  #allocation0 [shape = 'u32[]', space=smem, size = 0x4, offset = 0x4, fixed_abs, tag = 'smem constant byte address 0x4 - core index']
  #allocation1 [shape = 'u32[144,128]{1,0:T(1,128)}', space=vmem, size = 0x12000, scoped, tag = 'internal scratch']
  #allocation2 [shape = 'f32[2,16,128]{2,1,0:T(8,128)}', space=vmem, size = 0x4000, scoped, tag = 'scratch operand']
  %s0 = inlined_call_operand.hbm [shape: f32[4,8,256], index: 0, kind: input, shape index: {}]
  %s1 = inlined_call_operand.hbm [shape: bf16[256,768], index: 1, kind: input, shape index: {}]
  %s2 = inlined_call_operand.vmem [shape: f32[1,768], index: 2, kind: input, shape index: {}]
  %s3 = inlined_call_operand.hbm [shape: bf16[256,256], index: 3, kind: input, shape index: {}]
  %s4 = inlined_call_operand.hbm [shape: bf16[256,512], index: 4, kind: input, shape index: {}]
  %s5 = inlined_call_operand.hbm [shape: f32[1,512], index: 5, kind: input, shape index: {}]
  %s6 = inlined_call_operand.hbm [shape: bf16[512,256], index: 6, kind: input, shape index: {}]
  %s7 = inlined_call_operand.hbm [shape: f32[6,256], index: 7, kind: input, shape index: {}]
  %s8 = inlined_call_operand.hbm [shape: f32[4,8,256], index: 8, kind: output, shape index: {}]
  %s9 = sld [smem:[#allocation0]]
  $region93: #{flash_encoder_layer_forward.1} parent=0
    _
  %s11 = ssub.s32 1, %s9
  %s12 = scalar_select 0, %s11, %s9
  $region1: #{flash_encoder_layer_forward.1} parent=0
    #allocation3 [shape = 'u8[32768]{0}', space=vmem, size = 0x8000, scoped, tag = 'input window, operand 0']
    #allocation4 [shape = 's32[2]{0}', space=sflag, size = 0x8, scoped, tag = 'scoped memory for flash_encoder_layer_forward.1']
    #allocation5 [shape = 's32[2]{0}', space=sflag, size = 0x8, scoped, tag = 'scoped memory for flash_encoder_layer_forward.1']
    #allocation6 [shape = 'u8[393216]{0}', space=vmem, size = 0x60000, scoped, tag = 'input window, operand 1, single buffered']
    #allocation7 [shape = 's32[1]{0}', space=sflag, size = 0x4, scoped, tag = 'scoped memory for flash_encoder_layer_forward.1']
    #allocation8 [shape = 'u8[131072]{0}', space=vmem, size = 0x20000, scoped, tag = 'input window, operand 3, single buffered']
    #allocation9 [shape = 'u8[262144]{0}', space=vmem, size = 0x40000, scoped, tag = 'input window, operand 4, single buffered']
    #allocation10 [shape = 's32[1]{0}', space=sflag, size = 0x4, scoped, tag = 'scoped memory for flash_encoder_layer_forward.1']
    #allocation11 [shape = 'u8[2048]{0}', space=vmem, size = 0x800, scoped, tag = 'input window, operand 5, single buffered']
    #allocation12 [shape = 'u8[262144]{0}', space=vmem, size = 0x40000, scoped, tag = 'input window, operand 6, single buffered']
    #allocation13 [shape = 's32[1]{0}', space=sflag, size = 0x4, scoped, tag = 'scoped memory for flash_encoder_layer_forward.1']
    #allocation14 [shape = 'u8[8192]{0}', space=vmem, size = 0x2000, scoped, tag = 'input window, operand 7, single buffered']
    #allocation15 [shape = 'u8[32768]{0}', space=vmem, size = 0x8000, scoped, tag = 'output window, operand 0']
    %13 = vsyncpa [#allocation4], 0
    %s14 = scalar_lea.sflag [#allocation4], 1
    %15 = vsyncpa %s14, 0
    %16 = vsyncpa [#allocation7], 0
    %17 = vsyncpa [#allocation10], 0
    %18 = vsyncpa [#allocation13], 0
    %19 = vsyncpa [#allocation5], 0
    %s20 = scalar_lea.sflag [#allocation5], 1
    %21 = vsyncpa %s20, 0
    loop: start=0, step=1, limit=4
    $region2: #{flash_encoder_layer_forward.1} parent=1 // loop_pre_header
      _
    $region3: #{flash_encoder_layer_forward.1} parent=1 // loop_header
      %s23 = sphi 0, %s27
      %p24 = scmp.ge.s32.totalorder %s23, 4
      %s33 = sphi 0, %s35
      %s36 = sphi 0, %s33
      %s37 = sphi 0, %s36
      %s53 = sphi 0, %s37
      %s57 = sphi 0, %s57
      %s59 = sphi 0, %s57
      %s60 = sphi 0, %s59
      %s74 = sphi 0, %s60
      %s78 = sphi 0, %s78
      %s80 = sphi 0, %s78
      %s81 = sphi 0, %s80
      %s95 = sphi 0, %s81
      %s99 = sphi 0, %s99
      %s101 = sphi 0, %s99
      %s102 = sphi 0, %s101
      %s116 = sphi 0, %s102
      %s120 = sphi 0, %s120
      %s122 = sphi 0, %s120
      %s123 = sphi 0, %s122
      %s137 = sphi 0, %s123
      %s141 = sphi 0, %s141
      %s143 = sphi 0, %s141
      %s144 = sphi 0, %s143
      %s158 = sphi 0, %s144
      %s162 = sphi 0, %s162
      %s164 = sphi 0, %s162
      %s165 = sphi 0, %s164
      %s179 = sphi 0, %s165
      %s183 = sphi 0, %s183
      %s185 = sphi 0, %s183
      %s186 = sphi 0, %s185
      %s200 = sphi 0, %s186
      %s206 = sphi 0, %s208
      %s209 = sphi 0, %s206
      %s210 = sphi 0, %s209
      %s226 = sphi 0, %s210
    $region4: #{flash_encoder_layer_forward.1} parent=1 // loop_header_branch
      %26 = sbr.rel (%p24) target = $region8
    $region5: #{flash_encoder_layer_forward.1} parent=1 // loop_body
      %s28 = ssub.s32 %s23, 1
      %s29 = ssub.s32 %s23, 2
      %s30 = sadd.s32 %s23, 1
      %s31 = ssub.s32 %s23, %s30
      %p32 = scmp.eq.s32.totalorder %s31, 0
      %s34 = sadd.s32 %s33, 1
      %s35 = scalar_select %p32, %s33, %s34
      %p38 = pneg %p32
      %p39 = scmp.eq.s32.totalorder %s23, 1
      %p40 = por %p38, %p39
      %p41 = scmp.ne.s32.totalorder %s33, %s36
      %p42 = scmp.eq.s32.totalorder %s23, 0
      %p43 = por %p41, %p42
      %p44 = scmp.ne.s32.totalorder %s33, %s36
      %p45 = scmp.eq.s32.totalorder %s28, 1
      %p46 = por %p44, %p45
      %p47 = scmp.ne.s32.totalorder %s36, %s37
      %p48 = scmp.eq.s32.totalorder %s28, 0
      %p49 = por %p47, %p48
      %p50 = scmp.ne.s32.totalorder %s36, %s37
      %p51 = scmp.eq.s32.totalorder %s29, 1
      %p52 = por %p50, %p51
      %p54 = scmp.ne.s32.totalorder %s37, %s53
      %p55 = scmp.eq.s32.totalorder %s29, 0
      %p56 = por %p54, %p55
      %s58 = sadd.s32 %s57, 1
      %p61 = scmp.eq.s32.totalorder %s23, 1
      %p62 = scmp.ne.s32.totalorder %s57, %s59
      %p63 = scmp.eq.s32.totalorder %s23, 0
      %p64 = por %p62, %p63
      %p65 = scmp.ne.s32.totalorder %s57, %s59
      %p66 = scmp.eq.s32.totalorder %s28, 1
      %p67 = por %p65, %p66
      %p68 = scmp.ne.s32.totalorder %s59, %s60
      %p69 = scmp.eq.s32.totalorder %s28, 0
      %p70 = por %p68, %p69
      %p71 = scmp.ne.s32.totalorder %s59, %s60
      %p72 = scmp.eq.s32.totalorder %s29, 1
      %p73 = por %p71, %p72
      %p75 = scmp.ne.s32.totalorder %s60, %s74
      %p76 = scmp.eq.s32.totalorder %s29, 0
      %p77 = por %p75, %p76
      %s79 = sadd.s32 %s78, 1
      %p82 = scmp.eq.s32.totalorder %s23, 1
      %p83 = scmp.ne.s32.totalorder %s78, %s80
      %p84 = scmp.eq.s32.totalorder %s23, 0
      %p85 = por %p83, %p84
      %p86 = scmp.ne.s32.totalorder %s78, %s80
      %p87 = scmp.eq.s32.totalorder %s28, 1
      %p88 = por %p86, %p87
      %p89 = scmp.ne.s32.totalorder %s80, %s81
      %p90 = scmp.eq.s32.totalorder %s28, 0
      %p91 = por %p89, %p90
      %p92 = scmp.ne.s32.totalorder %s80, %s81
      %p93 = scmp.eq.s32.totalorder %s29, 1
      %p94 = por %p92, %p93
      %p96 = scmp.ne.s32.totalorder %s81, %s95
      %p97 = scmp.eq.s32.totalorder %s29, 0
      %p98 = por %p96, %p97
      %s100 = sadd.s32 %s99, 1
      %p103 = scmp.eq.s32.totalorder %s23, 1
      %p104 = scmp.ne.s32.totalorder %s99, %s101
      %p105 = scmp.eq.s32.totalorder %s23, 0
      %p106 = por %p104, %p105
      %p107 = scmp.ne.s32.totalorder %s99, %s101
      %p108 = scmp.eq.s32.totalorder %s28, 1
      %p109 = por %p107, %p108
      %p110 = scmp.ne.s32.totalorder %s101, %s102
      %p111 = scmp.eq.s32.totalorder %s28, 0
      %p112 = por %p110, %p111
      %p113 = scmp.ne.s32.totalorder %s101, %s102
      %p114 = scmp.eq.s32.totalorder %s29, 1
      %p115 = por %p113, %p114
      %p117 = scmp.ne.s32.totalorder %s102, %s116
      %p118 = scmp.eq.s32.totalorder %s29, 0
      %p119 = por %p117, %p118
      %s121 = sadd.s32 %s120, 1
      %p124 = scmp.eq.s32.totalorder %s23, 1
      %p125 = scmp.ne.s32.totalorder %s120, %s122
      %p126 = scmp.eq.s32.totalorder %s23, 0
      %p127 = por %p125, %p126
      %p128 = scmp.ne.s32.totalorder %s120, %s122
      %p129 = scmp.eq.s32.totalorder %s28, 1
      %p130 = por %p128, %p129
      %p131 = scmp.ne.s32.totalorder %s122, %s123
      %p132 = scmp.eq.s32.totalorder %s28, 0
      %p133 = por %p131, %p132
      %p134 = scmp.ne.s32.totalorder %s122, %s123
      %p135 = scmp.eq.s32.totalorder %s29, 1
      %p136 = por %p134, %p135
      %p138 = scmp.ne.s32.totalorder %s123, %s137
      %p139 = scmp.eq.s32.totalorder %s29, 0
      %p140 = por %p138, %p139
      %s142 = sadd.s32 %s141, 1
      %p145 = scmp.eq.s32.totalorder %s23, 1
      %p146 = scmp.ne.s32.totalorder %s141, %s143
      %p147 = scmp.eq.s32.totalorder %s23, 0
      %p148 = por %p146, %p147
      %p149 = scmp.ne.s32.totalorder %s141, %s143
      %p150 = scmp.eq.s32.totalorder %s28, 1
      %p151 = por %p149, %p150
      %p152 = scmp.ne.s32.totalorder %s143, %s144
      %p153 = scmp.eq.s32.totalorder %s28, 0
      %p154 = por %p152, %p153
      %p155 = scmp.ne.s32.totalorder %s143, %s144
      %p156 = scmp.eq.s32.totalorder %s29, 1
      %p157 = por %p155, %p156
      %p159 = scmp.ne.s32.totalorder %s144, %s158
      %p160 = scmp.eq.s32.totalorder %s29, 0
      %p161 = por %p159, %p160
      %s163 = sadd.s32 %s162, 1
      %p166 = scmp.eq.s32.totalorder %s23, 1
      %p167 = scmp.ne.s32.totalorder %s162, %s164
      %p168 = scmp.eq.s32.totalorder %s23, 0
      %p169 = por %p167, %p168
      %p170 = scmp.ne.s32.totalorder %s162, %s164
      %p171 = scmp.eq.s32.totalorder %s28, 1
      %p172 = por %p170, %p171
      %p173 = scmp.ne.s32.totalorder %s164, %s165
      %p174 = scmp.eq.s32.totalorder %s28, 0
      %p175 = por %p173, %p174
      %p176 = scmp.ne.s32.totalorder %s164, %s165
      %p177 = scmp.eq.s32.totalorder %s29, 1
      %p178 = por %p176, %p177
      %p180 = scmp.ne.s32.totalorder %s165, %s179
      %p181 = scmp.eq.s32.totalorder %s29, 0
      %p182 = por %p180, %p181
      %s184 = sadd.s32 %s183, 1
      %p187 = scmp.eq.s32.totalorder %s23, 1
      %p188 = scmp.ne.s32.totalorder %s183, %s185
      %p189 = scmp.eq.s32.totalorder %s23, 0
      %p190 = por %p188, %p189
      %p191 = scmp.ne.s32.totalorder %s183, %s185
      %p192 = scmp.eq.s32.totalorder %s28, 1
      %p193 = por %p191, %p192
      %p194 = scmp.ne.s32.totalorder %s185, %s186
      %p195 = scmp.eq.s32.totalorder %s28, 0
      %p196 = por %p194, %p195
      %p197 = scmp.ne.s32.totalorder %s185, %s186
      %p198 = scmp.eq.s32.totalorder %s29, 1
      %p199 = por %p197, %p198
      %p201 = scmp.ne.s32.totalorder %s186, %s200
      %p202 = scmp.eq.s32.totalorder %s29, 0
      %p203 = por %p201, %p202
      %s204 = ssub.s32 %s23, %s30
      %p205 = scmp.eq.s32.totalorder %s204, 0
      %s207 = sadd.s32 %s206, 1
      %s208 = scalar_select %p205, %s206, %s207
      %p211 = pneg %p205
      %p212 = scmp.eq.s32.totalorder %s23, 1
      %p213 = por %p211, %p212
      %p214 = scmp.ne.s32.totalorder %s206, %s209
      %p215 = scmp.eq.s32.totalorder %s23, 0
      %p216 = por %p214, %p215
      %p217 = scmp.ne.s32.totalorder %s206, %s209
      %p218 = scmp.eq.s32.totalorder %s28, 1
      %p219 = por %p217, %p218
      %p220 = scmp.ne.s32.totalorder %s209, %s210
      %p221 = scmp.eq.s32.totalorder %s28, 0
      %p222 = por %p220, %p221
      %p223 = scmp.ne.s32.totalorder %s209, %s210
      %p224 = scmp.eq.s32.totalorder %s29, 1
      %p225 = por %p223, %p224
      %p227 = scmp.ne.s32.totalorder %s210, %s226
      %p228 = scmp.eq.s32.totalorder %s29, 0
      %p229 = por %p227, %p228
      %p230 = scmp.le.s32.totalorder 1, %s23
      %p231 = scmp.lt.s32.totalorder %s23, 3
      %p232 = pnand %p230, %p231
      %p233 = pneg %p232
      // Predicated region
      $region9: #{flash_encoder_layer_forward.1} parent=5 // pred_check
        _
      $region10: #{flash_encoder_layer_forward.1} parent=5 // pred_check_branch
        %235 = sbr.rel (%p232) target = $region12
      $region11: #{flash_encoder_layer_forward.1} parent=5 // pred_region
        %s236 = ssub.s32 %s23, 1
        // Predicated region
        $region13: #{flash_encoder_layer_forward.1} parent=11 // pred_check
          %p237 = pneg %p70
        $region14: #{flash_encoder_layer_forward.1} parent=11 // pred_check_branch
          %239 = sbr.rel (%p237) target = $region16
        $region15: #{flash_encoder_layer_forward.1} parent=11 // pred_region
          %s241 = ssub.s32 12288, 12288
          %242 = vsyncadd [#allocation7], %s241
          %s243 = sshll.u32 [#allocation6], 4
          %s244 = int_to_ptr.vmem [resolvable:$true] %s243
          %249 = dma.hbm_to_vmem [thread:$0]  %s1, 12288, %s244, [#allocation7], 384, 384, 24
        $region16: #{flash_encoder_layer_forward.1} parent=11 // pred_fallthru
          _
        // Predicated region
        $region17: #{flash_encoder_layer_forward.1} parent=11 // pred_check
          %p250 = pneg %p91
        $region18: #{flash_encoder_layer_forward.1} parent=11 // pred_check_branch
          %252 = sbr.rel (%p250) target = $region20
        $region19: #{flash_encoder_layer_forward.1} parent=11 // pred_region
          _
        $region20: #{flash_encoder_layer_forward.1} parent=11 // pred_fallthru
          _
        // Predicated region
        $region21: #{flash_encoder_layer_forward.1} parent=11 // pred_check
          %p253 = pneg %p112
        $region22: #{flash_encoder_layer_forward.1} parent=11 // pred_check_branch
          %255 = sbr.rel (%p253) target = $region24
        $region23: #{flash_encoder_layer_forward.1} parent=11 // pred_region
          %s257 = ssub.s32 4096, 4096
          %258 = vsyncadd [#allocation7], %s257
          %s259 = sshll.u32 [#allocation8], 4
          %s260 = int_to_ptr.vmem [resolvable:$true] %s259
          %265 = dma.hbm_to_vmem [thread:$0]  %s3, 4096, %s260, [#allocation7], 128, 128, 8
        $region24: #{flash_encoder_layer_forward.1} parent=11 // pred_fallthru
          _
        // Predicated region
        $region25: #{flash_encoder_layer_forward.1} parent=11 // pred_check
          %p266 = pneg %p133
        $region26: #{flash_encoder_layer_forward.1} parent=11 // pred_check_branch
          %268 = sbr.rel (%p266) target = $region28
        $region27: #{flash_encoder_layer_forward.1} parent=11 // pred_region
          %s270 = ssub.s32 8192, 8192
          %271 = vsyncadd [#allocation10], %s270
          %s272 = sshll.u32 [#allocation9], 4
          %s273 = int_to_ptr.vmem [resolvable:$true] %s272
          %278 = dma.hbm_to_vmem [thread:$0]  %s4, 8192, %s273, [#allocation10], 256, 256, 16
        $region28: #{flash_encoder_layer_forward.1} parent=11 // pred_fallthru
          _
        // Predicated region
        $region29: #{flash_encoder_layer_forward.1} parent=11 // pred_check
          %p279 = pneg %p154
        $region30: #{flash_encoder_layer_forward.1} parent=11 // pred_check_branch
          %281 = sbr.rel (%p279) target = $region32
        $region31: #{flash_encoder_layer_forward.1} parent=11 // pred_region
          %s283 = ssub.s32 64, 64
          %284 = vsyncadd [#allocation10], %s283
          %s286 = sshll.u32 [#allocation11], 4
          %s287 = int_to_ptr.vmem [resolvable:$true] %s286
          %289 = dma.hbm_to_vmem [thread:$0]  %s5, 64, %s287, [#allocation10]
        $region32: #{flash_encoder_layer_forward.1} parent=11 // pred_fallthru
          _
        // Predicated region
        $region33: #{flash_encoder_layer_forward.1} parent=11 // pred_check
          %p290 = pneg %p175
        $region34: #{flash_encoder_layer_forward.1} parent=11 // pred_check_branch
          %292 = sbr.rel (%p290) target = $region36
        $region35: #{flash_encoder_layer_forward.1} parent=11 // pred_region
          %s294 = ssub.s32 8192, 8192
          %295 = vsyncadd [#allocation13], %s294
          %s296 = sshll.u32 [#allocation12], 4
          %s297 = int_to_ptr.vmem [resolvable:$true] %s296
          %302 = dma.hbm_to_vmem [thread:$0]  %s6, 8192, %s297, [#allocation13], 128, 128, 8
        $region36: #{flash_encoder_layer_forward.1} parent=11 // pred_fallthru
          _
        // Predicated region
        $region37: #{flash_encoder_layer_forward.1} parent=11 // pred_check
          %p303 = pneg %p196
        $region38: #{flash_encoder_layer_forward.1} parent=11 // pred_check_branch
          %305 = sbr.rel (%p303) target = $region40
        $region39: #{flash_encoder_layer_forward.1} parent=11 // pred_region
          %s307 = ssub.s32 256, 256
          %308 = vsyncadd [#allocation13], %s307
          %s310 = sshll.u32 [#allocation14], 4
          %s311 = int_to_ptr.vmem [resolvable:$true] %s310
          %313 = dma.hbm_to_vmem [thread:$0]  %s7, 256, %s311, [#allocation13]
        $region40: #{flash_encoder_layer_forward.1} parent=11 // pred_fallthru
          _
      $region12: #{flash_encoder_layer_forward.1} parent=5 // pred_fallthru
        _
      %p314 = scmp.lt.s32.totalorder %s23, 2
      // Predicated region
      $region41: #{flash_encoder_layer_forward.1} parent=5 // pred_check
        %p315 = pneg %p314
      $region42: #{flash_encoder_layer_forward.1} parent=5 // pred_check_branch
        %317 = sbr.rel (%p315) target = $region44
      $region43: #{flash_encoder_layer_forward.1} parent=5 // pred_region
        // Predicated region
        $region45: #{flash_encoder_layer_forward.1} parent=43 // pred_check
          %p318 = pneg %p43
        $region46: #{flash_encoder_layer_forward.1} parent=43 // pred_check_branch
          %320 = sbr.rel (%p318) target = $region48
        $region47: #{flash_encoder_layer_forward.1} parent=43 // pred_region
          %s321 = sand.u32 %s33, 1
          %s322 = scalar_lea.sflag [#allocation4], %s321
          %s323 = sand.u32 %s33, 1
          %s324 = smul.addr %s323, 32
          %s325 = scalar_lea.vmem [#allocation3], %s324
          %s326 = smul.u32 2, %s23
          %s328 = ssub.s32 512, 512
          %329 = vsyncadd %s322, %s328
          %s330 = smul.addr %s326, 2
          %s331 = smul.addr %s330, 128
          %s332 = scalar_lea.hbm %s0, %s331
          %s333 = sshll.u32 %s325, 4
          %s334 = int_to_ptr.vmem [resolvable:$true] %s333
          %339 = dma.hbm_to_vmem [thread:$0]  %s332, 512, %s334, %s322, 256, 256, 16
        $region48: #{flash_encoder_layer_forward.1} parent=43 // pred_fallthru
          _
      $region44: #{flash_encoder_layer_forward.1} parent=5 // pred_fallthru
        _
      %p340 = scmp.le.s32.totalorder 1, %s23
      %p341 = scmp.lt.s32.totalorder %s23, 3
      %p342 = pnand %p340, %p341
      %p343 = pneg %p342
      // Predicated region
      $region49: #{flash_encoder_layer_forward.1} parent=5 // pred_check
        _
      $region50: #{flash_encoder_layer_forward.1} parent=5 // pred_check_branch
        %345 = sbr.rel (%p342) target = $region52
      $region51: #{flash_encoder_layer_forward.1} parent=5 // pred_region
        %s346 = ssub.s32 %s23, 1
        %s347 = sand.u32 %s36, 1
        %s348 = scalar_lea.sflag [#allocation4], %s347
        %s349 = sand.u32 %s36, 1
        %s350 = smul.addr %s349, 32
        %s351 = scalar_lea.vmem [#allocation3], %s350
        // Predicated region
        $region53: #{flash_encoder_layer_forward.1} parent=51 // pred_check
          %p352 = pneg %p49
        $region54: #{flash_encoder_layer_forward.1} parent=51 // pred_check_branch
          %354 = sbr.rel (%p352) target = $region56
        $region55: #{flash_encoder_layer_forward.1} parent=51 // pred_region
          %355 = dma.done %s348, 512
        $region56: #{flash_encoder_layer_forward.1} parent=51 // pred_fallthru
          _
        // Predicated region
        $region57: #{flash_encoder_layer_forward.1} parent=51 // pred_check
          %p356 = pneg %p70
        $region58: #{flash_encoder_layer_forward.1} parent=51 // pred_check_branch
          %358 = sbr.rel (%p356) target = $region60
        $region59: #{flash_encoder_layer_forward.1} parent=51 // pred_region
          %359 = dma.done [#allocation7], 12288
        $region60: #{flash_encoder_layer_forward.1} parent=51 // pred_fallthru
          _
        // Predicated region
        $region61: #{flash_encoder_layer_forward.1} parent=51 // pred_check
          %p360 = pneg %p112
        $region62: #{flash_encoder_layer_forward.1} parent=51 // pred_check_branch
          %362 = sbr.rel (%p360) target = $region64
        $region63: #{flash_encoder_layer_forward.1} parent=51 // pred_region
          %363 = dma.done [#allocation7], 4096
        $region64: #{flash_encoder_layer_forward.1} parent=51 // pred_fallthru
          _
        // Predicated region
        $region65: #{flash_encoder_layer_forward.1} parent=51 // pred_check
          %p364 = pneg %p133
        $region66: #{flash_encoder_layer_forward.1} parent=51 // pred_check_branch
          %366 = sbr.rel (%p364) target = $region68
        $region67: #{flash_encoder_layer_forward.1} parent=51 // pred_region
          %367 = dma.done [#allocation10], 8192
        $region68: #{flash_encoder_layer_forward.1} parent=51 // pred_fallthru
          _
        // Predicated region
        $region69: #{flash_encoder_layer_forward.1} parent=51 // pred_check
          %p368 = pneg %p154
        $region70: #{flash_encoder_layer_forward.1} parent=51 // pred_check_branch
          %370 = sbr.rel (%p368) target = $region72
        $region71: #{flash_encoder_layer_forward.1} parent=51 // pred_region
          %371 = dma.done [#allocation10], 64
        $region72: #{flash_encoder_layer_forward.1} parent=51 // pred_fallthru
          _
        // Predicated region
        $region73: #{flash_encoder_layer_forward.1} parent=51 // pred_check
          %p372 = pneg %p175
        $region74: #{flash_encoder_layer_forward.1} parent=51 // pred_check_branch
          %374 = sbr.rel (%p372) target = $region76
        $region75: #{flash_encoder_layer_forward.1} parent=51 // pred_region
          %375 = dma.done [#allocation13], 8192
        $region76: #{flash_encoder_layer_forward.1} parent=51 // pred_fallthru
          _
        // Predicated region
        $region77: #{flash_encoder_layer_forward.1} parent=51 // pred_check
          %p376 = pneg %p196
        $region78: #{flash_encoder_layer_forward.1} parent=51 // pred_check_branch
          %378 = sbr.rel (%p376) target = $region80
        $region79: #{flash_encoder_layer_forward.1} parent=51 // pred_region
          %379 = dma.done [#allocation13], 256
        $region80: #{flash_encoder_layer_forward.1} parent=51 // pred_fallthru
          _
        %s380 = sand.u32 %s36, 1
        %s381 = scalar_lea.sflag [#allocation4], %s380
        %s382 = sand.u32 %s36, 1
        %s383 = smul.addr %s382, 32
        %s384 = scalar_lea.vmem [#allocation3], %s383
        %p385 = pneg %p49
        %p386 = pneg %p46
        %p387 = pneg %p70
        %p388 = pneg %p67
        %p389 = pneg %p91
        %p390 = pneg %p88
        %p391 = pneg %p112
        %p392 = pneg %p109
        %p393 = pneg %p133
        %p394 = pneg %p130
        %p395 = pneg %p154
        %p396 = pneg %p151
        %p397 = pneg %p175
        %p398 = pneg %p172
        %p399 = pneg %p196
        %p400 = pneg %p193
        %p401 = pneg %p222
        %p402 = pneg %p219
        %s403 = sand.u32 %s209, 1
        %s404 = scalar_lea.sflag [#allocation5], %s403
        %s405 = sand.u32 %s209, 1
        %s406 = smul.addr %s405, 32
        %s407 = scalar_lea.vmem [#allocation15], %s406
        %s408 = smul.u32 2, %s28
        %s409 = smul.u32 2, %s28
        %v411 = vld [vmem:[%s351] sm:$0xff]
        %v412 = vld [vmem:[%s351 + $0x8] sm:$0xff]
        %v413 = vld [vmem:[%s351 + $0x10] sm:$0xff]
        %v414 = vld [vmem:[%s351 + $0x18] sm:$0xff]
        %v415 = vpack.c.bf16 %v413, %v411
        %v416 = vpack.c.bf16 %v414, %v412
        %v417 = vld [vmem:[#allocation6] sm:$0xff]
        %v418 = vld [vmem:[#allocation6 + $0x8] sm:$0xff]
        %v419 = vld [vmem:[#allocation6 + $0x10] sm:$0xff]
        %v420 = vld [vmem:[#allocation6 + $0x18] sm:$0xff]
        %v421 = vld [vmem:[#allocation6 + $0x20] sm:$0xff]
        %v422 = vld [vmem:[#allocation6 + $0x28] sm:$0xff]
        %v423 = vld [vmem:[#allocation6 + $0x30] sm:$0xff]
        %v424 = vld [vmem:[#allocation6 + $0x38] sm:$0xff]
        %v425 = vld [vmem:[#allocation6 + $0x40] sm:$0xff]
        %v426 = vld [vmem:[#allocation6 + $0x48] sm:$0xff]
        %v427 = vld [vmem:[#allocation6 + $0x50] sm:$0xff]
        %v428 = vld [vmem:[#allocation6 + $0x58] sm:$0xff]
        %v429 = vld [vmem:[#allocation6 + $0x60] sm:$0xff]
        %v430 = vld [vmem:[#allocation6 + $0x68] sm:$0xff]
        %v431 = vld [vmem:[#allocation6 + $0x70] sm:$0xff]
        %v432 = vld [vmem:[#allocation6 + $0x78] sm:$0xff]
        %v433 = vld [vmem:[#allocation6 + $0x80] sm:$0xff]
        %v434 = vld [vmem:[#allocation6 + $0x88] sm:$0xff]
        %v435 = vld [vmem:[#allocation6 + $0x90] sm:$0xff]
        %v436 = vld [vmem:[#allocation6 + $0x98] sm:$0xff]
        %v437 = vld [vmem:[#allocation6 + $0xa0] sm:$0xff]
        %v438 = vld [vmem:[#allocation6 + $0xa8] sm:$0xff]
        %v439 = vld [vmem:[#allocation6 + $0xb0] sm:$0xff]
        %v440 = vld [vmem:[#allocation6 + $0xb8] sm:$0xff]
        %v441 = vld [vmem:[#allocation6 + $0xc0] sm:$0xff]
        %v442 = vld [vmem:[#allocation6 + $0xc8] sm:$0xff]
        %v443 = vld [vmem:[#allocation6 + $0xd0] sm:$0xff]
        %v444 = vld [vmem:[#allocation6 + $0xd8] sm:$0xff]
        %v445 = vld [vmem:[#allocation6 + $0xe0] sm:$0xff]
        %v446 = vld [vmem:[#allocation6 + $0xe8] sm:$0xff]
        %v447 = vld [vmem:[#allocation6 + $0xf0] sm:$0xff]
        %v448 = vld [vmem:[#allocation6 + $0xf8] sm:$0xff]
        %v449 = vld [vmem:[#allocation6 + $0x100] sm:$0xff]
        %v450 = vld [vmem:[#allocation6 + $0x108] sm:$0xff]
        %v451 = vld [vmem:[#allocation6 + $0x110] sm:$0xff]
        %v452 = vld [vmem:[#allocation6 + $0x118] sm:$0xff]
        %v453 = vld [vmem:[#allocation6 + $0x120] sm:$0xff]
        %v454 = vld [vmem:[#allocation6 + $0x128] sm:$0xff]
        %v455 = vld [vmem:[#allocation6 + $0x130] sm:$0xff]
        %v456 = vld [vmem:[#allocation6 + $0x138] sm:$0xff]
        %v457 = vld [vmem:[#allocation6 + $0x140] sm:$0xff]
        %v458 = vld [vmem:[#allocation6 + $0x148] sm:$0xff]
        %v459 = vld [vmem:[#allocation6 + $0x150] sm:$0xff]
        %v460 = vld [vmem:[#allocation6 + $0x158] sm:$0xff]
        %v461 = vld [vmem:[#allocation6 + $0x160] sm:$0xff]
        %v462 = vld [vmem:[#allocation6 + $0x168] sm:$0xff]
        %v463 = vld [vmem:[#allocation6 + $0x170] sm:$0xff]
        %v464 = vld [vmem:[#allocation6 + $0x178] sm:$0xff]
        %v465 = vld [vmem:[#allocation6 + $0x180] sm:$0xff]
        %v466 = vld [vmem:[#allocation6 + $0x188] sm:$0xff]
        %v467 = vld [vmem:[#allocation6 + $0x190] sm:$0xff]
        %v468 = vld [vmem:[#allocation6 + $0x198] sm:$0xff]
        %v469 = vld [vmem:[#allocation6 + $0x1a0] sm:$0xff]
        %v470 = vld [vmem:[#allocation6 + $0x1a8] sm:$0xff]
        %v471 = vld [vmem:[#allocation6 + $0x1b0] sm:$0xff]
        %v472 = vld [vmem:[#allocation6 + $0x1b8] sm:$0xff]
        %v473 = vld [vmem:[#allocation6 + $0x1c0] sm:$0xff]
        %v474 = vld [vmem:[#allocation6 + $0x1c8] sm:$0xff]
        %v475 = vld [vmem:[#allocation6 + $0x1d0] sm:$0xff]
        %v476 = vld [vmem:[#allocation6 + $0x1d8] sm:$0xff]
        %v477 = vld [vmem:[#allocation6 + $0x1e0] sm:$0xff]
        %v478 = vld [vmem:[#allocation6 + $0x1e8] sm:$0xff]
        %v479 = vld [vmem:[#allocation6 + $0x1f0] sm:$0xff]
        %v480 = vld [vmem:[#allocation6 + $0x1f8] sm:$0xff]
        %v481 = vld [vmem:[#allocation6 + $0x200] sm:$0xff]
        %v482 = vld [vmem:[#allocation6 + $0x208] sm:$0xff]
        %v483 = vld [vmem:[#allocation6 + $0x210] sm:$0xff]
        %v484 = vld [vmem:[#allocation6 + $0x218] sm:$0xff]
        %v485 = vld [vmem:[#allocation6 + $0x220] sm:$0xff]
        %v486 = vld [vmem:[#allocation6 + $0x228] sm:$0xff]
        %v487 = vld [vmem:[#allocation6 + $0x230] sm:$0xff]
        %v488 = vld [vmem:[#allocation6 + $0x238] sm:$0xff]
        %v489 = vld [vmem:[#allocation6 + $0x240] sm:$0xff]
        %v490 = vld [vmem:[#allocation6 + $0x248] sm:$0xff]
        %v491 = vld [vmem:[#allocation6 + $0x250] sm:$0xff]
        %v492 = vld [vmem:[#allocation6 + $0x258] sm:$0xff]
        %v493 = vld [vmem:[#allocation6 + $0x260] sm:$0xff]
        %v494 = vld [vmem:[#allocation6 + $0x268] sm:$0xff]
        %v495 = vld [vmem:[#allocation6 + $0x270] sm:$0xff]
        %v496 = vld [vmem:[#allocation6 + $0x278] sm:$0xff]
        %v497 = vld [vmem:[#allocation6 + $0x280] sm:$0xff]
        %v498 = vld [vmem:[#allocation6 + $0x288] sm:$0xff]
        %v499 = vld [vmem:[#allocation6 + $0x290] sm:$0xff]
        %v500 = vld [vmem:[#allocation6 + $0x298] sm:$0xff]
        %v501 = vld [vmem:[#allocation6 + $0x2a0] sm:$0xff]
        %v502 = vld [vmem:[#allocation6 + $0x2a8] sm:$0xff]
        %v503 = vld [vmem:[#allocation6 + $0x2b0] sm:$0xff]
        %v504 = vld [vmem:[#allocation6 + $0x2b8] sm:$0xff]
        %v505 = vld [vmem:[#allocation6 + $0x2c0] sm:$0xff]
        %v506 = vld [vmem:[#allocation6 + $0x2c8] sm:$0xff]
        %v507 = vld [vmem:[#allocation6 + $0x2d0] sm:$0xff]
        %v508 = vld [vmem:[#allocation6 + $0x2d8] sm:$0xff]
        %v509 = vld [vmem:[#allocation6 + $0x2e0] sm:$0xff]
        %v510 = vld [vmem:[#allocation6 + $0x2e8] sm:$0xff]
        %v511 = vld [vmem:[#allocation6 + $0x2f0] sm:$0xff]
        %v512 = vld [vmem:[#allocation6 + $0x2f8] sm:$0xff]
        %v513 = vld [vmem:[%s2] sm:$0x3f]
        %v515 = vlaneseq
        %v516 = vshrl.u32 %v515, 7
        %v517 = vsub.s32 0, %v516
        %v518 = vrot.slane %v513, %v517
        %v519 = vlaneseq
        %v520 = vshrl.u32 %v519, 7
        %v521 = vsub.s32 1, %v520
        %v522 = vrot.slane %v513, %v521
        %v523 = vlaneseq
        %v524 = vshrl.u32 %v523, 7
        %v525 = vsub.s32 2, %v524
        %v526 = vrot.slane %v513, %v525
        %v527 = vlaneseq
        %v528 = vshrl.u32 %v527, 7
        %v529 = vsub.s32 3, %v528
        %v530 = vrot.slane %v513, %v529
        %v531 = vlaneseq
        %v532 = vshrl.u32 %v531, 7
        %v533 = vsub.s32 4, %v532
        %v534 = vrot.slane %v513, %v533
        %v535 = vlaneseq
        %v536 = vshrl.u32 %v535, 7
        %v537 = vsub.s32 5, %v536
        %v538 = vrot.slane %v513, %v537
        %v641 = vunpack.c.l.b16 %v417
        %v642 = vunpack.c.h.b16 %v417
        %v643 = vunpack.c.l.b16 %v418
        %v644 = vunpack.c.h.b16 %v418
        %v645 = vunpack.c.l.b16 %v419
        %v646 = vunpack.c.h.b16 %v419
        %v647 = vunpack.c.l.b16 %v420
        %v648 = vunpack.c.h.b16 %v420
        %v649 = vunpack.c.l.b16 %v421
        %v650 = vunpack.c.h.b16 %v421
        %v651 = vunpack.c.l.b16 %v422
        %v652 = vunpack.c.h.b16 %v422
        %v653 = vunpack.c.l.b16 %v423
        %v654 = vunpack.c.h.b16 %v423
        %v655 = vunpack.c.l.b16 %v424
        %v656 = vunpack.c.h.b16 %v424
        %v657 = vunpack.c.l.b16 %v425
        %v658 = vunpack.c.h.b16 %v425
        %v659 = vunpack.c.l.b16 %v426
        %v660 = vunpack.c.h.b16 %v426
        %v661 = vunpack.c.l.b16 %v427
        %v662 = vunpack.c.h.b16 %v427
        %v663 = vunpack.c.l.b16 %v428
        %v664 = vunpack.c.h.b16 %v428
        %v665 = vunpack.c.l.b16 %v429
        %v666 = vunpack.c.h.b16 %v429
        %v667 = vunpack.c.l.b16 %v430
        %v668 = vunpack.c.h.b16 %v430
        %v669 = vunpack.c.l.b16 %v431
        %v670 = vunpack.c.h.b16 %v431
        %v671 = vunpack.c.l.b16 %v432
        %v672 = vunpack.c.h.b16 %v432
        %v673 = vunpack.c.l.b16 %v433
        %v674 = vunpack.c.h.b16 %v433
        %v675 = vunpack.c.l.b16 %v434
        %v676 = vunpack.c.h.b16 %v434
        %v677 = vunpack.c.l.b16 %v435
        %v678 = vunpack.c.h.b16 %v435
        %v679 = vunpack.c.l.b16 %v436
        %v680 = vunpack.c.h.b16 %v436
        %v681 = vunpack.c.l.b16 %v437
        %v682 = vunpack.c.h.b16 %v437
        %v683 = vunpack.c.l.b16 %v438
        %v684 = vunpack.c.h.b16 %v438
        %v685 = vunpack.c.l.b16 %v439
        %v686 = vunpack.c.h.b16 %v439
        %v687 = vunpack.c.l.b16 %v440
        %v688 = vunpack.c.h.b16 %v440
        %v689 = vunpack.c.l.b16 %v441
        %v690 = vunpack.c.h.b16 %v441
        %v691 = vunpack.c.l.b16 %v442
        %v692 = vunpack.c.h.b16 %v442
        %v693 = vunpack.c.l.b16 %v443
        %v694 = vunpack.c.h.b16 %v443
        %v695 = vunpack.c.l.b16 %v444
        %v696 = vunpack.c.h.b16 %v444
        %v697 = vunpack.c.l.b16 %v445
        %v698 = vunpack.c.h.b16 %v445
        %v699 = vunpack.c.l.b16 %v446
        %v700 = vunpack.c.h.b16 %v446
        %v701 = vunpack.c.l.b16 %v447
        %v702 = vunpack.c.h.b16 %v447
        %v703 = vunpack.c.l.b16 %v448
        %v704 = vunpack.c.h.b16 %v448
        %v705 = vunpack.c.l.b16 %v449
        %v706 = vunpack.c.h.b16 %v449
        %v707 = vunpack.c.l.b16 %v450
        %v708 = vunpack.c.h.b16 %v450
        %v709 = vunpack.c.l.b16 %v451
        %v710 = vunpack.c.h.b16 %v451
        %v711 = vunpack.c.l.b16 %v452
        %v712 = vunpack.c.h.b16 %v452
        %v713 = vunpack.c.l.b16 %v453
        %v714 = vunpack.c.h.b16 %v453
        %v715 = vunpack.c.l.b16 %v454
        %v716 = vunpack.c.h.b16 %v454
        %v717 = vunpack.c.l.b16 %v455
        %v718 = vunpack.c.h.b16 %v455
        %v719 = vunpack.c.l.b16 %v456
        %v720 = vunpack.c.h.b16 %v456
        %v721 = vunpack.c.l.b16 %v457
        %v722 = vunpack.c.h.b16 %v457
        %v723 = vunpack.c.l.b16 %v458
        %v724 = vunpack.c.h.b16 %v458
        %v725 = vunpack.c.l.b16 %v459
        %v726 = vunpack.c.h.b16 %v459
        %v727 = vunpack.c.l.b16 %v460
        %v728 = vunpack.c.h.b16 %v460
        %v729 = vunpack.c.l.b16 %v461
        %v730 = vunpack.c.h.b16 %v461
        %v731 = vunpack.c.l.b16 %v462
        %v732 = vunpack.c.h.b16 %v462
        %v733 = vunpack.c.l.b16 %v463
        %v734 = vunpack.c.h.b16 %v463
        %v735 = vunpack.c.l.b16 %v464
        %v736 = vunpack.c.h.b16 %v464
        %v737 = vunpack.c.l.b16 %v465
        %v738 = vunpack.c.h.b16 %v465
        %v739 = vunpack.c.l.b16 %v466
        %v740 = vunpack.c.h.b16 %v466
        %v741 = vunpack.c.l.b16 %v467
        %v742 = vunpack.c.h.b16 %v467
        %v743 = vunpack.c.l.b16 %v468
        %v744 = vunpack.c.h.b16 %v468
        %v745 = vunpack.c.l.b16 %v469
        %v746 = vunpack.c.h.b16 %v469
        %v747 = vunpack.c.l.b16 %v470
        %v748 = vunpack.c.h.b16 %v470
        %v749 = vunpack.c.l.b16 %v471
        %v750 = vunpack.c.h.b16 %v471
        %v751 = vunpack.c.l.b16 %v472
        %v752 = vunpack.c.h.b16 %v472
        %v753 = vunpack.c.l.b16 %v473
        %v754 = vunpack.c.h.b16 %v473
        %v755 = vunpack.c.l.b16 %v474
        %v756 = vunpack.c.h.b16 %v474
        %v757 = vunpack.c.l.b16 %v475
        %v758 = vunpack.c.h.b16 %v475
        %v759 = vunpack.c.l.b16 %v476
        %v760 = vunpack.c.h.b16 %v476
        %v761 = vunpack.c.l.b16 %v477
        %v762 = vunpack.c.h.b16 %v477
        %v763 = vunpack.c.l.b16 %v478
        %v764 = vunpack.c.h.b16 %v478
        %v765 = vunpack.c.l.b16 %v479
        %v766 = vunpack.c.h.b16 %v479
        %v767 = vunpack.c.l.b16 %v480
        %v768 = vunpack.c.h.b16 %v480
        %v769 = vunpack.c.l.b16 %v481
        %v770 = vunpack.c.h.b16 %v481
        %v771 = vunpack.c.l.b16 %v482
        %v772 = vunpack.c.h.b16 %v482
        %v773 = vunpack.c.l.b16 %v483
        %v774 = vunpack.c.h.b16 %v483
        %v775 = vunpack.c.l.b16 %v484
        %v776 = vunpack.c.h.b16 %v484
        %v777 = vunpack.c.l.b16 %v485
        %v778 = vunpack.c.h.b16 %v485
        %v779 = vunpack.c.l.b16 %v486
        %v780 = vunpack.c.h.b16 %v486
        %v781 = vunpack.c.l.b16 %v487
        %v782 = vunpack.c.h.b16 %v487
        %v783 = vunpack.c.l.b16 %v488
        %v784 = vunpack.c.h.b16 %v488
        %v785 = vunpack.c.l.b16 %v489
        %v786 = vunpack.c.h.b16 %v489
        %v787 = vunpack.c.l.b16 %v490
        %v788 = vunpack.c.h.b16 %v490
        %v789 = vunpack.c.l.b16 %v491
        %v790 = vunpack.c.h.b16 %v491
        %v791 = vunpack.c.l.b16 %v492
        %v792 = vunpack.c.h.b16 %v492
        %v793 = vunpack.c.l.b16 %v493
        %v794 = vunpack.c.h.b16 %v493
        %v795 = vunpack.c.l.b16 %v494
        %v796 = vunpack.c.h.b16 %v494
        %v797 = vunpack.c.l.b16 %v495
        %v798 = vunpack.c.h.b16 %v495
        %v799 = vunpack.c.l.b16 %v496
        %v800 = vunpack.c.h.b16 %v496
        %v801 = vunpack.c.l.b16 %v497
        %v802 = vunpack.c.h.b16 %v497
        %v803 = vunpack.c.l.b16 %v498
        %v804 = vunpack.c.h.b16 %v498
        %v805 = vunpack.c.l.b16 %v499
        %v806 = vunpack.c.h.b16 %v499
        %v807 = vunpack.c.l.b16 %v500
        %v808 = vunpack.c.h.b16 %v500
        %v809 = vunpack.c.l.b16 %v501
        %v810 = vunpack.c.h.b16 %v501
        %v811 = vunpack.c.l.b16 %v502
        %v812 = vunpack.c.h.b16 %v502
        %v813 = vunpack.c.l.b16 %v503
        %v814 = vunpack.c.h.b16 %v503
        %v815 = vunpack.c.l.b16 %v504
        %v816 = vunpack.c.h.b16 %v504
        %v817 = vunpack.c.l.b16 %v505
        %v818 = vunpack.c.h.b16 %v505
        %v819 = vunpack.c.l.b16 %v506
        %v820 = vunpack.c.h.b16 %v506
        %v821 = vunpack.c.l.b16 %v507
        %v822 = vunpack.c.h.b16 %v507
        %v823 = vunpack.c.l.b16 %v508
        %v824 = vunpack.c.h.b16 %v508
        %v825 = vunpack.c.l.b16 %v509
        %v826 = vunpack.c.h.b16 %v509
        %v827 = vunpack.c.l.b16 %v510
        %v828 = vunpack.c.h.b16 %v510
        %v829 = vunpack.c.l.b16 %v511
        %v830 = vunpack.c.h.b16 %v511
        %v831 = vunpack.c.l.b16 %v512
        %v832 = vunpack.c.h.b16 %v512
        %v833 = vpack.c.b16 %v647, %v641
        %v834 = vpack.c.b16 %v648, %v642
        %v835 = vpack.c.b16 %v649, %v643
        %v836 = vpack.c.b16 %v650, %v644
        %v837 = vpack.c.b16 %v651, %v645
        %v838 = vpack.c.b16 %v652, %v646
        %v839 = vpack.c.b16 %v659, %v653
        %v840 = vpack.c.b16 %v660, %v654
        %v841 = vpack.c.b16 %v661, %v655
        %v842 = vpack.c.b16 %v662, %v656
        %v843 = vpack.c.b16 %v663, %v657
        %v844 = vpack.c.b16 %v664, %v658
        %v845 = vpack.c.b16 %v671, %v665
        %v846 = vpack.c.b16 %v672, %v666
        %v847 = vpack.c.b16 %v673, %v667
        %v848 = vpack.c.b16 %v674, %v668
        %v849 = vpack.c.b16 %v675, %v669
        %v850 = vpack.c.b16 %v676, %v670
        %v851 = vpack.c.b16 %v683, %v677
        %v852 = vpack.c.b16 %v684, %v678
        %v853 = vpack.c.b16 %v685, %v679
        %v854 = vpack.c.b16 %v686, %v680
        %v855 = vpack.c.b16 %v687, %v681
        %v856 = vpack.c.b16 %v688, %v682
        %v857 = vpack.c.b16 %v695, %v689
        %v858 = vpack.c.b16 %v696, %v690
        %v859 = vpack.c.b16 %v697, %v691
        %v860 = vpack.c.b16 %v698, %v692
        %v861 = vpack.c.b16 %v699, %v693
        %v862 = vpack.c.b16 %v700, %v694
        %v863 = vpack.c.b16 %v707, %v701
        %v864 = vpack.c.b16 %v708, %v702
        %v865 = vpack.c.b16 %v709, %v703
        %v866 = vpack.c.b16 %v710, %v704
        %v867 = vpack.c.b16 %v711, %v705
        %v868 = vpack.c.b16 %v712, %v706
        %v869 = vpack.c.b16 %v719, %v713
        %v870 = vpack.c.b16 %v720, %v714
        %v871 = vpack.c.b16 %v721, %v715
        %v872 = vpack.c.b16 %v722, %v716
        %v873 = vpack.c.b16 %v723, %v717
        %v874 = vpack.c.b16 %v724, %v718
        %v875 = vpack.c.b16 %v731, %v725
        %v876 = vpack.c.b16 %v732, %v726
        %v877 = vpack.c.b16 %v733, %v727
        %v878 = vpack.c.b16 %v734, %v728
        %v879 = vpack.c.b16 %v735, %v729
        %v880 = vpack.c.b16 %v736, %v730
        %v881 = vpack.c.b16 %v743, %v737
        %v882 = vpack.c.b16 %v744, %v738
        %v883 = vpack.c.b16 %v745, %v739
        %v884 = vpack.c.b16 %v746, %v740
        %v885 = vpack.c.b16 %v747, %v741
        %v886 = vpack.c.b16 %v748, %v742
        %v887 = vpack.c.b16 %v755, %v749
        %v888 = vpack.c.b16 %v756, %v750
        %v889 = vpack.c.b16 %v757, %v751
        %v890 = vpack.c.b16 %v758, %v752
        %v891 = vpack.c.b16 %v759, %v753
        %v892 = vpack.c.b16 %v760, %v754
        %v893 = vpack.c.b16 %v767, %v761
        %v894 = vpack.c.b16 %v768, %v762
        %v895 = vpack.c.b16 %v769, %v763
        %v896 = vpack.c.b16 %v770, %v764
        %v897 = vpack.c.b16 %v771, %v765
        %v898 = vpack.c.b16 %v772, %v766
        %v899 = vpack.c.b16 %v779, %v773
        %v900 = vpack.c.b16 %v780, %v774
        %v901 = vpack.c.b16 %v781, %v775
        %v902 = vpack.c.b16 %v782, %v776
        %v903 = vpack.c.b16 %v783, %v777
        %v904 = vpack.c.b16 %v784, %v778
        %v905 = vpack.c.b16 %v791, %v785
        %v906 = vpack.c.b16 %v792, %v786
        %v907 = vpack.c.b16 %v793, %v787
        %v908 = vpack.c.b16 %v794, %v788
        %v909 = vpack.c.b16 %v795, %v789
        %v910 = vpack.c.b16 %v796, %v790
        %v911 = vpack.c.b16 %v803, %v797
        %v912 = vpack.c.b16 %v804, %v798
        %v913 = vpack.c.b16 %v805, %v799
        %v914 = vpack.c.b16 %v806, %v800
        %v915 = vpack.c.b16 %v807, %v801
        %v916 = vpack.c.b16 %v808, %v802
        %v917 = vpack.c.b16 %v815, %v809
        %v918 = vpack.c.b16 %v816, %v810
        %v919 = vpack.c.b16 %v817, %v811
        %v920 = vpack.c.b16 %v818, %v812
        %v921 = vpack.c.b16 %v819, %v813
        %v922 = vpack.c.b16 %v820, %v814
        %v923 = vpack.c.b16 %v827, %v821
        %v924 = vpack.c.b16 %v828, %v822
        %v925 = vpack.c.b16 %v829, %v823
        %v926 = vpack.c.b16 %v830, %v824
        %v927 = vpack.c.b16 %v831, %v825
        %v928 = vpack.c.b16 %v832, %v826
        %1025 = vmatprep.subr.bf16.mxu0 %v834
        %1026 = vmatpush1.bf16.msra.mxu0 %v833
        %1027 = vmatprep.subr.bf16.mxu0 %v840
        %1028 = vmatpush1.bf16.msra.mxu0 %v839
        %1029 = vmatprep.subr.bf16.mxu0 %v846
        %1030 = vmatpush1.bf16.msra.mxu0 %v845
        %1031 = vmatprep.subr.bf16.mxu0 %v852
        %1032 = vmatpush1.bf16.msra.mxu0 %v851
        %1033 = vmatprep.subr.bf16.mxu0 %v858
        %1034 = vmatpush1.bf16.msra.mxu0 %v857
        %1035 = vmatprep.subr.bf16.mxu0 %v864
        %1036 = vmatpush1.bf16.msra.mxu0 %v863
        %1037 = vmatprep.subr.bf16.mxu0 %v870
        %1038 = vmatpush1.bf16.msra.mxu0 %v869
        %1039 = vmatprep.subr.bf16.mxu0 %v876
        %1040 = vmatpush1.bf16.msra.mxu0 %v875
        %1041 = vmatprep.subr.bf16.mxu0 %v882
        %1042 = vmatpush1.bf16.msra.mxu0 %v881
        %1043 = vmatprep.subr.bf16.mxu0 %v888
        %1044 = vmatpush1.bf16.msra.mxu0 %v887
        %1045 = vmatprep.subr.bf16.mxu0 %v894
        %1046 = vmatpush1.bf16.msra.mxu0 %v893
        %1047 = vmatprep.subr.bf16.mxu0 %v900
        %1048 = vmatpush1.bf16.msra.mxu0 %v899
        %1049 = vmatprep.subr.bf16.mxu0 %v906
        %1050 = vmatpush1.bf16.msra.mxu0 %v905
        %1051 = vmatprep.subr.bf16.mxu0 %v912
        %1052 = vmatpush1.bf16.msra.mxu0 %v911
        %1053 = vmatprep.subr.bf16.mxu0 %v918
        %1054 = vmatpush1.bf16.msra.mxu0 %v917
        %1055 = vmatprep.subr.bf16.mxu0 %v924
        %1056 = vmatpush1.bf16.msra.mxu0 %v923
        %1057 = vmatprep.mubr.bf16.mxu0 %v416
        %1058 = vmatmul.mubr.bf16.gmra.mrb[0].mxu0 %v415
        %v1059 = vpop.f32.mrb[0].mxu0
        %v1060 = vadd.f32 %v518, %v1059
        %v1061 = vpop.f32.mrb[0].mxu0
        %v1062 = vadd.f32 %v522, %v1061
        %v1063 = vpop.f32.mrb[0].mxu0
        %v1064 = vadd.f32 %v518, %v1063
        %v1065 = vpop.f32.mrb[0].mxu0
        %v1066 = vadd.f32 %v522, %v1065
        %1067 = vdwg.mxu0
        %1068 = vmatprep.subr.bf16.mxu0 %v836
        %1069 = vmatpush1.bf16.msra.mxu0 %v835
        %1070 = vmatprep.subr.bf16.mxu0 %v842
        %1071 = vmatpush1.bf16.msra.mxu0 %v841
        %1072 = vmatprep.subr.bf16.mxu0 %v848
        %1073 = vmatpush1.bf16.msra.mxu0 %v847
        %1074 = vmatprep.subr.bf16.mxu0 %v854
        %1075 = vmatpush1.bf16.msra.mxu0 %v853
        %1076 = vmatprep.subr.bf16.mxu0 %v860
        %1077 = vmatpush1.bf16.msra.mxu0 %v859
        %1078 = vmatprep.subr.bf16.mxu0 %v866
        %1079 = vmatpush1.bf16.msra.mxu0 %v865
        %1080 = vmatprep.subr.bf16.mxu0 %v872
        %1081 = vmatpush1.bf16.msra.mxu0 %v871
        %1082 = vmatprep.subr.bf16.mxu0 %v878
        %1083 = vmatpush1.bf16.msra.mxu0 %v877
        %1084 = vmatprep.subr.bf16.mxu0 %v884
        %1085 = vmatpush1.bf16.msra.mxu0 %v883
        %1086 = vmatprep.subr.bf16.mxu0 %v890
        %1087 = vmatpush1.bf16.msra.mxu0 %v889
        %1088 = vmatprep.subr.bf16.mxu0 %v896
        %1089 = vmatpush1.bf16.msra.mxu0 %v895
        %1090 = vmatprep.subr.bf16.mxu0 %v902
        %1091 = vmatpush1.bf16.msra.mxu0 %v901
        %1092 = vmatprep.subr.bf16.mxu0 %v908
        %1093 = vmatpush1.bf16.msra.mxu0 %v907
        %1094 = vmatprep.subr.bf16.mxu0 %v914
        %1095 = vmatpush1.bf16.msra.mxu0 %v913
        %1096 = vmatprep.subr.bf16.mxu0 %v920
        %1097 = vmatpush1.bf16.msra.mxu0 %v919
        %1098 = vmatprep.subr.bf16.mxu0 %v926
        %1099 = vmatpush1.bf16.msra.mxu0 %v925
        %1100 = vmatprep.mubr.bf16.mxu0 %v416
        %1101 = vmatmul.mubr.bf16.gmra.mrb[0].mxu0 %v415
        %v1102 = vpop.f32.mrb[0].mxu0
        %v1103 = vadd.f32 %v526, %v1102
        %v1104 = vpop.f32.mrb[0].mxu0
        %v1105 = vadd.f32 %v530, %v1104
        %v1106 = vpop.f32.mrb[0].mxu0
        %v1107 = vadd.f32 %v526, %v1106
        %v1108 = vpop.f32.mrb[0].mxu0
        %v1109 = vadd.f32 %v530, %v1108
        %1110 = vdwg.mxu0
        %1111 = vmatprep.subr.bf16.mxu0 %v838
        %1112 = vmatpush1.bf16.msra.mxu0 %v837
        %1113 = vmatprep.subr.bf16.mxu0 %v844
        %1114 = vmatpush1.bf16.msra.mxu0 %v843
        %1115 = vmatprep.subr.bf16.mxu0 %v850
        %1116 = vmatpush1.bf16.msra.mxu0 %v849
        %1117 = vmatprep.subr.bf16.mxu0 %v856
        %1118 = vmatpush1.bf16.msra.mxu0 %v855
        %1119 = vmatprep.subr.bf16.mxu0 %v862
        %1120 = vmatpush1.bf16.msra.mxu0 %v861
        %1121 = vmatprep.subr.bf16.mxu0 %v868
        %1122 = vmatpush1.bf16.msra.mxu0 %v867
        %1123 = vmatprep.subr.bf16.mxu0 %v874
        %1124 = vmatpush1.bf16.msra.mxu0 %v873
        %1125 = vmatprep.subr.bf16.mxu0 %v880
        %1126 = vmatpush1.bf16.msra.mxu0 %v879
        %1127 = vmatprep.subr.bf16.mxu0 %v886
        %1128 = vmatpush1.bf16.msra.mxu0 %v885
        %1129 = vmatprep.subr.bf16.mxu0 %v892
        %1130 = vmatpush1.bf16.msra.mxu0 %v891
        %1131 = vmatprep.subr.bf16.mxu0 %v898
        %1132 = vmatpush1.bf16.msra.mxu0 %v897
        %1133 = vmatprep.subr.bf16.mxu0 %v904
        %1134 = vmatpush1.bf16.msra.mxu0 %v903
        %1135 = vmatprep.subr.bf16.mxu0 %v910
        %1136 = vmatpush1.bf16.msra.mxu0 %v909
        %1137 = vmatprep.subr.bf16.mxu0 %v916
        %1138 = vmatpush1.bf16.msra.mxu0 %v915
        %1139 = vmatprep.subr.bf16.mxu0 %v922
        %1140 = vmatpush1.bf16.msra.mxu0 %v921
        %1141 = vmatprep.subr.bf16.mxu0 %v928
        %1142 = vmatpush1.bf16.msra.mxu0 %v927
        %1143 = vmatprep.mubr.bf16.mxu0 %v416
        %1144 = vmatmul.mubr.bf16.gmra.mrb[0].mxu0 %v415
        %v1145 = vpop.f32.mrb[0].mxu0
        %v1146 = vadd.f32 %v534, %v1145
        %v1147 = vpop.f32.mrb[0].mxu0
        %v1148 = vadd.f32 %v538, %v1147
        %v1149 = vpop.f32.mrb[0].mxu0
        %v1150 = vadd.f32 %v534, %v1149
        %v1151 = vpop.f32.mrb[0].mxu0
        %v1152 = vadd.f32 %v538, %v1151
        %1153 = vdwg.mxu0
        %v1154 = vpack.c.bf16 %v1060, %v1060
        %v1155 = vpack.c.bf16 %v1064, %v1064
        %v1156 = vpack.c.bf16 %v1103, %v1103
        %v1157 = vpack.c.bf16 %v1107, %v1107
        %v1158 = vpack.c.bf16 %v1146, %v1146
        %v1159 = vpack.c.bf16 %v1150, %v1150
        %1160 = vmatprep.subr.bf16.mxu0 0
        %1161 = vmatpush1.bf16.xpose.msra.mxu0 %v1156
        %1162 = vmatprep.subr.bf16.mxu0 0
        %1163 = vmatpush1.bf16.xpose.msra.mxu0 0
        %1164 = vmatprep.subr.bf16.mxu0 0
        %1165 = vmatpush1.bf16.xpose.msra.mxu0 0
        %1166 = vmatprep.subr.bf16.mxu0 0
        %1167 = vmatpush1.bf16.xpose.msra.mxu0 0
        %1168 = vmatprep.subr.bf16.mxu0 0
        %1169 = vmatpush1.bf16.xpose.msra.mxu0 0
        %1170 = vmatprep.subr.bf16.mxu0 0
        %1171 = vmatpush1.bf16.xpose.msra.mxu0 0
        %1172 = vmatprep.subr.bf16.mxu0 0
        %1173 = vmatpush1.bf16.xpose.msra.mxu0 0
        %1174 = vmatprep.subr.bf16.mxu0 0
        %1175 = vmatpush1.bf16.xpose.msra.mxu0 0
        %1176 = vmatprep.subr.bf16.mxu0 0
        %1177 = vmatpush1.bf16.xpose.msra.mxu0 0
        %1178 = vmatprep.subr.bf16.mxu0 0
        %1179 = vmatpush1.bf16.xpose.msra.mxu0 0
        %1180 = vmatprep.subr.bf16.mxu0 0
        %1181 = vmatpush1.bf16.xpose.msra.mxu0 0
        %1182 = vmatprep.subr.bf16.mxu0 0
        %1183 = vmatpush1.bf16.xpose.msra.mxu0 0
        %1184 = vmatprep.subr.bf16.mxu0 0
        %1185 = vmatpush1.bf16.xpose.msra.mxu0 0
        %1186 = vmatprep.subr.bf16.mxu0 0
        %1187 = vmatpush1.bf16.xpose.msra.mxu0 0
        %1188 = vmatprep.subr.bf16.mxu0 0
        %1189 = vmatpush1.bf16.xpose.msra.mxu0 0
        %1190 = vmatprep.subr.bf16.mxu0 0
        %1191 = vmatpush1.bf16.xpose.msra.mxu0 0
        %1192 = vmatprep.mubr.bf16.mxu0 0
        %1193 = vmatmul.mubr.bf16.gmra.mrb[0].mxu0 %v1154
        %v1194 = vpop.f32.mrb[0].mxu0
        %v1195 = vadd.f32 0.0, %v1194
        %v1196 = vpop.f32.mrb[0].mxu0
        %v1197 = vpop.f32.mrb[0].mxu0
        %v1198 = vpop.f32.mrb[0].mxu0
        %1199 = vdwg.mxu0
        %1200 = vmatprep.subr.bf16.mxu0 0
        %1201 = vmatpush1.bf16.xpose.msra.mxu0 %v1157
        %1202 = vmatprep.subr.bf16.mxu0 0
        %1203 = vmatpush1.bf16.xpose.msra.mxu0 0
        %1204 = vmatprep.subr.bf16.mxu0 0
        %1205 = vmatpush1.bf16.xpose.msra.mxu0 0
        %1206 = vmatprep.subr.bf16.mxu0 0
        %1207 = vmatpush1.bf16.xpose.msra.mxu0 0
        %1208 = vmatprep.subr.bf16.mxu0 0
        %1209 = vmatpush1.bf16.xpose.msra.mxu0 0
        %1210 = vmatprep.subr.bf16.mxu0 0
        %1211 = vmatpush1.bf16.xpose.msra.mxu0 0
        %1212 = vmatprep.subr.bf16.mxu0 0
        %1213 = vmatpush1.bf16.xpose.msra.mxu0 0
        %1214 = vmatprep.subr.bf16.mxu0 0
        %1215 = vmatpush1.bf16.xpose.msra.mxu0 0
        %1216 = vmatprep.subr.bf16.mxu0 0
        %1217 = vmatpush1.bf16.xpose.msra.mxu0 0
        %1218 = vmatprep.subr.bf16.mxu0 0
        %1219 = vmatpush1.bf16.xpose.msra.mxu0 0
        %1220 = vmatprep.subr.bf16.mxu0 0
        %1221 = vmatpush1.bf16.xpose.msra.mxu0 0
        %1222 = vmatprep.subr.bf16.mxu0 0
        %1223 = vmatpush1.bf16.xpose.msra.mxu0 0
        %1224 = vmatprep.subr.bf16.mxu0 0
        %1225 = vmatpush1.bf16.xpose.msra.mxu0 0
        %1226 = vmatprep.subr.bf16.mxu0 0
        %1227 = vmatpush1.bf16.xpose.msra.mxu0 0
        %1228 = vmatprep.subr.bf16.mxu0 0
        %1229 = vmatpush1.bf16.xpose.msra.mxu0 0
        %1230 = vmatprep.subr.bf16.mxu0 0
        %1231 = vmatpush1.bf16.xpose.msra.mxu0 0
        %1232 = vmatprep.mubr.bf16.mxu0 0
        %1233 = vmatmul.mubr.bf16.gmra.mrb[0].mxu0 %v1155
        %v1234 = vpop.f32.mrb[0].mxu0
        %v1235 = vadd.f32 0.0, %v1234
        %v1236 = vpop.f32.mrb[0].mxu0
        %v1237 = vpop.f32.mrb[0].mxu0
        %v1238 = vpop.f32.mrb[0].mxu0
        %1239 = vdwg.mxu0
        %v1240 = vmul.f32 %v1195, 0.088388346
        %v1241 = vmul.f32 %v1235, 0.088388346
        %vm1242 = vcmask 64512
        %v1243 = vsel %vm1242, %v1240, -inf
        %1244 = vmax.xlane.f32.xlu0 %v1243
        %v1245 = vpop.xlane.xlu0 %1244
        %v1246 = vsel %vm1242, %v1241, -inf
        %1247 = vmax.xlane.f32.xlu0 %v1246
        %v1248 = vpop.xlane.xlu0 %1247
        %v1249 = vsub.f32 %v1240, %v1245
        %v1250 = vsub.f32 %v1241, %v1248
        %v1251 = vmul.f32 %v1249, 1.442695
        %v1252 = vpow.pop %v1251
        %v1253 = vmul.f32 %v1250, 1.442695
        %v1254 = vpow.pop %v1253
        %v1255 = vsel %vm1242, %v1252, 0.0
        %1256 = vadd.xlane.f32.xlu0 %v1255
        %v1257 = vpop.xlane.xlu0 %1256
        %v1258 = vsel %vm1242, %v1254, 0.0
        %1259 = vadd.xlane.f32.xlu0 %v1258
        %v1260 = vpop.xlane.xlu0 %1259
        %v1261 = vrcp.pop %v1257
        %v1262 = vrcp.pop %v1260
        %v1263 = vmul.f32 %v1252, %v1261
        %v1264 = vmul.f32 %v1254, %v1262
        %v1265 = vpack.c.bf16 %v1263, %v1263
        %v1266 = vpack.c.bf16 %v1264, %v1264
        %v1268 = vsel %vm1242, %v1265, 0
        %vm1270 = vcmask 1043456
        %v1272 = vsel %vm1270, %v1158, 0
        %1274 = vmatprep.subr.bf16.mxu0 0
        %1275 = vmatpush1.bf16.msra.mxu0 %v1272
        %1276 = vmatprep.subr.bf16.mxu0 0
        %1277 = vmatpush1.bf16.msra.mxu0 0
        %1278 = vmatprep.subr.bf16.mxu0 0
        %1279 = vmatpush1.bf16.msra.mxu0 0
        %1280 = vmatprep.subr.bf16.mxu0 0
        %1281 = vmatpush1.bf16.msra.mxu0 0
        %1282 = vmatprep.subr.bf16.mxu0 0
        %1283 = vmatpush1.bf16.msra.mxu0 0
        %1284 = vmatprep.subr.bf16.mxu0 0
        %1285 = vmatpush1.bf16.msra.mxu0 0
        %1286 = vmatprep.subr.bf16.mxu0 0
        %1287 = vmatpush1.bf16.msra.mxu0 0
        %1288 = vmatprep.subr.bf16.mxu0 0
        %1289 = vmatpush1.bf16.msra.mxu0 0
        %1290 = vmatprep.subr.bf16.mxu0 0
        %1291 = vmatpush1.bf16.msra.mxu0 0
        %1292 = vmatprep.subr.bf16.mxu0 0
        %1293 = vmatpush1.bf16.msra.mxu0 0
        %1294 = vmatprep.subr.bf16.mxu0 0
        %1295 = vmatpush1.bf16.msra.mxu0 0
        %1296 = vmatprep.subr.bf16.mxu0 0
        %1297 = vmatpush1.bf16.msra.mxu0 0
        %1298 = vmatprep.subr.bf16.mxu0 0
        %1299 = vmatpush1.bf16.msra.mxu0 0
        %1300 = vmatprep.subr.bf16.mxu0 0
        %1301 = vmatpush1.bf16.msra.mxu0 0
        %1302 = vmatprep.subr.bf16.mxu0 0
        %1303 = vmatpush1.bf16.msra.mxu0 0
        %1304 = vmatprep.subr.bf16.mxu0 0
        %1305 = vmatpush1.bf16.msra.mxu0 0
        %1306 = vmatprep.mubr.bf16.mxu0 0
        %1307 = vmatmul.mubr.bf16.gmra.mrb[0].mxu0 %v1268
        %v1308 = vpop.f32.mrb[0].mxu0
        %v1309 = vadd.f32 0.0, %v1308
        %v1310 = vpop.f32.mrb[0].mxu0
        %v1311 = vpop.f32.mrb[0].mxu0
        %v1312 = vpop.f32.mrb[0].mxu0
        %1313 = vdwg.mxu0
        %v1315 = vsel %vm1242, %v1266, 0
        %v1318 = vsel %vm1270, %v1159, 0
        %1320 = vmatprep.subr.bf16.mxu0 0
        %1321 = vmatpush1.bf16.msra.mxu0 %v1318
        %1322 = vmatprep.subr.bf16.mxu0 0
        %1323 = vmatpush1.bf16.msra.mxu0 0
        %1324 = vmatprep.subr.bf16.mxu0 0
        %1325 = vmatpush1.bf16.msra.mxu0 0
        %1326 = vmatprep.subr.bf16.mxu0 0
        %1327 = vmatpush1.bf16.msra.mxu0 0
        %1328 = vmatprep.subr.bf16.mxu0 0
        %1329 = vmatpush1.bf16.msra.mxu0 0
        %1330 = vmatprep.subr.bf16.mxu0 0
        %1331 = vmatpush1.bf16.msra.mxu0 0
        %1332 = vmatprep.subr.bf16.mxu0 0
        %1333 = vmatpush1.bf16.msra.mxu0 0
        %1334 = vmatprep.subr.bf16.mxu0 0
        %1335 = vmatpush1.bf16.msra.mxu0 0
        %1336 = vmatprep.subr.bf16.mxu0 0
        %1337 = vmatpush1.bf16.msra.mxu0 0
        %1338 = vmatprep.subr.bf16.mxu0 0
        %1339 = vmatpush1.bf16.msra.mxu0 0
        %1340 = vmatprep.subr.bf16.mxu0 0
        %1341 = vmatpush1.bf16.msra.mxu0 0
        %1342 = vmatprep.subr.bf16.mxu0 0
        %1343 = vmatpush1.bf16.msra.mxu0 0
        %1344 = vmatprep.subr.bf16.mxu0 0
        %1345 = vmatpush1.bf16.msra.mxu0 0
        %1346 = vmatprep.subr.bf16.mxu0 0
        %1347 = vmatpush1.bf16.msra.mxu0 0
        %1348 = vmatprep.subr.bf16.mxu0 0
        %1349 = vmatpush1.bf16.msra.mxu0 0
        %1350 = vmatprep.subr.bf16.mxu0 0
        %1351 = vmatpush1.bf16.msra.mxu0 0
        %1352 = vmatprep.mubr.bf16.mxu0 0
        %1353 = vmatmul.mubr.bf16.gmra.mrb[0].mxu0 %v1315
        %v1354 = vpop.f32.mrb[0].mxu0
        %v1355 = vadd.f32 0.0, %v1354
        %v1356 = vpop.f32.mrb[0].mxu0
        %v1357 = vpop.f32.mrb[0].mxu0
        %v1358 = vpop.f32.mrb[0].mxu0
        %1359 = vdwg.mxu0
        %1360 = vst [vmem:[#allocation2] sm:$0x1] %v1309
        %1361 = vst [vmem:[#allocation2 + $0x10] sm:$0x1] %v1355
        %1362 = vst [vmem:[#allocation2 + $0x1] sm:$0x2] %v1309
        %1363 = vst [vmem:[#allocation2 + $0x11] sm:$0x2] %v1355
        %1364 = vst [vmem:[#allocation2 + $0x2] sm:$0x4] %v1309
        %1365 = vst [vmem:[#allocation2 + $0x12] sm:$0x4] %v1355
        %1366 = vst [vmem:[#allocation2 + $0x3] sm:$0x8] %v1309
        %1367 = vst [vmem:[#allocation2 + $0x13] sm:$0x8] %v1355
        %1368 = vst [vmem:[#allocation2 + $0x4] sm:$0x10] %v1309
        %1369 = vst [vmem:[#allocation2 + $0x14] sm:$0x10] %v1355
        %1370 = vst [vmem:[#allocation2 + $0x5] sm:$0x20] %v1309
        %1371 = vst [vmem:[#allocation2 + $0x15] sm:$0x20] %v1355
        %1372 = vst [vmem:[#allocation2 + $0x6] sm:$0x40] %v1309
        %1373 = vst [vmem:[#allocation2 + $0x16] sm:$0x40] %v1355
        %1374 = vst [vmem:[#allocation2 + $0x7] sm:$0x80] %v1309
        %1375 = vst [vmem:[#allocation2 + $0x17] sm:$0x80] %v1355
        %v1376 = vpack.c.bf16 %v1062, %v1062
        %v1377 = vpack.c.bf16 %v1066, %v1066
        %v1378 = vpack.c.bf16 %v1105, %v1105
        %v1379 = vpack.c.bf16 %v1109, %v1109
        %v1380 = vpack.c.bf16 %v1148, %v1148
        %v1381 = vpack.c.bf16 %v1152, %v1152
        %1382 = vmatprep.subr.bf16.mxu0 0
        %1383 = vmatpush1.bf16.xpose.msra.mxu0 %v1378
        %1384 = vmatprep.subr.bf16.mxu0 0
        %1385 = vmatpush1.bf16.xpose.msra.mxu0 0
        %1386 = vmatprep.subr.bf16.mxu0 0
        %1387 = vmatpush1.bf16.xpose.msra.mxu0 0
        %1388 = vmatprep.subr.bf16.mxu0 0
        %1389 = vmatpush1.bf16.xpose.msra.mxu0 0
        %1390 = vmatprep.subr.bf16.mxu0 0
        %1391 = vmatpush1.bf16.xpose.msra.mxu0 0
        %1392 = vmatprep.subr.bf16.mxu0 0
        %1393 = vmatpush1.bf16.xpose.msra.mxu0 0
        %1394 = vmatprep.subr.bf16.mxu0 0
        %1395 = vmatpush1.bf16.xpose.msra.mxu0 0
        %1396 = vmatprep.subr.bf16.mxu0 0
        %1397 = vmatpush1.bf16.xpose.msra.mxu0 0
        %1398 = vmatprep.subr.bf16.mxu0 0
        %1399 = vmatpush1.bf16.xpose.msra.mxu0 0
        %1400 = vmatprep.subr.bf16.mxu0 0
        %1401 = vmatpush1.bf16.xpose.msra.mxu0 0
        %1402 = vmatprep.subr.bf16.mxu0 0
        %1403 = vmatpush1.bf16.xpose.msra.mxu0 0
        %1404 = vmatprep.subr.bf16.mxu0 0
        %1405 = vmatpush1.bf16.xpose.msra.mxu0 0
        %1406 = vmatprep.subr.bf16.mxu0 0
        %1407 = vmatpush1.bf16.xpose.msra.mxu0 0
        %1408 = vmatprep.subr.bf16.mxu0 0
        %1409 = vmatpush1.bf16.xpose.msra.mxu0 0
        %1410 = vmatprep.subr.bf16.mxu0 0
        %1411 = vmatpush1.bf16.xpose.msra.mxu0 0
        %1412 = vmatprep.subr.bf16.mxu0 0
        %1413 = vmatpush1.bf16.xpose.msra.mxu0 0
        %1414 = vmatprep.mubr.bf16.mxu0 0
        %1415 = vmatmul.mubr.bf16.gmra.mrb[0].mxu0 %v1376
        %v1416 = vpop.f32.mrb[0].mxu0
        %v1417 = vadd.f32 0.0, %v1416
        %v1418 = vpop.f32.mrb[0].mxu0
        %v1419 = vpop.f32.mrb[0].mxu0
        %v1420 = vpop.f32.mrb[0].mxu0
        %1421 = vdwg.mxu0
        %1422 = vmatprep.subr.bf16.mxu0 0
        %1423 = vmatpush1.bf16.xpose.msra.mxu0 %v1379
        %1424 = vmatprep.subr.bf16.mxu0 0
        %1425 = vmatpush1.bf16.xpose.msra.mxu0 0
        %1426 = vmatprep.subr.bf16.mxu0 0
        %1427 = vmatpush1.bf16.xpose.msra.mxu0 0
        %1428 = vmatprep.subr.bf16.mxu0 0
        %1429 = vmatpush1.bf16.xpose.msra.mxu0 0
        %1430 = vmatprep.subr.bf16.mxu0 0
        %1431 = vmatpush1.bf16.xpose.msra.mxu0 0
        %1432 = vmatprep.subr.bf16.mxu0 0
        %1433 = vmatpush1.bf16.xpose.msra.mxu0 0
        %1434 = vmatprep.subr.bf16.mxu0 0
        %1435 = vmatpush1.bf16.xpose.msra.mxu0 0
        %1436 = vmatprep.subr.bf16.mxu0 0
        %1437 = vmatpush1.bf16.xpose.msra.mxu0 0
        %1438 = vmatprep.subr.bf16.mxu0 0
        %1439 = vmatpush1.bf16.xpose.msra.mxu0 0
        %1440 = vmatprep.subr.bf16.mxu0 0
        %1441 = vmatpush1.bf16.xpose.msra.mxu0 0
        %1442 = vmatprep.subr.bf16.mxu0 0
        %1443 = vmatpush1.bf16.xpose.msra.mxu0 0
        %1444 = vmatprep.subr.bf16.mxu0 0
        %1445 = vmatpush1.bf16.xpose.msra.mxu0 0
        %1446 = vmatprep.subr.bf16.mxu0 0
        %1447 = vmatpush1.bf16.xpose.msra.mxu0 0
        %1448 = vmatprep.subr.bf16.mxu0 0
        %1449 = vmatpush1.bf16.xpose.msra.mxu0 0
        %1450 = vmatprep.subr.bf16.mxu0 0
        %1451 = vmatpush1.bf16.xpose.msra.mxu0 0
        %1452 = vmatprep.subr.bf16.mxu0 0
        %1453 = vmatpush1.bf16.xpose.msra.mxu0 0
        %1454 = vmatprep.mubr.bf16.mxu0 0
        %1455 = vmatmul.mubr.bf16.gmra.mrb[0].mxu0 %v1377
        %v1456 = vpop.f32.mrb[0].mxu0
        %v1457 = vadd.f32 0.0, %v1456
        %v1458 = vpop.f32.mrb[0].mxu0
        %v1459 = vpop.f32.mrb[0].mxu0
        %v1460 = vpop.f32.mrb[0].mxu0
        %1461 = vdwg.mxu0
        %v1462 = vmul.f32 %v1417, 0.088388346
        %v1463 = vmul.f32 %v1457, 0.088388346
        %v1464 = vsel %vm1242, %v1462, -inf
        %1465 = vmax.xlane.f32.xlu0 %v1464
        %v1466 = vpop.xlane.xlu0 %1465
        %v1467 = vsel %vm1242, %v1463, -inf
        %1468 = vmax.xlane.f32.xlu0 %v1467
        %v1469 = vpop.xlane.xlu0 %1468
        %v1470 = vsub.f32 %v1462, %v1466
        %v1471 = vsub.f32 %v1463, %v1469
        %v1472 = vmul.f32 %v1470, 1.442695
        %v1473 = vpow.pop %v1472
        %v1474 = vmul.f32 %v1471, 1.442695
        %v1475 = vpow.pop %v1474
        %v1476 = vsel %vm1242, %v1473, 0.0
        %1477 = vadd.xlane.f32.xlu0 %v1476
        %v1478 = vpop.xlane.xlu0 %1477
        %v1479 = vsel %vm1242, %v1475, 0.0
        %1480 = vadd.xlane.f32.xlu0 %v1479
        %v1481 = vpop.xlane.xlu0 %1480
        %v1482 = vrcp.pop %v1478
        %v1483 = vrcp.pop %v1481
        %v1484 = vmul.f32 %v1473, %v1482
        %v1485 = vmul.f32 %v1475, %v1483
        %v1486 = vpack.c.bf16 %v1484, %v1484
        %v1487 = vpack.c.bf16 %v1485, %v1485
        %v1489 = vsel %vm1242, %v1486, 0
        %v1492 = vsel %vm1270, %v1380, 0
        %1494 = vmatprep.subr.bf16.mxu0 0
        %1495 = vmatpush1.bf16.msra.mxu0 %v1492
        %1496 = vmatprep.subr.bf16.mxu0 0
        %1497 = vmatpush1.bf16.msra.mxu0 0
        %1498 = vmatprep.subr.bf16.mxu0 0
        %1499 = vmatpush1.bf16.msra.mxu0 0
        %1500 = vmatprep.subr.bf16.mxu0 0
        %1501 = vmatpush1.bf16.msra.mxu0 0
        %1502 = vmatprep.subr.bf16.mxu0 0
        %1503 = vmatpush1.bf16.msra.mxu0 0
        %1504 = vmatprep.subr.bf16.mxu0 0
        %1505 = vmatpush1.bf16.msra.mxu0 0
        %1506 = vmatprep.subr.bf16.mxu0 0
        %1507 = vmatpush1.bf16.msra.mxu0 0
        %1508 = vmatprep.subr.bf16.mxu0 0
        %1509 = vmatpush1.bf16.msra.mxu0 0
        %1510 = vmatprep.subr.bf16.mxu0 0
        %1511 = vmatpush1.bf16.msra.mxu0 0
        %1512 = vmatprep.subr.bf16.mxu0 0
        %1513 = vmatpush1.bf16.msra.mxu0 0
        %1514 = vmatprep.subr.bf16.mxu0 0
        %1515 = vmatpush1.bf16.msra.mxu0 0
        %1516 = vmatprep.subr.bf16.mxu0 0
        %1517 = vmatpush1.bf16.msra.mxu0 0
        %1518 = vmatprep.subr.bf16.mxu0 0
        %1519 = vmatpush1.bf16.msra.mxu0 0
        %1520 = vmatprep.subr.bf16.mxu0 0
        %1521 = vmatpush1.bf16.msra.mxu0 0
        %1522 = vmatprep.subr.bf16.mxu0 0
        %1523 = vmatpush1.bf16.msra.mxu0 0
        %1524 = vmatprep.subr.bf16.mxu0 0
        %1525 = vmatpush1.bf16.msra.mxu0 0
        %1526 = vmatprep.mubr.bf16.mxu0 0
        %1527 = vmatmul.mubr.bf16.gmra.mrb[0].mxu0 %v1489
        %v1528 = vpop.f32.mrb[0].mxu0
        %v1529 = vadd.f32 0.0, %v1528
        %v1530 = vpop.f32.mrb[0].mxu0
        %v1531 = vpop.f32.mrb[0].mxu0
        %v1532 = vpop.f32.mrb[0].mxu0
        %1533 = vdwg.mxu0
        %v1535 = vsel %vm1242, %v1487, 0
        %v1538 = vsel %vm1270, %v1381, 0
        %1540 = vmatprep.subr.bf16.mxu0 0
        %1541 = vmatpush1.bf16.msra.mxu0 %v1538
        %1542 = vmatprep.subr.bf16.mxu0 0
        %1543 = vmatpush1.bf16.msra.mxu0 0
        %1544 = vmatprep.subr.bf16.mxu0 0
        %1545 = vmatpush1.bf16.msra.mxu0 0
        %1546 = vmatprep.subr.bf16.mxu0 0
        %1547 = vmatpush1.bf16.msra.mxu0 0
        %1548 = vmatprep.subr.bf16.mxu0 0
        %1549 = vmatpush1.bf16.msra.mxu0 0
        %1550 = vmatprep.subr.bf16.mxu0 0
        %1551 = vmatpush1.bf16.msra.mxu0 0
        %1552 = vmatprep.subr.bf16.mxu0 0
        %1553 = vmatpush1.bf16.msra.mxu0 0
        %1554 = vmatprep.subr.bf16.mxu0 0
        %1555 = vmatpush1.bf16.msra.mxu0 0
        %1556 = vmatprep.subr.bf16.mxu0 0
        %1557 = vmatpush1.bf16.msra.mxu0 0
        %1558 = vmatprep.subr.bf16.mxu0 0
        %1559 = vmatpush1.bf16.msra.mxu0 0
        %1560 = vmatprep.subr.bf16.mxu0 0
        %1561 = vmatpush1.bf16.msra.mxu0 0
        %1562 = vmatprep.subr.bf16.mxu0 0
        %1563 = vmatpush1.bf16.msra.mxu0 0
        %1564 = vmatprep.subr.bf16.mxu0 0
        %1565 = vmatpush1.bf16.msra.mxu0 0
        %1566 = vmatprep.subr.bf16.mxu0 0
        %1567 = vmatpush1.bf16.msra.mxu0 0
        %1568 = vmatprep.subr.bf16.mxu0 0
        %1569 = vmatpush1.bf16.msra.mxu0 0
        %1570 = vmatprep.subr.bf16.mxu0 0
        %1571 = vmatpush1.bf16.msra.mxu0 0
        %1572 = vmatprep.mubr.bf16.mxu0 0
        %1573 = vmatmul.mubr.bf16.gmra.mrb[0].mxu0 %v1535
        %v1574 = vpop.f32.mrb[0].mxu0
        %v1575 = vadd.f32 0.0, %v1574
        %v1576 = vpop.f32.mrb[0].mxu0
        %v1577 = vpop.f32.mrb[0].mxu0
        %v1578 = vpop.f32.mrb[0].mxu0
        %1579 = vdwg.mxu0
        %1580 = vst [vmem:[#allocation2 + $0x1] sm:$0x1] %v1529
        %1581 = vst [vmem:[#allocation2 + $0x11] sm:$0x1] %v1575
        %1582 = vst [vmem:[#allocation2 + $0x2] sm:$0x2] %v1529
        %1583 = vst [vmem:[#allocation2 + $0x12] sm:$0x2] %v1575
        %1584 = vst [vmem:[#allocation2 + $0x3] sm:$0x4] %v1529
        %1585 = vst [vmem:[#allocation2 + $0x13] sm:$0x4] %v1575
        %1586 = vst [vmem:[#allocation2 + $0x4] sm:$0x8] %v1529
        %1587 = vst [vmem:[#allocation2 + $0x14] sm:$0x8] %v1575
        %1588 = vst [vmem:[#allocation2 + $0x5] sm:$0x10] %v1529
        %1589 = vst [vmem:[#allocation2 + $0x15] sm:$0x10] %v1575
        %1590 = vst [vmem:[#allocation2 + $0x6] sm:$0x20] %v1529
        %1591 = vst [vmem:[#allocation2 + $0x16] sm:$0x20] %v1575
        %1592 = vst [vmem:[#allocation2 + $0x7] sm:$0x40] %v1529
        %1593 = vst [vmem:[#allocation2 + $0x17] sm:$0x40] %v1575
        %1594 = vst [vmem:[#allocation2 + $0x8] sm:$0x80] %v1529
        %1595 = vst [vmem:[#allocation2 + $0x18] sm:$0x80] %v1575
        %v1596 = vld [vmem:[#allocation14] ss:$8 sm:$0x3]
        %s1597 = scalar_lea.vmem [#allocation14], 1
        %v1598 = vld [vmem:[%s1597] ss:$8 sm:$0x3]
        %s1599 = scalar_lea.vmem [#allocation14], 2
        %v1600 = vld [vmem:[%s1599] ss:$8 sm:$0x3]
        %s1601 = scalar_lea.vmem [#allocation14], 3
        %v1602 = vld [vmem:[%s1601] ss:$8 sm:$0x3]
        %s1603 = scalar_lea.vmem [#allocation14], 4
        %v1604 = vld [vmem:[%s1603] ss:$8 sm:$0x3]
        %s1605 = scalar_lea.vmem [#allocation14], 5
        %v1606 = vld [vmem:[%s1605] ss:$8 sm:$0x3]
        %v1607 = vld [vmem:[#allocation2] sm:$0xff]
        %v1608 = vld [vmem:[#allocation2 + $0x10] sm:$0xff]
        %v1609 = vpack.c.bf16 %v1608, %v1607
        %v1610 = vld [vmem:[#allocation8] sm:$0xff]
        %v1611 = vld [vmem:[#allocation8 + $0x8] sm:$0xff]
        %v1612 = vld [vmem:[#allocation8 + $0x10] sm:$0xff]
        %v1613 = vld [vmem:[#allocation8 + $0x18] sm:$0xff]
        %v1614 = vld [vmem:[#allocation8 + $0x20] sm:$0xff]
        %v1615 = vld [vmem:[#allocation8 + $0x28] sm:$0xff]
        %v1616 = vld [vmem:[#allocation8 + $0x30] sm:$0xff]
        %v1617 = vld [vmem:[#allocation8 + $0x38] sm:$0xff]
        %v1618 = vld [vmem:[#allocation8 + $0x40] sm:$0xff]
        %v1619 = vld [vmem:[#allocation8 + $0x48] sm:$0xff]
        %v1620 = vld [vmem:[#allocation8 + $0x50] sm:$0xff]
        %v1621 = vld [vmem:[#allocation8 + $0x58] sm:$0xff]
        %v1622 = vld [vmem:[#allocation8 + $0x60] sm:$0xff]
        %v1623 = vld [vmem:[#allocation8 + $0x68] sm:$0xff]
        %v1624 = vld [vmem:[#allocation8 + $0x70] sm:$0xff]
        %v1625 = vld [vmem:[#allocation8 + $0x78] sm:$0xff]
        %v1626 = vld [vmem:[#allocation2 + $0x8] sm:$0xff]
        %v1627 = vld [vmem:[#allocation2 + $0x18] sm:$0xff]
        %v1628 = vpack.c.bf16 %v1627, %v1626
        %v1629 = vld [vmem:[#allocation8 + $0x80] sm:$0xff]
        %v1630 = vld [vmem:[#allocation8 + $0x88] sm:$0xff]
        %v1631 = vld [vmem:[#allocation8 + $0x90] sm:$0xff]
        %v1632 = vld [vmem:[#allocation8 + $0x98] sm:$0xff]
        %v1633 = vld [vmem:[#allocation8 + $0xa0] sm:$0xff]
        %v1634 = vld [vmem:[#allocation8 + $0xa8] sm:$0xff]
        %v1635 = vld [vmem:[#allocation8 + $0xb0] sm:$0xff]
        %v1636 = vld [vmem:[#allocation8 + $0xb8] sm:$0xff]
        %v1637 = vld [vmem:[#allocation8 + $0xc0] sm:$0xff]
        %v1638 = vld [vmem:[#allocation8 + $0xc8] sm:$0xff]
        %v1639 = vld [vmem:[#allocation8 + $0xd0] sm:$0xff]
        %v1640 = vld [vmem:[#allocation8 + $0xd8] sm:$0xff]
        %v1641 = vld [vmem:[#allocation8 + $0xe0] sm:$0xff]
        %v1642 = vld [vmem:[#allocation8 + $0xe8] sm:$0xff]
        %v1643 = vld [vmem:[#allocation8 + $0xf0] sm:$0xff]
        %v1644 = vld [vmem:[#allocation8 + $0xf8] sm:$0xff]
        %v1661 = vunpack.c.l.b16 %v1629
        %v1662 = vunpack.c.h.b16 %v1629
        %v1663 = vunpack.c.l.b16 %v1630
        %v1664 = vunpack.c.h.b16 %v1630
        %v1665 = vunpack.c.l.b16 %v1631
        %v1666 = vunpack.c.h.b16 %v1631
        %v1667 = vunpack.c.l.b16 %v1632
        %v1668 = vunpack.c.h.b16 %v1632
        %v1669 = vunpack.c.l.b16 %v1633
        %v1670 = vunpack.c.h.b16 %v1633
        %v1671 = vunpack.c.l.b16 %v1634
        %v1672 = vunpack.c.h.b16 %v1634
        %v1673 = vunpack.c.l.b16 %v1635
        %v1674 = vunpack.c.h.b16 %v1635
        %v1675 = vunpack.c.l.b16 %v1636
        %v1676 = vunpack.c.h.b16 %v1636
        %v1677 = vunpack.c.l.b16 %v1637
        %v1678 = vunpack.c.h.b16 %v1637
        %v1679 = vunpack.c.l.b16 %v1638
        %v1680 = vunpack.c.h.b16 %v1638
        %v1681 = vunpack.c.l.b16 %v1639
        %v1682 = vunpack.c.h.b16 %v1639
        %v1683 = vunpack.c.l.b16 %v1640
        %v1684 = vunpack.c.h.b16 %v1640
        %v1685 = vunpack.c.l.b16 %v1641
        %v1686 = vunpack.c.h.b16 %v1641
        %v1687 = vunpack.c.l.b16 %v1642
        %v1688 = vunpack.c.h.b16 %v1642
        %v1689 = vunpack.c.l.b16 %v1643
        %v1690 = vunpack.c.h.b16 %v1643
        %v1691 = vunpack.c.l.b16 %v1644
        %v1692 = vunpack.c.h.b16 %v1644
        %v1693 = vpack.c.b16 %v1663, %v1661
        %v1694 = vpack.c.b16 %v1664, %v1662
        %v1695 = vpack.c.b16 %v1667, %v1665
        %v1696 = vpack.c.b16 %v1668, %v1666
        %v1697 = vpack.c.b16 %v1671, %v1669
        %v1698 = vpack.c.b16 %v1672, %v1670
        %v1699 = vpack.c.b16 %v1675, %v1673
        %v1700 = vpack.c.b16 %v1676, %v1674
        %v1701 = vpack.c.b16 %v1679, %v1677
        %v1702 = vpack.c.b16 %v1680, %v1678
        %v1703 = vpack.c.b16 %v1683, %v1681
        %v1704 = vpack.c.b16 %v1684, %v1682
        %v1705 = vpack.c.b16 %v1687, %v1685
        %v1706 = vpack.c.b16 %v1688, %v1686
        %v1707 = vpack.c.b16 %v1691, %v1689
        %v1708 = vpack.c.b16 %v1692, %v1690
        %1725 = vmatprep.subr.bf16.mxu0 %v1694
        %1726 = vmatpush1.bf16.msra.mxu0 %v1693
        %1727 = vmatprep.subr.bf16.mxu0 %v1696
        %1728 = vmatpush1.bf16.msra.mxu0 %v1695
        %1729 = vmatprep.subr.bf16.mxu0 %v1698
        %1730 = vmatpush1.bf16.msra.mxu0 %v1697
        %1731 = vmatprep.subr.bf16.mxu0 %v1700
        %1732 = vmatpush1.bf16.msra.mxu0 %v1699
        %1733 = vmatprep.subr.bf16.mxu0 %v1702
        %1734 = vmatpush1.bf16.msra.mxu0 %v1701
        %1735 = vmatprep.subr.bf16.mxu0 %v1704
        %1736 = vmatpush1.bf16.msra.mxu0 %v1703
        %1737 = vmatprep.subr.bf16.mxu0 %v1706
        %1738 = vmatpush1.bf16.msra.mxu0 %v1705
        %1739 = vmatprep.subr.bf16.mxu0 %v1708
        %1740 = vmatpush1.bf16.msra.mxu0 %v1707
        %1741 = vmatprep.subr.bf16.mxu0 0
        %1742 = vmatpush1.bf16.msra.mxu0 0
        %1743 = vmatprep.subr.bf16.mxu0 0
        %1744 = vmatpush1.bf16.msra.mxu0 0
        %1745 = vmatprep.subr.bf16.mxu0 0
        %1746 = vmatpush1.bf16.msra.mxu0 0
        %1747 = vmatprep.subr.bf16.mxu0 0
        %1748 = vmatpush1.bf16.msra.mxu0 0
        %1749 = vmatprep.subr.bf16.mxu0 0
        %1750 = vmatpush1.bf16.msra.mxu0 0
        %1751 = vmatprep.subr.bf16.mxu0 0
        %1752 = vmatpush1.bf16.msra.mxu0 0
        %1753 = vmatprep.subr.bf16.mxu0 0
        %1754 = vmatpush1.bf16.msra.mxu0 0
        %1755 = vmatprep.subr.bf16.mxu0 0
        %1756 = vmatpush1.bf16.msra.mxu0 0
        %1757 = vmatprep.mubr.bf16.mxu0 0
        %1758 = vmatmul.mubr.bf16.gmra.mrb[0].mxu0 %v1628
        %v1759 = vpop.f32.mrb[0].mxu0
        %v1760 = vadd.f32 0.0, %v1759
        %v1761 = vpop.f32.mrb[0].mxu0
        %v1762 = vadd.f32 0.0, %v1761
        %v1763 = vpop.f32.mrb[0].mxu0
        %v1764 = vadd.f32 0.0, %v1763
        %v1765 = vpop.f32.mrb[0].mxu0
        %v1766 = vadd.f32 0.0, %v1765
        %1767 = vdwg.mxu0
        %v1784 = vunpack.c.l.b16 %v1610
        %v1785 = vunpack.c.h.b16 %v1610
        %v1786 = vunpack.c.l.b16 %v1611
        %v1787 = vunpack.c.h.b16 %v1611
        %v1788 = vunpack.c.l.b16 %v1612
        %v1789 = vunpack.c.h.b16 %v1612
        %v1790 = vunpack.c.l.b16 %v1613
        %v1791 = vunpack.c.h.b16 %v1613
        %v1792 = vunpack.c.l.b16 %v1614
        %v1793 = vunpack.c.h.b16 %v1614
        %v1794 = vunpack.c.l.b16 %v1615
        %v1795 = vunpack.c.h.b16 %v1615
        %v1796 = vunpack.c.l.b16 %v1616
        %v1797 = vunpack.c.h.b16 %v1616
        %v1798 = vunpack.c.l.b16 %v1617
        %v1799 = vunpack.c.h.b16 %v1617
        %v1800 = vunpack.c.l.b16 %v1618
        %v1801 = vunpack.c.h.b16 %v1618
        %v1802 = vunpack.c.l.b16 %v1619
        %v1803 = vunpack.c.h.b16 %v1619
        %v1804 = vunpack.c.l.b16 %v1620
        %v1805 = vunpack.c.h.b16 %v1620
        %v1806 = vunpack.c.l.b16 %v1621
        %v1807 = vunpack.c.h.b16 %v1621
        %v1808 = vunpack.c.l.b16 %v1622
        %v1809 = vunpack.c.h.b16 %v1622
        %v1810 = vunpack.c.l.b16 %v1623
        %v1811 = vunpack.c.h.b16 %v1623
        %v1812 = vunpack.c.l.b16 %v1624
        %v1813 = vunpack.c.h.b16 %v1624
        %v1814 = vunpack.c.l.b16 %v1625
        %v1815 = vunpack.c.h.b16 %v1625
        %v1816 = vpack.c.b16 %v1786, %v1784
        %v1817 = vpack.c.b16 %v1787, %v1785
        %v1818 = vpack.c.b16 %v1790, %v1788
        %v1819 = vpack.c.b16 %v1791, %v1789
        %v1820 = vpack.c.b16 %v1794, %v1792
        %v1821 = vpack.c.b16 %v1795, %v1793
        %v1822 = vpack.c.b16 %v1798, %v1796
        %v1823 = vpack.c.b16 %v1799, %v1797
        %v1824 = vpack.c.b16 %v1802, %v1800
        %v1825 = vpack.c.b16 %v1803, %v1801
        %v1826 = vpack.c.b16 %v1806, %v1804
        %v1827 = vpack.c.b16 %v1807, %v1805
        %v1828 = vpack.c.b16 %v1810, %v1808
        %v1829 = vpack.c.b16 %v1811, %v1809
        %v1830 = vpack.c.b16 %v1814, %v1812
        %v1831 = vpack.c.b16 %v1815, %v1813
        %1848 = vmatprep.subr.bf16.mxu0 %v1817
        %1849 = vmatpush1.bf16.msra.mxu0 %v1816
        %1850 = vmatprep.subr.bf16.mxu0 %v1819
        %1851 = vmatpush1.bf16.msra.mxu0 %v1818
        %1852 = vmatprep.subr.bf16.mxu0 %v1821
        %1853 = vmatpush1.bf16.msra.mxu0 %v1820
        %1854 = vmatprep.subr.bf16.mxu0 %v1823
        %1855 = vmatpush1.bf16.msra.mxu0 %v1822
        %1856 = vmatprep.subr.bf16.mxu0 %v1825
        %1857 = vmatpush1.bf16.msra.mxu0 %v1824
        %1858 = vmatprep.subr.bf16.mxu0 %v1827
        %1859 = vmatpush1.bf16.msra.mxu0 %v1826
        %1860 = vmatprep.subr.bf16.mxu0 %v1829
        %1861 = vmatpush1.bf16.msra.mxu0 %v1828
        %1862 = vmatprep.subr.bf16.mxu0 %v1831
        %1863 = vmatpush1.bf16.msra.mxu0 %v1830
        %1864 = vmatprep.subr.bf16.mxu0 0
        %1865 = vmatpush1.bf16.msra.mxu0 0
        %1866 = vmatprep.subr.bf16.mxu0 0
        %1867 = vmatpush1.bf16.msra.mxu0 0
        %1868 = vmatprep.subr.bf16.mxu0 0
        %1869 = vmatpush1.bf16.msra.mxu0 0
        %1870 = vmatprep.subr.bf16.mxu0 0
        %1871 = vmatpush1.bf16.msra.mxu0 0
        %1872 = vmatprep.subr.bf16.mxu0 0
        %1873 = vmatpush1.bf16.msra.mxu0 0
        %1874 = vmatprep.subr.bf16.mxu0 0
        %1875 = vmatpush1.bf16.msra.mxu0 0
        %1876 = vmatprep.subr.bf16.mxu0 0
        %1877 = vmatpush1.bf16.msra.mxu0 0
        %1878 = vmatprep.subr.bf16.mxu0 0
        %1879 = vmatpush1.bf16.msra.mxu0 0
        %1880 = vmatprep.mubr.bf16.mxu0 0
        %1881 = vmatmul.mubr.bf16.gmra.mrb[0].mxu0 %v1609
        %v1882 = vpop.f32.mrb[0].mxu0
        %v1883 = vadd.f32 %v1760, %v1882
        %v1884 = vpop.f32.mrb[0].mxu0
        %v1885 = vadd.f32 %v1762, %v1884
        %v1886 = vpop.f32.mrb[0].mxu0
        %v1887 = vadd.f32 %v1764, %v1886
        %v1888 = vpop.f32.mrb[0].mxu0
        %v1889 = vadd.f32 %v1766, %v1888
        %1890 = vdwg.mxu0
        %v1892 = vlaneseq
        %v1893 = vshrl.u32 %v1892, 7
        %v1894 = vsub.s32 0, %v1893
        %v1895 = vrot.slane %v1596, %v1894
        %v1896 = vlaneseq
        %v1897 = vshrl.u32 %v1896, 7
        %v1898 = vsub.s32 1, %v1897
        %v1899 = vrot.slane %v1596, %v1898
        %v1902 = vadd.f32 %v1883, %v1895
        %v1903 = vadd.f32 %v1885, %v1899
        %v1904 = vadd.f32 %v1887, %v1895
        %v1905 = vadd.f32 %v1889, %v1899
        %v1906 = vadd.f32 %v411, %v1902
        %v1907 = vadd.f32 %v412, %v1903
        %v1908 = vadd.f32 %v413, %v1904
        %v1909 = vadd.f32 %v414, %v1905
        %v1910 = vadd.f32 %v1906, %v1907
        %1911 = vadd.xlane.f32.xlu0 %v1910
        %v1912 = vpop.xlane.xlu0 %1911
        %v1913 = vadd.f32 %v1908, %v1909
        %1914 = vadd.xlane.f32.xlu0 %v1913
        %v1915 = vpop.xlane.xlu0 %1914
        %v1916 = vrcp.pop 256.0
        %v1917 = vmul.f32 %v1912, %v1916
        %v1918 = vmul.f32 %v1915, %v1916
        %v1919 = vsub.f32 %v1906, %v1917
        %v1920 = vsub.f32 %v1907, %v1917
        %v1921 = vsub.f32 %v1908, %v1918
        %v1922 = vsub.f32 %v1909, %v1918
        %v1923 = vmul.f32 %v1919, %v1919
        %v1924 = vmul.f32 %v1920, %v1920
        %v1925 = vmul.f32 %v1921, %v1921
        %v1926 = vmul.f32 %v1922, %v1922
        %v1927 = vadd.f32 %v1923, %v1924
        %1928 = vadd.xlane.f32.xlu0 %v1927
        %v1929 = vpop.xlane.xlu0 %1928
        %v1930 = vadd.f32 %v1925, %v1926
        %1931 = vadd.xlane.f32.xlu0 %v1930
        %v1932 = vpop.xlane.xlu0 %1931
        %v1933 = vmul.f32 %v1929, %v1916
        %v1934 = vmul.f32 %v1932, %v1916
        %v1935 = vadd.f32 %v1933, 1e-05
        %v1936 = vadd.f32 %v1934, 1e-05
        %v1937 = vrsqrt.pop %v1935
        %v1938 = vrsqrt.pop %v1936
        %v1939 = vmul.f32 %v1919, %v1937
        %v1940 = vmul.f32 %v1920, %v1937
        %v1941 = vmul.f32 %v1921, %v1938
        %v1942 = vmul.f32 %v1922, %v1938
        %v1944 = vlaneseq
        %v1945 = vshrl.u32 %v1944, 7
        %v1946 = vsub.s32 0, %v1945
        %v1947 = vrot.slane %v1598, %v1946
        %v1948 = vlaneseq
        %v1949 = vshrl.u32 %v1948, 7
        %v1950 = vsub.s32 1, %v1949
        %v1951 = vrot.slane %v1598, %v1950
        %v1954 = vmul.f32 %v1939, %v1947
        %v1955 = vmul.f32 %v1940, %v1951
        %v1956 = vmul.f32 %v1941, %v1947
        %v1957 = vmul.f32 %v1942, %v1951
        %v1959 = vlaneseq
        %v1960 = vshrl.u32 %v1959, 7
        %v1961 = vsub.s32 0, %v1960
        %v1962 = vrot.slane %v1600, %v1961
        %v1963 = vlaneseq
        %v1964 = vshrl.u32 %v1963, 7
        %v1965 = vsub.s32 1, %v1964
        %v1966 = vrot.slane %v1600, %v1965
        %v1969 = vadd.f32 %v1954, %v1962
        %v1970 = vadd.f32 %v1955, %v1966
        %v1971 = vadd.f32 %v1956, %v1962
        %v1972 = vadd.f32 %v1957, %v1966
        %v1973 = vpack.c.bf16 %v1971, %v1969
        %v1974 = vpack.c.bf16 %v1972, %v1970
        %v1975 = vld [vmem:[#allocation9] sm:$0xff]
        %v1976 = vld [vmem:[#allocation9 + $0x10] sm:$0xff]
        %v1977 = vld [vmem:[#allocation9 + $0x20] sm:$0xff]
        %v1978 = vld [vmem:[#allocation9 + $0x30] sm:$0xff]
        %v1979 = vld [vmem:[#allocation9 + $0x40] sm:$0xff]
        %v1980 = vld [vmem:[#allocation9 + $0x50] sm:$0xff]
        %v1981 = vld [vmem:[#allocation9 + $0x60] sm:$0xff]
        %v1982 = vld [vmem:[#allocation9 + $0x70] sm:$0xff]
        %v1983 = vld [vmem:[#allocation9 + $0x80] sm:$0xff]
        %v1984 = vld [vmem:[#allocation9 + $0x90] sm:$0xff]
        %v1985 = vld [vmem:[#allocation9 + $0xa0] sm:$0xff]
        %v1986 = vld [vmem:[#allocation9 + $0xb0] sm:$0xff]
        %v1987 = vld [vmem:[#allocation9 + $0xc0] sm:$0xff]
        %v1988 = vld [vmem:[#allocation9 + $0xd0] sm:$0xff]
        %v1989 = vld [vmem:[#allocation9 + $0xe0] sm:$0xff]
        %v1990 = vld [vmem:[#allocation9 + $0xf0] sm:$0xff]
        %v1991 = vld [vmem:[#allocation9 + $0x100] sm:$0xff]
        %v1992 = vld [vmem:[#allocation9 + $0x110] sm:$0xff]
        %v1993 = vld [vmem:[#allocation9 + $0x120] sm:$0xff]
        %v1994 = vld [vmem:[#allocation9 + $0x130] sm:$0xff]
        %v1995 = vld [vmem:[#allocation9 + $0x140] sm:$0xff]
        %v1996 = vld [vmem:[#allocation9 + $0x150] sm:$0xff]
        %v1997 = vld [vmem:[#allocation9 + $0x160] sm:$0xff]
        %v1998 = vld [vmem:[#allocation9 + $0x170] sm:$0xff]
        %v1999 = vld [vmem:[#allocation9 + $0x180] sm:$0xff]
        %v2000 = vld [vmem:[#allocation9 + $0x190] sm:$0xff]
        %v2001 = vld [vmem:[#allocation9 + $0x1a0] sm:$0xff]
        %v2002 = vld [vmem:[#allocation9 + $0x1b0] sm:$0xff]
        %v2003 = vld [vmem:[#allocation9 + $0x1c0] sm:$0xff]
        %v2004 = vld [vmem:[#allocation9 + $0x1d0] sm:$0xff]
        %v2005 = vld [vmem:[#allocation9 + $0x1e0] sm:$0xff]
        %v2006 = vld [vmem:[#allocation9 + $0x1f0] sm:$0xff]
        %v2007 = vld [vmem:[#allocation11] sm:$0x3]
        %v2009 = vlaneseq
        %v2010 = vshrl.u32 %v2009, 7
        %v2011 = vsub.s32 0, %v2010
        %v2012 = vrot.slane %v2007, %v2011
        %v2013 = vlaneseq
        %v2014 = vshrl.u32 %v2013, 7
        %v2015 = vsub.s32 1, %v2014
        %v2016 = vrot.slane %v2007, %v2015
        %v2051 = vunpack.c.l.b16 %v1975
        %v2052 = vunpack.c.h.b16 %v1975
        %v2053 = vunpack.c.l.b16 %v1976
        %v2054 = vunpack.c.h.b16 %v1976
        %v2055 = vunpack.c.l.b16 %v1977
        %v2056 = vunpack.c.h.b16 %v1977
        %v2057 = vunpack.c.l.b16 %v1978
        %v2058 = vunpack.c.h.b16 %v1978
        %v2059 = vunpack.c.l.b16 %v1979
        %v2060 = vunpack.c.h.b16 %v1979
        %v2061 = vunpack.c.l.b16 %v1980
        %v2062 = vunpack.c.h.b16 %v1980
        %v2063 = vunpack.c.l.b16 %v1981
        %v2064 = vunpack.c.h.b16 %v1981
        %v2065 = vunpack.c.l.b16 %v1982
        %v2066 = vunpack.c.h.b16 %v1982
        %v2067 = vunpack.c.l.b16 %v1983
        %v2068 = vunpack.c.h.b16 %v1983
        %v2069 = vunpack.c.l.b16 %v1984
        %v2070 = vunpack.c.h.b16 %v1984
        %v2071 = vunpack.c.l.b16 %v1985
        %v2072 = vunpack.c.h.b16 %v1985
        %v2073 = vunpack.c.l.b16 %v1986
        %v2074 = vunpack.c.h.b16 %v1986
        %v2075 = vunpack.c.l.b16 %v1987
        %v2076 = vunpack.c.h.b16 %v1987
        %v2077 = vunpack.c.l.b16 %v1988
        %v2078 = vunpack.c.h.b16 %v1988
        %v2079 = vunpack.c.l.b16 %v1989
        %v2080 = vunpack.c.h.b16 %v1989
        %v2081 = vunpack.c.l.b16 %v1990
        %v2082 = vunpack.c.h.b16 %v1990
        %v2083 = vunpack.c.l.b16 %v1991
        %v2084 = vunpack.c.h.b16 %v1991
        %v2085 = vunpack.c.l.b16 %v1992
        %v2086 = vunpack.c.h.b16 %v1992
        %v2087 = vunpack.c.l.b16 %v1993
        %v2088 = vunpack.c.h.b16 %v1993
        %v2089 = vunpack.c.l.b16 %v1994
        %v2090 = vunpack.c.h.b16 %v1994
        %v2091 = vunpack.c.l.b16 %v1995
        %v2092 = vunpack.c.h.b16 %v1995
        %v2093 = vunpack.c.l.b16 %v1996
        %v2094 = vunpack.c.h.b16 %v1996
        %v2095 = vunpack.c.l.b16 %v1997
        %v2096 = vunpack.c.h.b16 %v1997
        %v2097 = vunpack.c.l.b16 %v1998
        %v2098 = vunpack.c.h.b16 %v1998
        %v2099 = vunpack.c.l.b16 %v1999
        %v2100 = vunpack.c.h.b16 %v1999
        %v2101 = vunpack.c.l.b16 %v2000
        %v2102 = vunpack.c.h.b16 %v2000
        %v2103 = vunpack.c.l.b16 %v2001
        %v2104 = vunpack.c.h.b16 %v2001
        %v2105 = vunpack.c.l.b16 %v2002
        %v2106 = vunpack.c.h.b16 %v2002
        %v2107 = vunpack.c.l.b16 %v2003
        %v2108 = vunpack.c.h.b16 %v2003
        %v2109 = vunpack.c.l.b16 %v2004
        %v2110 = vunpack.c.h.b16 %v2004
        %v2111 = vunpack.c.l.b16 %v2005
        %v2112 = vunpack.c.h.b16 %v2005
        %v2113 = vunpack.c.l.b16 %v2006
        %v2114 = vunpack.c.h.b16 %v2006
        %v2115 = vpack.c.b16 %v2053, %v2051
        %v2116 = vpack.c.b16 %v2054, %v2052
        %v2117 = vpack.c.b16 %v2057, %v2055
        %v2118 = vpack.c.b16 %v2058, %v2056
        %v2119 = vpack.c.b16 %v2061, %v2059
        %v2120 = vpack.c.b16 %v2062, %v2060
        %v2121 = vpack.c.b16 %v2065, %v2063
        %v2122 = vpack.c.b16 %v2066, %v2064
        %v2123 = vpack.c.b16 %v2069, %v2067
        %v2124 = vpack.c.b16 %v2070, %v2068
        %v2125 = vpack.c.b16 %v2073, %v2071
        %v2126 = vpack.c.b16 %v2074, %v2072
        %v2127 = vpack.c.b16 %v2077, %v2075
        %v2128 = vpack.c.b16 %v2078, %v2076
        %v2129 = vpack.c.b16 %v2081, %v2079
        %v2130 = vpack.c.b16 %v2082, %v2080
        %v2131 = vpack.c.b16 %v2085, %v2083
        %v2132 = vpack.c.b16 %v2086, %v2084
        %v2133 = vpack.c.b16 %v2089, %v2087
        %v2134 = vpack.c.b16 %v2090, %v2088
        %v2135 = vpack.c.b16 %v2093, %v2091
        %v2136 = vpack.c.b16 %v2094, %v2092
        %v2137 = vpack.c.b16 %v2097, %v2095
        %v2138 = vpack.c.b16 %v2098, %v2096
        %v2139 = vpack.c.b16 %v2101, %v2099
        %v2140 = vpack.c.b16 %v2102, %v2100
        %v2141 = vpack.c.b16 %v2105, %v2103
        %v2142 = vpack.c.b16 %v2106, %v2104
        %v2143 = vpack.c.b16 %v2109, %v2107
        %v2144 = vpack.c.b16 %v2110, %v2108
        %v2145 = vpack.c.b16 %v2113, %v2111
        %v2146 = vpack.c.b16 %v2114, %v2112
        %2179 = vmatprep.subr.bf16.mxu0 %v2116
        %2180 = vmatpush1.bf16.msra.mxu0 %v2115
        %2181 = vmatprep.subr.bf16.mxu0 %v2118
        %2182 = vmatpush1.bf16.msra.mxu0 %v2117
        %2183 = vmatprep.subr.bf16.mxu0 %v2120
        %2184 = vmatpush1.bf16.msra.mxu0 %v2119
        %2185 = vmatprep.subr.bf16.mxu0 %v2122
        %2186 = vmatpush1.bf16.msra.mxu0 %v2121
        %2187 = vmatprep.subr.bf16.mxu0 %v2124
        %2188 = vmatpush1.bf16.msra.mxu0 %v2123
        %2189 = vmatprep.subr.bf16.mxu0 %v2126
        %2190 = vmatpush1.bf16.msra.mxu0 %v2125
        %2191 = vmatprep.subr.bf16.mxu0 %v2128
        %2192 = vmatpush1.bf16.msra.mxu0 %v2127
        %2193 = vmatprep.subr.bf16.mxu0 %v2130
        %2194 = vmatpush1.bf16.msra.mxu0 %v2129
        %2195 = vmatprep.subr.bf16.mxu0 %v2132
        %2196 = vmatpush1.bf16.msra.mxu0 %v2131
        %2197 = vmatprep.subr.bf16.mxu0 %v2134
        %2198 = vmatpush1.bf16.msra.mxu0 %v2133
        %2199 = vmatprep.subr.bf16.mxu0 %v2136
        %2200 = vmatpush1.bf16.msra.mxu0 %v2135
        %2201 = vmatprep.subr.bf16.mxu0 %v2138
        %2202 = vmatpush1.bf16.msra.mxu0 %v2137
        %2203 = vmatprep.subr.bf16.mxu0 %v2140
        %2204 = vmatpush1.bf16.msra.mxu0 %v2139
        %2205 = vmatprep.subr.bf16.mxu0 %v2142
        %2206 = vmatpush1.bf16.msra.mxu0 %v2141
        %2207 = vmatprep.subr.bf16.mxu0 %v2144
        %2208 = vmatpush1.bf16.msra.mxu0 %v2143
        %2209 = vmatprep.subr.bf16.mxu0 %v2146
        %2210 = vmatpush1.bf16.msra.mxu0 %v2145
        %2211 = vmatprep.mubr.bf16.mxu0 %v1974
        %2212 = vmatmul.mubr.bf16.gmra.mrb[0].mxu0 %v1973
        %v2213 = vpop.f32.mrb[0].mxu0
        %v2214 = vadd.f32 %v2012, %v2213
        %v2215 = vpop.f32.mrb[0].mxu0
        %v2216 = vadd.f32 %v2016, %v2215
        %v2217 = vpop.f32.mrb[0].mxu0
        %v2218 = vadd.f32 %v2012, %v2217
        %v2219 = vpop.f32.mrb[0].mxu0
        %v2220 = vadd.f32 %v2016, %v2219
        %2221 = vdwg.mxu0
        %v2222 = vmax.f32 %v2214, 0.0
        %v2223 = vmax.f32 %v2216, 0.0
        %v2224 = vmax.f32 %v2218, 0.0
        %v2225 = vmax.f32 %v2220, 0.0
        %v2226 = vpack.c.bf16 %v2224, %v2222
        %v2227 = vpack.c.bf16 %v2225, %v2223
        %v2228 = vld [vmem:[#allocation12] sm:$0xff]
        %v2229 = vld [vmem:[#allocation12 + $0x8] sm:$0xff]
        %v2230 = vld [vmem:[#allocation12 + $0x10] sm:$0xff]
        %v2231 = vld [vmem:[#allocation12 + $0x18] sm:$0xff]
        %v2232 = vld [vmem:[#allocation12 + $0x20] sm:$0xff]
        %v2233 = vld [vmem:[#allocation12 + $0x28] sm:$0xff]
        %v2234 = vld [vmem:[#allocation12 + $0x30] sm:$0xff]
        %v2235 = vld [vmem:[#allocation12 + $0x38] sm:$0xff]
        %v2236 = vld [vmem:[#allocation12 + $0x40] sm:$0xff]
        %v2237 = vld [vmem:[#allocation12 + $0x48] sm:$0xff]
        %v2238 = vld [vmem:[#allocation12 + $0x50] sm:$0xff]
        %v2239 = vld [vmem:[#allocation12 + $0x58] sm:$0xff]
        %v2240 = vld [vmem:[#allocation12 + $0x60] sm:$0xff]
        %v2241 = vld [vmem:[#allocation12 + $0x68] sm:$0xff]
        %v2242 = vld [vmem:[#allocation12 + $0x70] sm:$0xff]
        %v2243 = vld [vmem:[#allocation12 + $0x78] sm:$0xff]
        %v2244 = vld [vmem:[#allocation12 + $0x80] sm:$0xff]
        %v2245 = vld [vmem:[#allocation12 + $0x88] sm:$0xff]
        %v2246 = vld [vmem:[#allocation12 + $0x90] sm:$0xff]
        %v2247 = vld [vmem:[#allocation12 + $0x98] sm:$0xff]
        %v2248 = vld [vmem:[#allocation12 + $0xa0] sm:$0xff]
        %v2249 = vld [vmem:[#allocation12 + $0xa8] sm:$0xff]
        %v2250 = vld [vmem:[#allocation12 + $0xb0] sm:$0xff]
        %v2251 = vld [vmem:[#allocation12 + $0xb8] sm:$0xff]
        %v2252 = vld [vmem:[#allocation12 + $0xc0] sm:$0xff]
        %v2253 = vld [vmem:[#allocation12 + $0xc8] sm:$0xff]
        %v2254 = vld [vmem:[#allocation12 + $0xd0] sm:$0xff]
        %v2255 = vld [vmem:[#allocation12 + $0xd8] sm:$0xff]
        %v2256 = vld [vmem:[#allocation12 + $0xe0] sm:$0xff]
        %v2257 = vld [vmem:[#allocation12 + $0xe8] sm:$0xff]
        %v2258 = vld [vmem:[#allocation12 + $0xf0] sm:$0xff]
        %v2259 = vld [vmem:[#allocation12 + $0xf8] sm:$0xff]
        %v2260 = vld [vmem:[#allocation9 + $0x8] sm:$0xff]
        %v2261 = vld [vmem:[#allocation9 + $0x18] sm:$0xff]
        %v2262 = vld [vmem:[#allocation9 + $0x28] sm:$0xff]
        %v2263 = vld [vmem:[#allocation9 + $0x38] sm:$0xff]
        %v2264 = vld [vmem:[#allocation9 + $0x48] sm:$0xff]
        %v2265 = vld [vmem:[#allocation9 + $0x58] sm:$0xff]
        %v2266 = vld [vmem:[#allocation9 + $0x68] sm:$0xff]
        %v2267 = vld [vmem:[#allocation9 + $0x78] sm:$0xff]
        %v2268 = vld [vmem:[#allocation9 + $0x88] sm:$0xff]
        %v2269 = vld [vmem:[#allocation9 + $0x98] sm:$0xff]
        %v2270 = vld [vmem:[#allocation9 + $0xa8] sm:$0xff]
        %v2271 = vld [vmem:[#allocation9 + $0xb8] sm:$0xff]
        %v2272 = vld [vmem:[#allocation9 + $0xc8] sm:$0xff]
        %v2273 = vld [vmem:[#allocation9 + $0xd8] sm:$0xff]
        %v2274 = vld [vmem:[#allocation9 + $0xe8] sm:$0xff]
        %v2275 = vld [vmem:[#allocation9 + $0xf8] sm:$0xff]
        %v2276 = vld [vmem:[#allocation9 + $0x108] sm:$0xff]
        %v2277 = vld [vmem:[#allocation9 + $0x118] sm:$0xff]
        %v2278 = vld [vmem:[#allocation9 + $0x128] sm:$0xff]
        %v2279 = vld [vmem:[#allocation9 + $0x138] sm:$0xff]
        %v2280 = vld [vmem:[#allocation9 + $0x148] sm:$0xff]
        %v2281 = vld [vmem:[#allocation9 + $0x158] sm:$0xff]
        %v2282 = vld [vmem:[#allocation9 + $0x168] sm:$0xff]
        %v2283 = vld [vmem:[#allocation9 + $0x178] sm:$0xff]
        %v2284 = vld [vmem:[#allocation9 + $0x188] sm:$0xff]
        %v2285 = vld [vmem:[#allocation9 + $0x198] sm:$0xff]
        %v2286 = vld [vmem:[#allocation9 + $0x1a8] sm:$0xff]
        %v2287 = vld [vmem:[#allocation9 + $0x1b8] sm:$0xff]
        %v2288 = vld [vmem:[#allocation9 + $0x1c8] sm:$0xff]
        %v2289 = vld [vmem:[#allocation9 + $0x1d8] sm:$0xff]
        %v2290 = vld [vmem:[#allocation9 + $0x1e8] sm:$0xff]
        %v2291 = vld [vmem:[#allocation9 + $0x1f8] sm:$0xff]
        %v2292 = vld [vmem:[#allocation11 + $0x2] sm:$0x3]
        %v2294 = vlaneseq
        %v2295 = vshrl.u32 %v2294, 7
        %v2296 = vsub.s32 0, %v2295
        %v2297 = vrot.slane %v2292, %v2296
        %v2298 = vlaneseq
        %v2299 = vshrl.u32 %v2298, 7
        %v2300 = vsub.s32 1, %v2299
        %v2301 = vrot.slane %v2292, %v2300
        %v2336 = vunpack.c.l.b16 %v2260
        %v2337 = vunpack.c.h.b16 %v2260
        %v2338 = vunpack.c.l.b16 %v2261
        %v2339 = vunpack.c.h.b16 %v2261
        %v2340 = vunpack.c.l.b16 %v2262
        %v2341 = vunpack.c.h.b16 %v2262
        %v2342 = vunpack.c.l.b16 %v2263
        %v2343 = vunpack.c.h.b16 %v2263
        %v2344 = vunpack.c.l.b16 %v2264
        %v2345 = vunpack.c.h.b16 %v2264
        %v2346 = vunpack.c.l.b16 %v2265
        %v2347 = vunpack.c.h.b16 %v2265
        %v2348 = vunpack.c.l.b16 %v2266
        %v2349 = vunpack.c.h.b16 %v2266
        %v2350 = vunpack.c.l.b16 %v2267
        %v2351 = vunpack.c.h.b16 %v2267
        %v2352 = vunpack.c.l.b16 %v2268
        %v2353 = vunpack.c.h.b16 %v2268
        %v2354 = vunpack.c.l.b16 %v2269
        %v2355 = vunpack.c.h.b16 %v2269
        %v2356 = vunpack.c.l.b16 %v2270
        %v2357 = vunpack.c.h.b16 %v2270
        %v2358 = vunpack.c.l.b16 %v2271
        %v2359 = vunpack.c.h.b16 %v2271
        %v2360 = vunpack.c.l.b16 %v2272
        %v2361 = vunpack.c.h.b16 %v2272
        %v2362 = vunpack.c.l.b16 %v2273
        %v2363 = vunpack.c.h.b16 %v2273
        %v2364 = vunpack.c.l.b16 %v2274
        %v2365 = vunpack.c.h.b16 %v2274
        %v2366 = vunpack.c.l.b16 %v2275
        %v2367 = vunpack.c.h.b16 %v2275
        %v2368 = vunpack.c.l.b16 %v2276
        %v2369 = vunpack.c.h.b16 %v2276
        %v2370 = vunpack.c.l.b16 %v2277
        %v2371 = vunpack.c.h.b16 %v2277
        %v2372 = vunpack.c.l.b16 %v2278
        %v2373 = vunpack.c.h.b16 %v2278
        %v2374 = vunpack.c.l.b16 %v2279
        %v2375 = vunpack.c.h.b16 %v2279
        %v2376 = vunpack.c.l.b16 %v2280
        %v2377 = vunpack.c.h.b16 %v2280
        %v2378 = vunpack.c.l.b16 %v2281
        %v2379 = vunpack.c.h.b16 %v2281
        %v2380 = vunpack.c.l.b16 %v2282
        %v2381 = vunpack.c.h.b16 %v2282
        %v2382 = vunpack.c.l.b16 %v2283
        %v2383 = vunpack.c.h.b16 %v2283
        %v2384 = vunpack.c.l.b16 %v2284
        %v2385 = vunpack.c.h.b16 %v2284
        %v2386 = vunpack.c.l.b16 %v2285
        %v2387 = vunpack.c.h.b16 %v2285
        %v2388 = vunpack.c.l.b16 %v2286
        %v2389 = vunpack.c.h.b16 %v2286
        %v2390 = vunpack.c.l.b16 %v2287
        %v2391 = vunpack.c.h.b16 %v2287
        %v2392 = vunpack.c.l.b16 %v2288
        %v2393 = vunpack.c.h.b16 %v2288
        %v2394 = vunpack.c.l.b16 %v2289
        %v2395 = vunpack.c.h.b16 %v2289
        %v2396 = vunpack.c.l.b16 %v2290
        %v2397 = vunpack.c.h.b16 %v2290
        %v2398 = vunpack.c.l.b16 %v2291
        %v2399 = vunpack.c.h.b16 %v2291
        %v2400 = vpack.c.b16 %v2338, %v2336
        %v2401 = vpack.c.b16 %v2339, %v2337
        %v2402 = vpack.c.b16 %v2342, %v2340
        %v2403 = vpack.c.b16 %v2343, %v2341
        %v2404 = vpack.c.b16 %v2346, %v2344
        %v2405 = vpack.c.b16 %v2347, %v2345
        %v2406 = vpack.c.b16 %v2350, %v2348
        %v2407 = vpack.c.b16 %v2351, %v2349
        %v2408 = vpack.c.b16 %v2354, %v2352
        %v2409 = vpack.c.b16 %v2355, %v2353
        %v2410 = vpack.c.b16 %v2358, %v2356
        %v2411 = vpack.c.b16 %v2359, %v2357
        %v2412 = vpack.c.b16 %v2362, %v2360
        %v2413 = vpack.c.b16 %v2363, %v2361
        %v2414 = vpack.c.b16 %v2366, %v2364
        %v2415 = vpack.c.b16 %v2367, %v2365
        %v2416 = vpack.c.b16 %v2370, %v2368
        %v2417 = vpack.c.b16 %v2371, %v2369
        %v2418 = vpack.c.b16 %v2374, %v2372
        %v2419 = vpack.c.b16 %v2375, %v2373
        %v2420 = vpack.c.b16 %v2378, %v2376
        %v2421 = vpack.c.b16 %v2379, %v2377
        %v2422 = vpack.c.b16 %v2382, %v2380
        %v2423 = vpack.c.b16 %v2383, %v2381
        %v2424 = vpack.c.b16 %v2386, %v2384
        %v2425 = vpack.c.b16 %v2387, %v2385
        %v2426 = vpack.c.b16 %v2390, %v2388
        %v2427 = vpack.c.b16 %v2391, %v2389
        %v2428 = vpack.c.b16 %v2394, %v2392
        %v2429 = vpack.c.b16 %v2395, %v2393
        %v2430 = vpack.c.b16 %v2398, %v2396
        %v2431 = vpack.c.b16 %v2399, %v2397
        %2464 = vmatprep.subr.bf16.mxu0 %v2401
        %2465 = vmatpush1.bf16.msra.mxu0 %v2400
        %2466 = vmatprep.subr.bf16.mxu0 %v2403
        %2467 = vmatpush1.bf16.msra.mxu0 %v2402
        %2468 = vmatprep.subr.bf16.mxu0 %v2405
        %2469 = vmatpush1.bf16.msra.mxu0 %v2404
        %2470 = vmatprep.subr.bf16.mxu0 %v2407
        %2471 = vmatpush1.bf16.msra.mxu0 %v2406
        %2472 = vmatprep.subr.bf16.mxu0 %v2409
        %2473 = vmatpush1.bf16.msra.mxu0 %v2408
        %2474 = vmatprep.subr.bf16.mxu0 %v2411
        %2475 = vmatpush1.bf16.msra.mxu0 %v2410
        %2476 = vmatprep.subr.bf16.mxu0 %v2413
        %2477 = vmatpush1.bf16.msra.mxu0 %v2412
        %2478 = vmatprep.subr.bf16.mxu0 %v2415
        %2479 = vmatpush1.bf16.msra.mxu0 %v2414
        %2480 = vmatprep.subr.bf16.mxu0 %v2417
        %2481 = vmatpush1.bf16.msra.mxu0 %v2416
        %2482 = vmatprep.subr.bf16.mxu0 %v2419
        %2483 = vmatpush1.bf16.msra.mxu0 %v2418
        %2484 = vmatprep.subr.bf16.mxu0 %v2421
        %2485 = vmatpush1.bf16.msra.mxu0 %v2420
        %2486 = vmatprep.subr.bf16.mxu0 %v2423
        %2487 = vmatpush1.bf16.msra.mxu0 %v2422
        %2488 = vmatprep.subr.bf16.mxu0 %v2425
        %2489 = vmatpush1.bf16.msra.mxu0 %v2424
        %2490 = vmatprep.subr.bf16.mxu0 %v2427
        %2491 = vmatpush1.bf16.msra.mxu0 %v2426
        %2492 = vmatprep.subr.bf16.mxu0 %v2429
        %2493 = vmatpush1.bf16.msra.mxu0 %v2428
        %2494 = vmatprep.subr.bf16.mxu0 %v2431
        %2495 = vmatpush1.bf16.msra.mxu0 %v2430
        %2496 = vmatprep.mubr.bf16.mxu0 %v1974
        %2497 = vmatmul.mubr.bf16.gmra.mrb[0].mxu0 %v1973
        %v2498 = vpop.f32.mrb[0].mxu0
        %v2499 = vadd.f32 %v2297, %v2498
        %v2500 = vpop.f32.mrb[0].mxu0
        %v2501 = vadd.f32 %v2301, %v2500
        %v2502 = vpop.f32.mrb[0].mxu0
        %v2503 = vadd.f32 %v2297, %v2502
        %v2504 = vpop.f32.mrb[0].mxu0
        %v2505 = vadd.f32 %v2301, %v2504
        %2506 = vdwg.mxu0
        %v2507 = vmax.f32 %v2499, 0.0
        %v2508 = vmax.f32 %v2501, 0.0
        %v2509 = vmax.f32 %v2503, 0.0
        %v2510 = vmax.f32 %v2505, 0.0
        %v2511 = vpack.c.bf16 %v2509, %v2507
        %v2512 = vpack.c.bf16 %v2510, %v2508
        %v2513 = vld [vmem:[#allocation12 + $0x100] sm:$0xff]
        %v2514 = vld [vmem:[#allocation12 + $0x108] sm:$0xff]
        %v2515 = vld [vmem:[#allocation12 + $0x110] sm:$0xff]
        %v2516 = vld [vmem:[#allocation12 + $0x118] sm:$0xff]
        %v2517 = vld [vmem:[#allocation12 + $0x120] sm:$0xff]
        %v2518 = vld [vmem:[#allocation12 + $0x128] sm:$0xff]
        %v2519 = vld [vmem:[#allocation12 + $0x130] sm:$0xff]
        %v2520 = vld [vmem:[#allocation12 + $0x138] sm:$0xff]
        %v2521 = vld [vmem:[#allocation12 + $0x140] sm:$0xff]
        %v2522 = vld [vmem:[#allocation12 + $0x148] sm:$0xff]
        %v2523 = vld [vmem:[#allocation12 + $0x150] sm:$0xff]
        %v2524 = vld [vmem:[#allocation12 + $0x158] sm:$0xff]
        %v2525 = vld [vmem:[#allocation12 + $0x160] sm:$0xff]
        %v2526 = vld [vmem:[#allocation12 + $0x168] sm:$0xff]
        %v2527 = vld [vmem:[#allocation12 + $0x170] sm:$0xff]
        %v2528 = vld [vmem:[#allocation12 + $0x178] sm:$0xff]
        %v2529 = vld [vmem:[#allocation12 + $0x180] sm:$0xff]
        %v2530 = vld [vmem:[#allocation12 + $0x188] sm:$0xff]
        %v2531 = vld [vmem:[#allocation12 + $0x190] sm:$0xff]
        %v2532 = vld [vmem:[#allocation12 + $0x198] sm:$0xff]
        %v2533 = vld [vmem:[#allocation12 + $0x1a0] sm:$0xff]
        %v2534 = vld [vmem:[#allocation12 + $0x1a8] sm:$0xff]
        %v2535 = vld [vmem:[#allocation12 + $0x1b0] sm:$0xff]
        %v2536 = vld [vmem:[#allocation12 + $0x1b8] sm:$0xff]
        %v2537 = vld [vmem:[#allocation12 + $0x1c0] sm:$0xff]
        %v2538 = vld [vmem:[#allocation12 + $0x1c8] sm:$0xff]
        %v2539 = vld [vmem:[#allocation12 + $0x1d0] sm:$0xff]
        %v2540 = vld [vmem:[#allocation12 + $0x1d8] sm:$0xff]
        %v2541 = vld [vmem:[#allocation12 + $0x1e0] sm:$0xff]
        %v2542 = vld [vmem:[#allocation12 + $0x1e8] sm:$0xff]
        %v2543 = vld [vmem:[#allocation12 + $0x1f0] sm:$0xff]
        %v2544 = vld [vmem:[#allocation12 + $0x1f8] sm:$0xff]
        %v2577 = vunpack.c.l.b16 %v2513
        %v2578 = vunpack.c.h.b16 %v2513
        %v2579 = vunpack.c.l.b16 %v2514
        %v2580 = vunpack.c.h.b16 %v2514
        %v2581 = vunpack.c.l.b16 %v2515
        %v2582 = vunpack.c.h.b16 %v2515
        %v2583 = vunpack.c.l.b16 %v2516
        %v2584 = vunpack.c.h.b16 %v2516
        %v2585 = vunpack.c.l.b16 %v2517
        %v2586 = vunpack.c.h.b16 %v2517
        %v2587 = vunpack.c.l.b16 %v2518
        %v2588 = vunpack.c.h.b16 %v2518
        %v2589 = vunpack.c.l.b16 %v2519
        %v2590 = vunpack.c.h.b16 %v2519
        %v2591 = vunpack.c.l.b16 %v2520
        %v2592 = vunpack.c.h.b16 %v2520
        %v2593 = vunpack.c.l.b16 %v2521
        %v2594 = vunpack.c.h.b16 %v2521
        %v2595 = vunpack.c.l.b16 %v2522
        %v2596 = vunpack.c.h.b16 %v2522
        %v2597 = vunpack.c.l.b16 %v2523
        %v2598 = vunpack.c.h.b16 %v2523
        %v2599 = vunpack.c.l.b16 %v2524
        %v2600 = vunpack.c.h.b16 %v2524
        %v2601 = vunpack.c.l.b16 %v2525
        %v2602 = vunpack.c.h.b16 %v2525
        %v2603 = vunpack.c.l.b16 %v2526
        %v2604 = vunpack.c.h.b16 %v2526
        %v2605 = vunpack.c.l.b16 %v2527
        %v2606 = vunpack.c.h.b16 %v2527
        %v2607 = vunpack.c.l.b16 %v2528
        %v2608 = vunpack.c.h.b16 %v2528
        %v2609 = vunpack.c.l.b16 %v2529
        %v2610 = vunpack.c.h.b16 %v2529
        %v2611 = vunpack.c.l.b16 %v2530
        %v2612 = vunpack.c.h.b16 %v2530
        %v2613 = vunpack.c.l.b16 %v2531
        %v2614 = vunpack.c.h.b16 %v2531
        %v2615 = vunpack.c.l.b16 %v2532
        %v2616 = vunpack.c.h.b16 %v2532
        %v2617 = vunpack.c.l.b16 %v2533
        %v2618 = vunpack.c.h.b16 %v2533
        %v2619 = vunpack.c.l.b16 %v2534
        %v2620 = vunpack.c.h.b16 %v2534
        %v2621 = vunpack.c.l.b16 %v2535
        %v2622 = vunpack.c.h.b16 %v2535
        %v2623 = vunpack.c.l.b16 %v2536
        %v2624 = vunpack.c.h.b16 %v2536
        %v2625 = vunpack.c.l.b16 %v2537
        %v2626 = vunpack.c.h.b16 %v2537
        %v2627 = vunpack.c.l.b16 %v2538
        %v2628 = vunpack.c.h.b16 %v2538
        %v2629 = vunpack.c.l.b16 %v2539
        %v2630 = vunpack.c.h.b16 %v2539
        %v2631 = vunpack.c.l.b16 %v2540
        %v2632 = vunpack.c.h.b16 %v2540
        %v2633 = vunpack.c.l.b16 %v2541
        %v2634 = vunpack.c.h.b16 %v2541
        %v2635 = vunpack.c.l.b16 %v2542
        %v2636 = vunpack.c.h.b16 %v2542
        %v2637 = vunpack.c.l.b16 %v2543
        %v2638 = vunpack.c.h.b16 %v2543
        %v2639 = vunpack.c.l.b16 %v2544
        %v2640 = vunpack.c.h.b16 %v2544
        %v2641 = vpack.c.b16 %v2579, %v2577
        %v2642 = vpack.c.b16 %v2580, %v2578
        %v2643 = vpack.c.b16 %v2583, %v2581
        %v2644 = vpack.c.b16 %v2584, %v2582
        %v2645 = vpack.c.b16 %v2587, %v2585
        %v2646 = vpack.c.b16 %v2588, %v2586
        %v2647 = vpack.c.b16 %v2591, %v2589
        %v2648 = vpack.c.b16 %v2592, %v2590
        %v2649 = vpack.c.b16 %v2595, %v2593
        %v2650 = vpack.c.b16 %v2596, %v2594
        %v2651 = vpack.c.b16 %v2599, %v2597
        %v2652 = vpack.c.b16 %v2600, %v2598
        %v2653 = vpack.c.b16 %v2603, %v2601
        %v2654 = vpack.c.b16 %v2604, %v2602
        %v2655 = vpack.c.b16 %v2607, %v2605
        %v2656 = vpack.c.b16 %v2608, %v2606
        %v2657 = vpack.c.b16 %v2611, %v2609
        %v2658 = vpack.c.b16 %v2612, %v2610
        %v2659 = vpack.c.b16 %v2615, %v2613
        %v2660 = vpack.c.b16 %v2616, %v2614
        %v2661 = vpack.c.b16 %v2619, %v2617
        %v2662 = vpack.c.b16 %v2620, %v2618
        %v2663 = vpack.c.b16 %v2623, %v2621
        %v2664 = vpack.c.b16 %v2624, %v2622
        %v2665 = vpack.c.b16 %v2627, %v2625
        %v2666 = vpack.c.b16 %v2628, %v2626
        %v2667 = vpack.c.b16 %v2631, %v2629
        %v2668 = vpack.c.b16 %v2632, %v2630
        %v2669 = vpack.c.b16 %v2635, %v2633
        %v2670 = vpack.c.b16 %v2636, %v2634
        %v2671 = vpack.c.b16 %v2639, %v2637
        %v2672 = vpack.c.b16 %v2640, %v2638
        %2705 = vmatprep.subr.bf16.mxu0 %v2642
        %2706 = vmatpush1.bf16.msra.mxu0 %v2641
        %2707 = vmatprep.subr.bf16.mxu0 %v2644
        %2708 = vmatpush1.bf16.msra.mxu0 %v2643
        %2709 = vmatprep.subr.bf16.mxu0 %v2646
        %2710 = vmatpush1.bf16.msra.mxu0 %v2645
        %2711 = vmatprep.subr.bf16.mxu0 %v2648
        %2712 = vmatpush1.bf16.msra.mxu0 %v2647
        %2713 = vmatprep.subr.bf16.mxu0 %v2650
        %2714 = vmatpush1.bf16.msra.mxu0 %v2649
        %2715 = vmatprep.subr.bf16.mxu0 %v2652
        %2716 = vmatpush1.bf16.msra.mxu0 %v2651
        %2717 = vmatprep.subr.bf16.mxu0 %v2654
        %2718 = vmatpush1.bf16.msra.mxu0 %v2653
        %2719 = vmatprep.subr.bf16.mxu0 %v2656
        %2720 = vmatpush1.bf16.msra.mxu0 %v2655
        %2721 = vmatprep.subr.bf16.mxu0 %v2658
        %2722 = vmatpush1.bf16.msra.mxu0 %v2657
        %2723 = vmatprep.subr.bf16.mxu0 %v2660
        %2724 = vmatpush1.bf16.msra.mxu0 %v2659
        %2725 = vmatprep.subr.bf16.mxu0 %v2662
        %2726 = vmatpush1.bf16.msra.mxu0 %v2661
        %2727 = vmatprep.subr.bf16.mxu0 %v2664
        %2728 = vmatpush1.bf16.msra.mxu0 %v2663
        %2729 = vmatprep.subr.bf16.mxu0 %v2666
        %2730 = vmatpush1.bf16.msra.mxu0 %v2665
        %2731 = vmatprep.subr.bf16.mxu0 %v2668
        %2732 = vmatpush1.bf16.msra.mxu0 %v2667
        %2733 = vmatprep.subr.bf16.mxu0 %v2670
        %2734 = vmatpush1.bf16.msra.mxu0 %v2669
        %2735 = vmatprep.subr.bf16.mxu0 %v2672
        %2736 = vmatpush1.bf16.msra.mxu0 %v2671
        %2737 = vmatprep.mubr.bf16.mxu0 %v2512
        %2738 = vmatmul.mubr.bf16.gmra.mrb[0].mxu0 %v2511
        %v2739 = vpop.f32.mrb[0].mxu0
        %v2740 = vadd.f32 0.0, %v2739
        %v2741 = vpop.f32.mrb[0].mxu0
        %v2742 = vadd.f32 0.0, %v2741
        %v2743 = vpop.f32.mrb[0].mxu0
        %v2744 = vadd.f32 0.0, %v2743
        %v2745 = vpop.f32.mrb[0].mxu0
        %v2746 = vadd.f32 0.0, %v2745
        %2747 = vdwg.mxu0
        %v2780 = vunpack.c.l.b16 %v2228
        %v2781 = vunpack.c.h.b16 %v2228
        %v2782 = vunpack.c.l.b16 %v2229
        %v2783 = vunpack.c.h.b16 %v2229
        %v2784 = vunpack.c.l.b16 %v2230
        %v2785 = vunpack.c.h.b16 %v2230
        %v2786 = vunpack.c.l.b16 %v2231
        %v2787 = vunpack.c.h.b16 %v2231
        %v2788 = vunpack.c.l.b16 %v2232
        %v2789 = vunpack.c.h.b16 %v2232
        %v2790 = vunpack.c.l.b16 %v2233
        %v2791 = vunpack.c.h.b16 %v2233
        %v2792 = vunpack.c.l.b16 %v2234
        %v2793 = vunpack.c.h.b16 %v2234
        %v2794 = vunpack.c.l.b16 %v2235
        %v2795 = vunpack.c.h.b16 %v2235
        %v2796 = vunpack.c.l.b16 %v2236
        %v2797 = vunpack.c.h.b16 %v2236
        %v2798 = vunpack.c.l.b16 %v2237
        %v2799 = vunpack.c.h.b16 %v2237
        %v2800 = vunpack.c.l.b16 %v2238
        %v2801 = vunpack.c.h.b16 %v2238
        %v2802 = vunpack.c.l.b16 %v2239
        %v2803 = vunpack.c.h.b16 %v2239
        %v2804 = vunpack.c.l.b16 %v2240
        %v2805 = vunpack.c.h.b16 %v2240
        %v2806 = vunpack.c.l.b16 %v2241
        %v2807 = vunpack.c.h.b16 %v2241
        %v2808 = vunpack.c.l.b16 %v2242
        %v2809 = vunpack.c.h.b16 %v2242
        %v2810 = vunpack.c.l.b16 %v2243
        %v2811 = vunpack.c.h.b16 %v2243
        %v2812 = vunpack.c.l.b16 %v2244
        %v2813 = vunpack.c.h.b16 %v2244
        %v2814 = vunpack.c.l.b16 %v2245
        %v2815 = vunpack.c.h.b16 %v2245
        %v2816 = vunpack.c.l.b16 %v2246
        %v2817 = vunpack.c.h.b16 %v2246
        %v2818 = vunpack.c.l.b16 %v2247
        %v2819 = vunpack.c.h.b16 %v2247
        %v2820 = vunpack.c.l.b16 %v2248
        %v2821 = vunpack.c.h.b16 %v2248
        %v2822 = vunpack.c.l.b16 %v2249
        %v2823 = vunpack.c.h.b16 %v2249
        %v2824 = vunpack.c.l.b16 %v2250
        %v2825 = vunpack.c.h.b16 %v2250
        %v2826 = vunpack.c.l.b16 %v2251
        %v2827 = vunpack.c.h.b16 %v2251
        %v2828 = vunpack.c.l.b16 %v2252
        %v2829 = vunpack.c.h.b16 %v2252
        %v2830 = vunpack.c.l.b16 %v2253
        %v2831 = vunpack.c.h.b16 %v2253
        %v2832 = vunpack.c.l.b16 %v2254
        %v2833 = vunpack.c.h.b16 %v2254
        %v2834 = vunpack.c.l.b16 %v2255
        %v2835 = vunpack.c.h.b16 %v2255
        %v2836 = vunpack.c.l.b16 %v2256
        %v2837 = vunpack.c.h.b16 %v2256
        %v2838 = vunpack.c.l.b16 %v2257
        %v2839 = vunpack.c.h.b16 %v2257
        %v2840 = vunpack.c.l.b16 %v2258
        %v2841 = vunpack.c.h.b16 %v2258
        %v2842 = vunpack.c.l.b16 %v2259
        %v2843 = vunpack.c.h.b16 %v2259
        %v2844 = vpack.c.b16 %v2782, %v2780
        %v2845 = vpack.c.b16 %v2783, %v2781
        %v2846 = vpack.c.b16 %v2786, %v2784
        %v2847 = vpack.c.b16 %v2787, %v2785
        %v2848 = vpack.c.b16 %v2790, %v2788
        %v2849 = vpack.c.b16 %v2791, %v2789
        %v2850 = vpack.c.b16 %v2794, %v2792
        %v2851 = vpack.c.b16 %v2795, %v2793
        %v2852 = vpack.c.b16 %v2798, %v2796
        %v2853 = vpack.c.b16 %v2799, %v2797
        %v2854 = vpack.c.b16 %v2802, %v2800
        %v2855 = vpack.c.b16 %v2803, %v2801
        %v2856 = vpack.c.b16 %v2806, %v2804
        %v2857 = vpack.c.b16 %v2807, %v2805
        %v2858 = vpack.c.b16 %v2810, %v2808
        %v2859 = vpack.c.b16 %v2811, %v2809
        %v2860 = vpack.c.b16 %v2814, %v2812
        %v2861 = vpack.c.b16 %v2815, %v2813
        %v2862 = vpack.c.b16 %v2818, %v2816
        %v2863 = vpack.c.b16 %v2819, %v2817
        %v2864 = vpack.c.b16 %v2822, %v2820
        %v2865 = vpack.c.b16 %v2823, %v2821
        %v2866 = vpack.c.b16 %v2826, %v2824
        %v2867 = vpack.c.b16 %v2827, %v2825
        %v2868 = vpack.c.b16 %v2830, %v2828
        %v2869 = vpack.c.b16 %v2831, %v2829
        %v2870 = vpack.c.b16 %v2834, %v2832
        %v2871 = vpack.c.b16 %v2835, %v2833
        %v2872 = vpack.c.b16 %v2838, %v2836
        %v2873 = vpack.c.b16 %v2839, %v2837
        %v2874 = vpack.c.b16 %v2842, %v2840
        %v2875 = vpack.c.b16 %v2843, %v2841
        %2908 = vmatprep.subr.bf16.mxu0 %v2845
        %2909 = vmatpush1.bf16.msra.mxu0 %v2844
        %2910 = vmatprep.subr.bf16.mxu0 %v2847
        %2911 = vmatpush1.bf16.msra.mxu0 %v2846
        %2912 = vmatprep.subr.bf16.mxu0 %v2849
        %2913 = vmatpush1.bf16.msra.mxu0 %v2848
        %2914 = vmatprep.subr.bf16.mxu0 %v2851
        %2915 = vmatpush1.bf16.msra.mxu0 %v2850
        %2916 = vmatprep.subr.bf16.mxu0 %v2853
        %2917 = vmatpush1.bf16.msra.mxu0 %v2852
        %2918 = vmatprep.subr.bf16.mxu0 %v2855
        %2919 = vmatpush1.bf16.msra.mxu0 %v2854
        %2920 = vmatprep.subr.bf16.mxu0 %v2857
        %2921 = vmatpush1.bf16.msra.mxu0 %v2856
        %2922 = vmatprep.subr.bf16.mxu0 %v2859
        %2923 = vmatpush1.bf16.msra.mxu0 %v2858
        %2924 = vmatprep.subr.bf16.mxu0 %v2861
        %2925 = vmatpush1.bf16.msra.mxu0 %v2860
        %2926 = vmatprep.subr.bf16.mxu0 %v2863
        %2927 = vmatpush1.bf16.msra.mxu0 %v2862
        %2928 = vmatprep.subr.bf16.mxu0 %v2865
        %2929 = vmatpush1.bf16.msra.mxu0 %v2864
        %2930 = vmatprep.subr.bf16.mxu0 %v2867
        %2931 = vmatpush1.bf16.msra.mxu0 %v2866
        %2932 = vmatprep.subr.bf16.mxu0 %v2869
        %2933 = vmatpush1.bf16.msra.mxu0 %v2868
        %2934 = vmatprep.subr.bf16.mxu0 %v2871
        %2935 = vmatpush1.bf16.msra.mxu0 %v2870
        %2936 = vmatprep.subr.bf16.mxu0 %v2873
        %2937 = vmatpush1.bf16.msra.mxu0 %v2872
        %2938 = vmatprep.subr.bf16.mxu0 %v2875
        %2939 = vmatpush1.bf16.msra.mxu0 %v2874
        %2940 = vmatprep.mubr.bf16.mxu0 %v2227
        %2941 = vmatmul.mubr.bf16.gmra.mrb[0].mxu0 %v2226
        %v2942 = vpop.f32.mrb[0].mxu0
        %v2943 = vadd.f32 %v2740, %v2942
        %v2944 = vpop.f32.mrb[0].mxu0
        %v2945 = vadd.f32 %v2742, %v2944
        %v2946 = vpop.f32.mrb[0].mxu0
        %v2947 = vadd.f32 %v2744, %v2946
        %v2948 = vpop.f32.mrb[0].mxu0
        %v2949 = vadd.f32 %v2746, %v2948
        %2950 = vdwg.mxu0
        %v2952 = vlaneseq
        %v2953 = vshrl.u32 %v2952, 7
        %v2954 = vsub.s32 0, %v2953
        %v2955 = vrot.slane %v1602, %v2954
        %v2956 = vlaneseq
        %v2957 = vshrl.u32 %v2956, 7
        %v2958 = vsub.s32 1, %v2957
        %v2959 = vrot.slane %v1602, %v2958
        %v2962 = vadd.f32 %v2943, %v2955
        %v2963 = vadd.f32 %v2945, %v2959
        %v2964 = vadd.f32 %v2947, %v2955
        %v2965 = vadd.f32 %v2949, %v2959
        %v2966 = vadd.f32 %v1969, %v2962
        %v2967 = vadd.f32 %v1970, %v2963
        %v2968 = vadd.f32 %v1971, %v2964
        %v2969 = vadd.f32 %v1972, %v2965
        %v2970 = vadd.f32 %v2966, %v2967
        %2971 = vadd.xlane.f32.xlu0 %v2970
        %v2972 = vpop.xlane.xlu0 %2971
        %v2973 = vadd.f32 %v2968, %v2969
        %2974 = vadd.xlane.f32.xlu0 %v2973
        %v2975 = vpop.xlane.xlu0 %2974
        %v2976 = vmul.f32 %v2972, %v1916
        %v2977 = vmul.f32 %v2975, %v1916
        %v2978 = vsub.f32 %v2966, %v2976
        %v2979 = vsub.f32 %v2967, %v2976
        %v2980 = vsub.f32 %v2968, %v2977
        %v2981 = vsub.f32 %v2969, %v2977
        %v2982 = vmul.f32 %v2978, %v2978
        %v2983 = vmul.f32 %v2979, %v2979
        %v2984 = vmul.f32 %v2980, %v2980
        %v2985 = vmul.f32 %v2981, %v2981
        %v2986 = vadd.f32 %v2982, %v2983
        %2987 = vadd.xlane.f32.xlu0 %v2986
        %v2988 = vpop.xlane.xlu0 %2987
        %v2989 = vadd.f32 %v2984, %v2985
        %2990 = vadd.xlane.f32.xlu0 %v2989
        %v2991 = vpop.xlane.xlu0 %2990
        %v2992 = vmul.f32 %v2988, %v1916
        %v2993 = vmul.f32 %v2991, %v1916
        %v2994 = vadd.f32 %v2992, 1e-05
        %v2995 = vadd.f32 %v2993, 1e-05
        %v2996 = vrsqrt.pop %v2994
        %v2997 = vrsqrt.pop %v2995
        %v2998 = vmul.f32 %v2978, %v2996
        %v2999 = vmul.f32 %v2979, %v2996
        %v3000 = vmul.f32 %v2980, %v2997
        %v3001 = vmul.f32 %v2981, %v2997
        %v3003 = vlaneseq
        %v3004 = vshrl.u32 %v3003, 7
        %v3005 = vsub.s32 0, %v3004
        %v3006 = vrot.slane %v1604, %v3005
        %v3007 = vlaneseq
        %v3008 = vshrl.u32 %v3007, 7
        %v3009 = vsub.s32 1, %v3008
        %v3010 = vrot.slane %v1604, %v3009
        %v3013 = vmul.f32 %v2998, %v3006
        %v3014 = vmul.f32 %v2999, %v3010
        %v3015 = vmul.f32 %v3000, %v3006
        %v3016 = vmul.f32 %v3001, %v3010
        %v3018 = vlaneseq
        %v3019 = vshrl.u32 %v3018, 7
        %v3020 = vsub.s32 0, %v3019
        %v3021 = vrot.slane %v1606, %v3020
        %v3022 = vlaneseq
        %v3023 = vshrl.u32 %v3022, 7
        %v3024 = vsub.s32 1, %v3023
        %v3025 = vrot.slane %v1606, %v3024
        %v3028 = vadd.f32 %v3013, %v3021
        %v3029 = vadd.f32 %v3014, %v3025
        %v3030 = vadd.f32 %v3015, %v3021
        %v3031 = vadd.f32 %v3016, %v3025
        %3032 = vst [vmem:[%s407] sm:$0xff] %v3028
        %3033 = vst [vmem:[%s407 + $0x8] sm:$0xff] %v3029
        %3034 = vst [vmem:[%s407 + $0x10] sm:$0xff] %v3030
        %3035 = vst [vmem:[%s407 + $0x18] sm:$0xff] %v3031
        %s3036 = sand.u32 %s209, 1
        %s3037 = scalar_lea.sflag [#allocation5], %s3036
        %s3038 = sand.u32 %s209, 1
        %s3039 = smul.addr %s3038, 32
        %s3040 = scalar_lea.vmem [#allocation15], %s3039
        // Predicated region
        $region81: #{flash_encoder_layer_forward.1} parent=51 // pred_check
          %p3041 = pneg %p219
        $region82: #{flash_encoder_layer_forward.1} parent=51 // pred_check_branch
          %3043 = sbr.rel (%p3041) target = $region84
        $region83: #{flash_encoder_layer_forward.1} parent=51 // pred_region
          %s3044 = smul.u32 2, %s28
          %s3046 = ssub.s32 512, 512
          %3047 = vsyncadd %s3037, %s3046
          %s3048 = smul.addr %s3044, 2
          %s3049 = smul.addr %s3048, 128
          %s3050 = scalar_lea.hbm %s8, %s3049
          %s3051 = sshll.u32 %s3040, 4
          %s3052 = int_to_ptr.vmem [resolvable:$true] %s3051
          %3057 = dma.vmem_to_hbm [thread:$0]  %s3052, 512, %s3050, %s3037, 256, 256, 16
        $region84: #{flash_encoder_layer_forward.1} parent=51 // pred_fallthru
          _
      $region52: #{flash_encoder_layer_forward.1} parent=5 // pred_fallthru
        _
      %p3058 = scmp.le.s32.totalorder 2, %s23
      // Predicated region
      $region85: #{flash_encoder_layer_forward.1} parent=5 // pred_check
        %p3059 = pneg %p3058
      $region86: #{flash_encoder_layer_forward.1} parent=5 // pred_check_branch
        %3061 = sbr.rel (%p3059) target = $region88
      $region87: #{flash_encoder_layer_forward.1} parent=5 // pred_region
        %s3062 = ssub.s32 %s23, 2
        // Predicated region
        $region89: #{flash_encoder_layer_forward.1} parent=87 // pred_check
          %p3063 = pneg %p225
        $region90: #{flash_encoder_layer_forward.1} parent=87 // pred_check_branch
          %3065 = sbr.rel (%p3063) target = $region92
        $region91: #{flash_encoder_layer_forward.1} parent=87 // pred_region
          %s3066 = sand.u32 %s210, 1
          %s3067 = scalar_lea.sflag [#allocation5], %s3066
          %s3068 = sand.u32 %s210, 1
          %s3069 = smul.addr %s3068, 32
          %s3070 = scalar_lea.vmem [#allocation15], %s3069
          %3071 = dma.done %s3067, 512
        $region92: #{flash_encoder_layer_forward.1} parent=87 // pred_fallthru
          _
      $region88: #{flash_encoder_layer_forward.1} parent=5 // pred_fallthru
        _
    $region6: #{flash_encoder_layer_forward.1} parent=1 // loop_footer
      %s27 = sadd.s32 1, %s23
    $region7: #{flash_encoder_layer_forward.1} parent=1 // loop_footer_branch
      %22 = sbr.rel target = $region3
    $region8: #{flash_encoder_layer_forward.1} parent=1 // loop_exit
      _
    %3072 = vsyncpa [#allocation4], 1
    %s3073 = scalar_lea.sflag [#allocation4], 1
    %3074 = vsyncpa %s3073, 1
    %3075 = vsyncpa [#allocation7], 1
    %3076 = vsyncpa [#allocation10], 1
    %3077 = vsyncpa [#allocation13], 1
    %3078 = vsyncpa [#allocation5], 1
    %s3079 = scalar_lea.sflag [#allocation5], 1
    %3080 = vsyncpa %s3079, 1

</llo_original>
